<compile_context>
chip_gen: v5e
topology: v5e:2x2
jax: 0.10.0
libtpu: 0.0.40
codegen_flags: <defaults>
</compile_context>

<pallas_src>
import functools

import jax
import jax.numpy as jnp
from jax.experimental import pallas as pl
from jax.experimental.pallas import tpu as pltpu


def _round_up(x, m):
    return ((x + m - 1) // m) * m


# ---------------------------------------------------------------------------
# Pallas kernel 1: fused conv matmul (single K block, no accumulator scratch)
#   out = relu((patches @ W) * scale + shift)      (conv bias folded into shift)
# ---------------------------------------------------------------------------
def _conv_mm_kernel(p_ref, w_ref, scale_ref, shift_ref, o_ref):
    acc = jnp.dot(p_ref[...], w_ref[...], preferred_element_type=jnp.float32)
    y = acc * scale_ref[...] + shift_ref[...]
    o_ref[...] = jnp.maximum(y, 0.0).astype(o_ref.dtype)


def fused_conv(patches, w_mat, scale, shift):
    """(M, K) @ (K, N) with fused BN-affine + ReLU.  bf16 operands/output,
    f32 accumulation.  K is NOT padded; full K extent is one block."""
    M, K = patches.shape
    Nout = w_mat.shape[1]

    # N tiling: keep unpadded channel extent when it fits one vreg lane group.
    if Nout <= 128:
        tn, n_pad = Nout, Nout
    else:
        tn = 128
        n_pad = _round_up(Nout, tn)

    # M tiling: multiples of 16 (bf16 sublane packing); guarantee >=2 tiles on
    # the parallel axis so both v7x TensorCores get work.
    tm = min(512, _round_up(M, 16))
    m_pad = _round_up(M, tm)
    if (m_pad // tm) * (n_pad // tn) == 1 and M > 16:
        tm = _round_up((M + 1) // 2, 16)
        m_pad = 2 * tm

    p = patches.astype(jnp.bfloat16)
    if m_pad > M:
        p = jnp.pad(p, ((0, m_pad - M), (0, 0)))
    w = w_mat.astype(jnp.bfloat16)
    sc = scale.astype(jnp.float32).reshape(1, -1)
    sh = shift.astype(jnp.float32).reshape(1, -1)
    if n_pad > Nout:
        w = jnp.pad(w, ((0, 0), (0, n_pad - Nout)))
        sc = jnp.pad(sc, ((0, 0), (0, n_pad - Nout)))
        sh = jnp.pad(sh, ((0, 0), (0, n_pad - Nout)))

    grid = (m_pad // tm, n_pad // tn)

    out = pl.pallas_call(
        _conv_mm_kernel,
        out_shape=jax.ShapeDtypeStruct((m_pad, n_pad), jnp.bfloat16),
        grid_spec=pltpu.PrefetchScalarGridSpec(
            num_scalar_prefetch=0,
            grid=grid,
            in_specs=[
                pl.BlockSpec((tm, K), lambda i, j: (i, 0)),
                pl.BlockSpec((K, tn), lambda i, j: (0, j)),
                pl.BlockSpec((1, tn), lambda i, j: (0, j)),
                pl.BlockSpec((1, tn), lambda i, j: (0, j)),
            ],
            out_specs=pl.BlockSpec((tm, tn), lambda i, j: (i, j)),
        ),
        compiler_params=pltpu.CompilerParams(
            dimension_semantics=("parallel", "parallel"),
            vmem_limit_bytes=32 * 1024 * 1024,
        ),
    )(p, w, sc, sh)

    if m_pad > M or n_pad > Nout:
        out = out[:M, :Nout]
    return out


# ---------------------------------------------------------------------------
# Pallas kernel 2: CfC recurrence — single call, hoisted input projection,
# fully-unrolled T-step loop with only h @ Wh gate matmuls on the serial chain.
# ---------------------------------------------------------------------------
def _cfc_kernel(x_ref, wx_ref, b_ref, wh1_ref, wh2_ref, wht_ref, o_ref, *, T, B, H):
    # Hoisted, time-invariant input projection: one (T*B, In) x (In, 4H) matmul.
    gx = (jnp.dot(x_ref[...], wx_ref[...], preferred_element_type=jnp.float32)
          + b_ref[...])                                   # (T*B, 4H) f32
    g1 = gx[:, 0:H]                                       # ff1 pre-activation
    g2 = gx[:, H:2 * H]                                   # ff2 pre-activation
    gt = gx[:, 2 * H:3 * H] + gx[:, 3 * H:4 * H]          # time_a + time_b (ts=1)

    wh1 = wh1_ref[...]                                    # (H, H) bf16
    wh2 = wh2_ref[...]
    wht = wht_ref[...]

    h = jnp.zeros((B, H), jnp.float32)
    for t in range(T):                                    # T static -> unrolled
        hb = h.astype(jnp.bfloat16)
        lo, hi = t * B, (t + 1) * B
        ff1 = jnp.tanh(g1[lo:hi]
                       + jnp.dot(hb, wh1, preferred_element_type=jnp.float32))
        ff2 = jnp.tanh(g2[lo:hi]
                       + jnp.dot(hb, wh2, preferred_element_type=jnp.float32))
        t_interp = jax.nn.sigmoid(
            gt[lo:hi] + jnp.dot(hb, wht, preferred_element_type=jnp.float32))
        h = ff1 * (1.0 - t_interp) + t_interp * ff2       # (B, H) f32
    o_ref[...] = h


def cfc_forward(x_seq, wx, wh, b):
    # x_seq: (T, B, In) time-major
    T, B, In = x_seq.shape
    H = wh.shape[0]
    # Gate-split weights (done once at trace time, outside the kernel):
    wh1 = wh[:, 0:H]
    wh2 = wh[:, H:2 * H]
    wht = wh[:, 2 * H:3 * H] + wh[:, 3 * H:4 * H]         # ts = 1.0 (default CfC)
    x2 = x_seq.reshape(T * B, In).astype(jnp.bfloat16)

    kernel = functools.partial(_cfc_kernel, T=T, B=B, H=H)
    return pl.pallas_call(
        kernel,
        out_shape=jax.ShapeDtypeStruct((B, H), jnp.float32),
    )(
        x2,
        wx.astype(jnp.bfloat16),
        b.astype(jnp.float32),
        wh1.astype(jnp.bfloat16),
        wh2.astype(jnp.bfloat16),
        wht.astype(jnp.bfloat16),
    )


# ---------------------------------------------------------------------------
# Plain-JAX glue: NHWC im2col, maxpool, BN folding, parameter setup
# ---------------------------------------------------------------------------
def im2col_nhwc(x, kh, kw, stride, pad):
    # x: (N, H, W, C) (already bf16)  ->  patches (N*OH*OW, KH*KW*C)
    if pad > 0:
        x = jnp.pad(x, ((0, 0), (pad, pad), (pad, pad), (0, 0)))
    N, Hp, Wp, C = x.shape
    oh = (Hp - kh) // stride + 1
    ow = (Wp - kw) // stride + 1
    cols = []
    for i in range(kh):
        for j in range(kw):
            cols.append(x[:, i:i + stride * oh:stride, j:j + stride * ow:stride, :])
    patches = jnp.stack(cols, axis=3)                # (N, OH, OW, KH*KW, C)
    patches = patches.reshape(N * oh * ow, kh * kw * C)
    return patches, oh, ow


def conv_layer(x, w, b, stride, pad, scale=None, shift=None):
    # x: NHWC bf16.  w: torch layout (C_out, C_in, KH, KW).
    c_out, c_in, kh, kw = w.shape
    N = x.shape[0]
    patches, oh, ow = im2col_nhwc(x, kh, kw, stride, pad)
    # weight feature order must match patches: (KH, KW, C_in) -> C_out
    w_mat = jnp.transpose(w, (2, 3, 1, 0)).reshape(kh * kw * c_in, c_out)
    if scale is None:
        scale = jnp.ones((c_out,), jnp.float32)
        shift = jnp.zeros((c_out,), jnp.float32)
    shift = shift + b * scale                        # fold conv bias into shift
    y = fused_conv(patches, w_mat, scale, shift)     # (N*OH*OW, C_out) bf16
    return y.reshape(N, oh, ow, c_out)               # stay NHWC, bf16


def bn_fold(gamma, beta, mean, var, eps=1e-5):
    scale = gamma / jnp.sqrt(var + eps)
    shift = beta - mean * scale
    return scale, shift


def init_params(key, hidden_size, num_classes, ncp_input_size):
    ks = jax.random.split(key, 16)
    s = 0.1

    def nrm(k, shape):
        return (s * jax.random.normal(k, shape)).astype(jnp.float32)

    p = {
        "w1": nrm(ks[0], (16, 1, 3, 3)),   "b1": nrm(ks[1], (16,)),
        "w2": nrm(ks[2], (32, 16, 3, 3)),  "b2": nrm(ks[3], (32,)),
        "w3": nrm(ks[4], (64, 32, 5, 5)),  "b3": nrm(ks[5], (64,)),
        "w4": nrm(ks[6], (128, 64, 5, 5)), "b4": nrm(ks[7], (128,)),
        # BatchNorm (eval-mode running stats)
        "bn2_g": jnp.ones((32,), jnp.float32),  "bn2_b": jnp.zeros((32,), jnp.float32),
        "bn2_mean": jnp.zeros((32,), jnp.float32), "bn2_var": jnp.ones((32,), jnp.float32),
        "bn4_g": jnp.ones((128,), jnp.float32), "bn4_b": jnp.zeros((128,), jnp.float32),
        "bn4_mean": jnp.zeros((128,), jnp.float32), "bn4_var": jnp.ones((128,), jnp.float32),
        # CfC cell: fused projection [ff1 | ff2 | time_a | time_b]
        "cfc_wx": nrm(ks[8], (ncp_input_size, 4 * hidden_size)),
        "cfc_wh": nrm(ks[9], (hidden_size, 4 * hidden_size)),
        "cfc_b": nrm(ks[10], (1, 4 * hidden_size)),
    }
    return p


def lnn_forward(x, params, sequence_length, ncp_input_size, hidden_size, num_classes):
    # x: (N, 1, H, W) NCHW float32 (torch layout) -> NHWC bf16 for the conv stack
    x = jnp.transpose(x, (0, 2, 3, 1)).astype(jnp.bfloat16)

    # conv1 + relu
    x = conv_layer(x, params["w1"], params["b1"], stride=1, pad=0)
    # conv2 + bn2 + relu
    s2, sh2 = bn_fold(params["bn2_g"], params["bn2_b"], params["bn2_mean"], params["bn2_var"])
    x = conv_layer(x, params["w2"], params["b2"], stride=2, pad=2, scale=s2, shift=sh2)
    # conv3 + relu
    x = conv_layer(x, params["w3"], params["b3"], stride=2, pad=2)
    # conv4 + bn4 + relu
    s4, sh4 = bn_fold(params["bn4_g"], params["bn4_b"], params["bn4_mean"], params["bn4_var"])
    x = conv_layer(x, params["w4"], params["b4"], stride=2, pad=2, scale=s4, shift=sh4)

    # max_pool2d (2, 2) on NHWC
    n, h, w, c = x.shape
    x = x.reshape(n, h // 2, 2, w // 2, 2, c).max(axis=(2, 4))

    # torch flattens in NCHW order: transpose once (tiny tensor) then view
    x = jnp.transpose(x, (0, 3, 1, 2))               # (N, C, H, W)
    x = x.reshape(-1, sequence_length, ncp_input_size)

    # CfC RNN, h0 = zeros; whole sequence processed inside one Pallas kernel
    x_seq = jnp.transpose(x, (1, 0, 2))              # time-major (T, B, In)
    h_final = cfc_forward(x_seq, params["cfc_wx"], params["cfc_wh"], params["cfc_b"])

    # out[:, -1, :]  ->  motor (output) neurons of the final hidden state
    return h_final[:, hidden_size - num_classes:]


if __name__ == "__main__":
    # Model config consistent with the PyTorch module:
    #   input 28x28 grayscale -> conv stack -> (N, 128, 2, 2) -> 512 feats
    #   = sequence_length (8) x ncp_input_size (64)
    ncp_input_size = 64
    hidden_size = 32
    num_classes = 10
    sequence_length = 8

    key = jax.random.PRNGKey(0)
    k_x, k_p = jax.random.split(key)
    x = jax.random.normal(k_x, (2, 1, 28, 28), dtype=jnp.float32)
    params = init_params(k_p, hidden_size, num_classes, ncp_input_size)

    fwd = jax.jit(lambda xx, pp: lnn_forward(
        xx, pp, sequence_length, ncp_input_size, hidden_size, num_classes))
    out = jax.block_until_ready(fwd(x, params))
    assert out.shape == (2, num_classes), out.shape
    print("KERNEL_OK")
</pallas_src>

<mosaic_0001>
module attributes {stable_mosaic.version = 11 : i64} {
  func.func @_conv_mm_kernel(%arg0: i32, %arg1: i32, %arg2: memref<512x9xbf16, #tpu.memory_space<vmem>>, %arg3: memref<9x16xbf16, #tpu.memory_space<vmem>>, %arg4: memref<1x16xf32, #tpu.memory_space<vmem>>, %arg5: memref<1x16xf32, #tpu.memory_space<vmem>>, %arg6: memref<512x16xbf16, #tpu.memory_space<vmem>>) attributes {dimension_semantics = [#tpu.dimension_semantics<parallel>, #tpu.dimension_semantics<parallel>], iteration_bounds = array<i64: 3, 1>, scalar_prefetch = 0 : i64, scratch_operands = 0 : i64, tpu.core_type = #tpu.core_type<tc>, window_params = [{transform_indices = @transform_0, window_bounds = array<i64: 512, 9>}, {transform_indices = @transform_1, window_bounds = array<i64: 9, 16>}, {transform_indices = @transform_2, window_bounds = array<i64: 1, 16>}, {transform_indices = @transform_3, window_bounds = array<i64: 1, 16>}, {transform_indices = @transform_4, window_bounds = array<i64: 512, 16>}]} {
    %c0 = arith.constant 0 : index
    %c0_0 = arith.constant 0 : index
    %0 = vector.load %arg2[%c0, %c0_0] : memref<512x9xbf16, #tpu.memory_space<vmem>>, vector<512x9xbf16>
    %c0_1 = arith.constant 0 : index
    %c0_2 = arith.constant 0 : index
    %1 = vector.load %arg3[%c0_1, %c0_2] : memref<9x16xbf16, #tpu.memory_space<vmem>>, vector<9x16xbf16>
    %cst = arith.constant dense<0.000000e+00> : vector<512x16xf32>
    %2 = tpu.matmul %0, %1, %cst {dimension_numbers = #tpu.dot_dimension_numbers<[1], [0], [0], [1], [0, 0, 1, 1], [], []>} : vector<512x9xbf16>, vector<9x16xbf16>, vector<512x16xf32> -> vector<512x16xf32>
    %c0_3 = arith.constant 0 : index
    %c0_4 = arith.constant 0 : index
    %3 = vector.load %arg4[%c0_3, %c0_4] : memref<1x16xf32, #tpu.memory_space<vmem>>, vector<1x16xf32>
    %4 = vector.broadcast %3 : vector<1x16xf32> to vector<512x16xf32>
    %5 = arith.mulf %2, %4 : vector<512x16xf32>
    %c0_5 = arith.constant 0 : index
    %c0_6 = arith.constant 0 : index
    %6 = vector.load %arg5[%c0_5, %c0_6] : memref<1x16xf32, #tpu.memory_space<vmem>>, vector<1x16xf32>
    %7 = vector.broadcast %6 : vector<1x16xf32> to vector<512x16xf32>
    %8 = arith.addf %5, %7 : vector<512x16xf32>
    %cst_7 = arith.constant 0.000000e+00 : f32
    %9 = vector.broadcast %cst_7 : f32 to vector<512x16xf32>
    %10 = arith.maximumf %8, %9 : vector<512x16xf32>
    %11 = arith.truncf %10 : vector<512x16xf32> to vector<512x16xbf16>
    %c0_8 = arith.constant 0 : index
    %c0_9 = arith.constant 0 : index
    %12 = vector.load %arg6[%c0_8, %c0_9] : memref<512x16xbf16, #tpu.memory_space<vmem>>, vector<512x16xbf16>
    tpu.vector_store %arg6[%c0_8, %c0_9], %11 {strides = array<i32>} : memref<512x16xbf16, #tpu.memory_space<vmem>>, vector<512x16xbf16>,
    return
  }
  func.func @transform_0(%arg0: i32, %arg1: i32) -> (i32, i32) {
    %c0_i32 = arith.constant 0 : i32
    %c0_i32_0 = arith.constant 0 : i32
    return %arg0, %c0_i32 : i32, i32
  }
  func.func @transform_1(%arg0: i32, %arg1: i32) -> (i32, i32) {
    %c0_i32 = arith.constant 0 : i32
    %c0_i32_0 = arith.constant 0 : i32
    return %c0_i32, %arg1 : i32, i32
  }
  func.func @transform_2(%arg0: i32, %arg1: i32) -> (i32, i32) {
    %c0_i32 = arith.constant 0 : i32
    %c0_i32_0 = arith.constant 0 : i32
    return %c0_i32, %arg1 : i32, i32
  }
  func.func @transform_3(%arg0: i32, %arg1: i32) -> (i32, i32) {
    %c0_i32 = arith.constant 0 : i32
    %c0_i32_0 = arith.constant 0 : i32
    return %c0_i32, %arg1 : i32, i32
  }
  func.func @transform_4(%arg0: i32, %arg1: i32) -> (i32, i32) {
    %c0_i32 = arith.constant 0 : i32
    return %arg0, %arg1 : i32, i32
  }
}

module attributes {stable_mosaic.version = 11 : i64} {
  func.func @_conv_mm_kernel(%arg0: i32, %arg1: i32, %arg2: memref<208x144xbf16, #tpu.memory_space<vmem>>, %arg3: memref<144x32xbf16, #tpu.memory_space<vmem>>, %arg4: memref<1x32xf32, #tpu.memory_space<vmem>>, %arg5: memref<1x32xf32, #tpu.memory_space<vmem>>, %arg6: memref<208x32xbf16, #tpu.memory_space<vmem>>) attributes {dimension_semantics = [#tpu.dimension_semantics<parallel>, #tpu.dimension_semantics<parallel>], iteration_bounds = array<i64: 2, 1>, scalar_prefetch = 0 : i64, scratch_operands = 0 : i64, tpu.core_type = #tpu.core_type<tc>, window_params = [{transform_indices = @transform_0, window_bounds = array<i64: 208, 144>}, {transform_indices = @transform_1, window_bounds = array<i64: 144, 32>}, {transform_indices = @transform_2, window_bounds = array<i64: 1, 32>}, {transform_indices = @transform_3, window_bounds = array<i64: 1, 32>}, {transform_indices = @transform_4, window_bounds = array<i64: 208, 32>}]} {
    %c0 = arith.constant 0 : index
    %c0_0 = arith.constant 0 : index
    %0 = vector.load %arg2[%c0, %c0_0] : memref<208x144xbf16, #tpu.memory_space<vmem>>, vector<208x144xbf16>
    %c0_1 = arith.constant 0 : index
    %c0_2 = arith.constant 0 : index
    %1 = vector.load %arg3[%c0_1, %c0_2] : memref<144x32xbf16, #tpu.memory_space<vmem>>, vector<144x32xbf16>
    %cst = arith.constant dense<0.000000e+00> : vector<208x32xf32>
    %2 = tpu.matmul %0, %1, %cst {dimension_numbers = #tpu.dot_dimension_numbers<[1], [0], [0], [1], [0, 0, 1, 1], [], []>} : vector<208x144xbf16>, vector<144x32xbf16>, vector<208x32xf32> -> vector<208x32xf32>
    %c0_3 = arith.constant 0 : index
    %c0_4 = arith.constant 0 : index
    %3 = vector.load %arg4[%c0_3, %c0_4] : memref<1x32xf32, #tpu.memory_space<vmem>>, vector<1x32xf32>
    %4 = vector.broadcast %3 : vector<1x32xf32> to vector<208x32xf32>
    %5 = arith.mulf %2, %4 : vector<208x32xf32>
    %c0_5 = arith.constant 0 : index
    %c0_6 = arith.constant 0 : index
    %6 = vector.load %arg5[%c0_5, %c0_6] : memref<1x32xf32, #tpu.memory_space<vmem>>, vector<1x32xf32>
    %7 = vector.broadcast %6 : vector<1x32xf32> to vector<208x32xf32>
    %8 = arith.addf %5, %7 : vector<208x32xf32>
    %cst_7 = arith.constant 0.000000e+00 : f32
    %9 = vector.broadcast %cst_7 : f32 to vector<208x32xf32>
    %10 = arith.maximumf %8, %9 : vector<208x32xf32>
    %11 = arith.truncf %10 : vector<208x32xf32> to vector<208x32xbf16>
    %c0_8 = arith.constant 0 : index
    %c0_9 = arith.constant 0 : index
    %12 = vector.load %arg6[%c0_8, %c0_9] : memref<208x32xbf16, #tpu.memory_space<vmem>>, vector<208x32xbf16>
    tpu.vector_store %arg6[%c0_8, %c0_9], %11 {strides = array<i32>} : memref<208x32xbf16, #tpu.memory_space<vmem>>, vector<208x32xbf16>,
    return
  }
  func.func @transform_0(%arg0: i32, %arg1: i32) -> (i32, i32) {
    %c0_i32 = arith.constant 0 : i32
    %c0_i32_0 = arith.constant 0 : i32
    return %arg0, %c0_i32 : i32, i32
  }
  func.func @transform_1(%arg0: i32, %arg1: i32) -> (i32, i32) {
    %c0_i32 = arith.constant 0 : i32
    %c0_i32_0 = arith.constant 0 : i32
    return %c0_i32, %arg1 : i32, i32
  }
  func.func @transform_2(%arg0: i32, %arg1: i32) -> (i32, i32) {
    %c0_i32 = arith.constant 0 : i32
    %c0_i32_0 = arith.constant 0 : i32
    return %c0_i32, %arg1 : i32, i32
  }
  func.func @transform_3(%arg0: i32, %arg1: i32) -> (i32, i32) {
    %c0_i32 = arith.constant 0 : i32
    %c0_i32_0 = arith.constant 0 : i32
    return %c0_i32, %arg1 : i32, i32
  }
  func.func @transform_4(%arg0: i32, %arg1: i32) -> (i32, i32) {
    %c0_i32 = arith.constant 0 : i32
    return %arg0, %arg1 : i32, i32
  }
}

module attributes {stable_mosaic.version = 11 : i64} {
  func.func @_conv_mm_kernel(%arg0: i32, %arg1: i32, %arg2: memref<64x800xbf16, #tpu.memory_space<vmem>>, %arg3: memref<800x64xbf16, #tpu.memory_space<vmem>>, %arg4: memref<1x64xf32, #tpu.memory_space<vmem>>, %arg5: memref<1x64xf32, #tpu.memory_space<vmem>>, %arg6: memref<64x64xbf16, #tpu.memory_space<vmem>>) attributes {dimension_semantics = [#tpu.dimension_semantics<parallel>, #tpu.dimension_semantics<parallel>], iteration_bounds = array<i64: 2, 1>, scalar_prefetch = 0 : i64, scratch_operands = 0 : i64, tpu.core_type = #tpu.core_type<tc>, window_params = [{transform_indices = @transform_0, window_bounds = array<i64: 64, 800>}, {transform_indices = @transform_1, window_bounds = array<i64: 800, 64>}, {transform_indices = @transform_2, window_bounds = array<i64: 1, 64>}, {transform_indices = @transform_3, window_bounds = array<i64: 1, 64>}, {transform_indices = @transform_4, window_bounds = array<i64: 64, 64>}]} {
    %c0 = arith.constant 0 : index
    %c0_0 = arith.constant 0 : index
    %0 = vector.load %arg2[%c0, %c0_0] : memref<64x800xbf16, #tpu.memory_space<vmem>>, vector<64x800xbf16>
    %c0_1 = arith.constant 0 : index
    %c0_2 = arith.constant 0 : index
    %1 = vector.load %arg3[%c0_1, %c0_2] : memref<800x64xbf16, #tpu.memory_space<vmem>>, vector<800x64xbf16>
    %cst = arith.constant dense<0.000000e+00> : vector<64x64xf32>
    %2 = tpu.matmul %0, %1, %cst {dimension_numbers = #tpu.dot_dimension_numbers<[1], [0], [0], [1], [0, 0, 1, 1], [], []>} : vector<64x800xbf16>, vector<800x64xbf16>, vector<64x64xf32> -> vector<64x64xf32>
    %c0_3 = arith.constant 0 : index
    %c0_4 = arith.constant 0 : index
    %3 = vector.load %arg4[%c0_3, %c0_4] : memref<1x64xf32, #tpu.memory_space<vmem>>, vector<1x64xf32>
    %4 = vector.broadcast %3 : vector<1x64xf32> to vector<64x64xf32>
    %5 = arith.mulf %2, %4 : vector<64x64xf32>
    %c0_5 = arith.constant 0 : index
    %c0_6 = arith.constant 0 : index
    %6 = vector.load %arg5[%c0_5, %c0_6] : memref<1x64xf32, #tpu.memory_space<vmem>>, vector<1x64xf32>
    %7 = vector.broadcast %6 : vector<1x64xf32> to vector<64x64xf32>
    %8 = arith.addf %5, %7 : vector<64x64xf32>
    %cst_7 = arith.constant 0.000000e+00 : f32
    %9 = vector.broadcast %cst_7 : f32 to vector<64x64xf32>
    %10 = arith.maximumf %8, %9 : vector<64x64xf32>
    %11 = arith.truncf %10 : vector<64x64xf32> to vector<64x64xbf16>
    %c0_8 = arith.constant 0 : index
    %c0_9 = arith.constant 0 : index
    %12 = vector.load %arg6[%c0_8, %c0_9] : memref<64x64xbf16, #tpu.memory_space<vmem>>, vector<64x64xbf16>
    tpu.vector_store %arg6[%c0_8, %c0_9], %11 {strides = array<i32>} : memref<64x64xbf16, #tpu.memory_space<vmem>>, vector<64x64xbf16>,
    return
  }
  func.func @transform_0(%arg0: i32, %arg1: i32) -> (i32, i32) {
    %c0_i32 = arith.constant 0 : i32
    %c0_i32_0 = arith.constant 0 : i32
    return %arg0, %c0_i32 : i32, i32
  }
  func.func @transform_1(%arg0: i32, %arg1: i32) -> (i32, i32) {
    %c0_i32 = arith.constant 0 : i32
    %c0_i32_0 = arith.constant 0 : i32
    return %c0_i32, %arg1 : i32, i32
  }
  func.func @transform_2(%arg0: i32, %arg1: i32) -> (i32, i32) {
    %c0_i32 = arith.constant 0 : i32
    %c0_i32_0 = arith.constant 0 : i32
    return %c0_i32, %arg1 : i32, i32
  }
  func.func @transform_3(%arg0: i32, %arg1: i32) -> (i32, i32) {
    %c0_i32 = arith.constant 0 : i32
    %c0_i32_0 = arith.constant 0 : i32
    return %c0_i32, %arg1 : i32, i32
  }
  func.func @transform_4(%arg0: i32, %arg1: i32) -> (i32, i32) {
    %c0_i32 = arith.constant 0 : i32
    return %arg0, %arg1 : i32, i32
  }
}

module attributes {stable_mosaic.version = 11 : i64} {
  func.func @_conv_mm_kernel(%arg0: i32, %arg1: i32, %arg2: memref<16x1600xbf16, #tpu.memory_space<vmem>>, %arg3: memref<1600x128xbf16, #tpu.memory_space<vmem>>, %arg4: memref<1x128xf32, #tpu.memory_space<vmem>>, %arg5: memref<1x128xf32, #tpu.memory_space<vmem>>, %arg6: memref<16x128xbf16, #tpu.memory_space<vmem>>) attributes {dimension_semantics = [#tpu.dimension_semantics<parallel>, #tpu.dimension_semantics<parallel>], iteration_bounds = array<i64: 2, 1>, scalar_prefetch = 0 : i64, scratch_operands = 0 : i64, tpu.core_type = #tpu.core_type<tc>, window_params = [{transform_indices = @transform_0, window_bounds = array<i64: 16, 1600>}, {transform_indices = @transform_1, window_bounds = array<i64: 1600, 128>}, {transform_indices = @transform_2, window_bounds = array<i64: 1, 128>}, {transform_indices = @transform_3, window_bounds = array<i64: 1, 128>}, {transform_indices = @transform_4, window_bounds = array<i64: 16, 128>}]} {
    %c0 = arith.constant 0 : index
    %c0_0 = arith.constant 0 : index
    %0 = vector.load %arg2[%c0, %c0_0] : memref<16x1600xbf16, #tpu.memory_space<vmem>>, vector<16x1600xbf16>
    %c0_1 = arith.constant 0 : index
    %c0_2 = arith.constant 0 : index
    %1 = vector.load %arg3[%c0_1, %c0_2] : memref<1600x128xbf16, #tpu.memory_space<vmem>>, vector<1600x128xbf16>
    %cst = arith.constant dense<0.000000e+00> : vector<16x128xf32>
    %2 = tpu.matmul %0, %1, %cst {dimension_numbers = #tpu.dot_dimension_numbers<[1], [0], [0], [1], [0, 0, 1, 1], [], []>} : vector<16x1600xbf16>, vector<1600x128xbf16>, vector<16x128xf32> -> vector<16x128xf32>
    %c0_3 = arith.constant 0 : index
    %c0_4 = arith.constant 0 : index
    %3 = vector.load %arg4[%c0_3, %c0_4] : memref<1x128xf32, #tpu.memory_space<vmem>>, vector<1x128xf32>
    %4 = vector.broadcast %3 : vector<1x128xf32> to vector<16x128xf32>
    %5 = arith.mulf %2, %4 : vector<16x128xf32>
    %c0_5 = arith.constant 0 : index
    %c0_6 = arith.constant 0 : index
    %6 = vector.load %arg5[%c0_5, %c0_6] : memref<1x128xf32, #tpu.memory_space<vmem>>, vector<1x128xf32>
    %7 = vector.broadcast %6 : vector<1x128xf32> to vector<16x128xf32>
    %8 = arith.addf %5, %7 : vector<16x128xf32>
    %cst_7 = arith.constant 0.000000e+00 : f32
    %9 = vector.broadcast %cst_7 : f32 to vector<16x128xf32>
    %10 = arith.maximumf %8, %9 : vector<16x128xf32>
    %11 = arith.truncf %10 : vector<16x128xf32> to vector<16x128xbf16>
    %c0_8 = arith.constant 0 : index
    %c0_9 = arith.constant 0 : index
    %12 = vector.load %arg6[%c0_8, %c0_9] : memref<16x128xbf16, #tpu.memory_space<vmem>>, vector<16x128xbf16>
    tpu.vector_store %arg6[%c0_8, %c0_9], %11 {strides = array<i32>} : memref<16x128xbf16, #tpu.memory_space<vmem>>, vector<16x128xbf16>,
    return
  }
  func.func @transform_0(%arg0: i32, %arg1: i32) -> (i32, i32) {
    %c0_i32 = arith.constant 0 : i32
    %c0_i32_0 = arith.constant 0 : i32
    return %arg0, %c0_i32 : i32, i32
  }
  func.func @transform_1(%arg0: i32, %arg1: i32) -> (i32, i32) {
    %c0_i32 = arith.constant 0 : i32
    %c0_i32_0 = arith.constant 0 : i32
    return %c0_i32, %arg1 : i32, i32
  }
  func.func @transform_2(%arg0: i32, %arg1: i32) -> (i32, i32) {
    %c0_i32 = arith.constant 0 : i32
    %c0_i32_0 = arith.constant 0 : i32
    return %c0_i32, %arg1 : i32, i32
  }
  func.func @transform_3(%arg0: i32, %arg1: i32) -> (i32, i32) {
    %c0_i32 = arith.constant 0 : i32
    %c0_i32_0 = arith.constant 0 : i32
    return %c0_i32, %arg1 : i32, i32
  }
  func.func @transform_4(%arg0: i32, %arg1: i32) -> (i32, i32) {
    %c0_i32 = arith.constant 0 : i32
    return %arg0, %arg1 : i32, i32
  }
}

module attributes {stable_mosaic.version = 11 : i64} {
  func.func @_cfc_kernel(%arg0: memref<16x64xbf16, #tpu.memory_space<vmem>>, %arg1: memref<64x128xbf16, #tpu.memory_space<vmem>>, %arg2: memref<1x128xf32, #tpu.memory_space<vmem>>, %arg3: memref<32x32xbf16, #tpu.memory_space<vmem>>, %arg4: memref<32x32xbf16, #tpu.memory_space<vmem>>, %arg5: memref<32x32xbf16, #tpu.memory_space<vmem>>, %arg6: memref<2x32xf32, #tpu.memory_space<vmem>>) attributes {dimension_semantics = [], scalar_prefetch = 0 : i64, scratch_operands = 0 : i64, tpu.core_type = #tpu.core_type<tc>} {
    %c0 = arith.constant 0 : index
    %c0_0 = arith.constant 0 : index
    %0 = vector.load %arg0[%c0, %c0_0] : memref<16x64xbf16, #tpu.memory_space<vmem>>, vector<16x64xbf16>
    %c0_1 = arith.constant 0 : index
    %c0_2 = arith.constant 0 : index
    %1 = vector.load %arg1[%c0_1, %c0_2] : memref<64x128xbf16, #tpu.memory_space<vmem>>, vector<64x128xbf16>
    %cst = arith.constant dense<0.000000e+00> : vector<16x128xf32>
    %2 = tpu.matmul %0, %1, %cst {dimension_numbers = #tpu.dot_dimension_numbers<[1], [0], [0], [1], [0, 0, 1, 1], [], []>} : vector<16x64xbf16>, vector<64x128xbf16>, vector<16x128xf32> -> vector<16x128xf32>
    %c0_3 = arith.constant 0 : index
    %c0_4 = arith.constant 0 : index
    %3 = vector.load %arg2[%c0_3, %c0_4] : memref<1x128xf32, #tpu.memory_space<vmem>>, vector<1x128xf32>
    %4 = vector.broadcast %3 : vector<1x128xf32> to vector<16x128xf32>
    %5 = arith.addf %2, %4 : vector<16x128xf32>
    %6 = vector.extract_strided_slice %5 {offsets = [0, 0], sizes = [16, 32], strides = [1, 1]} : vector<16x128xf32> to vector<16x32xf32>
    %7 = vector.extract_strided_slice %5 {offsets = [0, 32], sizes = [16, 32], strides = [1, 1]} : vector<16x128xf32> to vector<16x32xf32>
    %8 = vector.extract_strided_slice %5 {offsets = [0, 64], sizes = [16, 32], strides = [1, 1]} : vector<16x128xf32> to vector<16x32xf32>
    %9 = vector.extract_strided_slice %5 {offsets = [0, 96], sizes = [16, 32], strides = [1, 1]} : vector<16x128xf32> to vector<16x32xf32>
    %10 = arith.addf %8, %9 : vector<16x32xf32>
    %c0_5 = arith.constant 0 : index
    %c0_6 = arith.constant 0 : index
    %11 = vector.load %arg3[%c0_5, %c0_6] : memref<32x32xbf16, #tpu.memory_space<vmem>>, vector<32x32xbf16>
    %c0_7 = arith.constant 0 : index
    %c0_8 = arith.constant 0 : index
    %12 = vector.load %arg4[%c0_7, %c0_8] : memref<32x32xbf16, #tpu.memory_space<vmem>>, vector<32x32xbf16>
    %c0_9 = arith.constant 0 : index
    %c0_10 = arith.constant 0 : index
    %13 = vector.load %arg5[%c0_9, %c0_10] : memref<32x32xbf16, #tpu.memory_space<vmem>>, vector<32x32xbf16>
    %cst_11 = arith.constant 0.000000e+00 : f32
    %14 = vector.broadcast %cst_11 : f32 to vector<2x32xf32>
    %15 = arith.truncf %14 : vector<2x32xf32> to vector<2x32xbf16>
    %16 = vector.extract_strided_slice %6 {offsets = [0, 0], sizes = [2, 32], strides = [1, 1]} : vector<16x32xf32> to vector<2x32xf32>
    %cst_12 = arith.constant dense<0.000000e+00> : vector<2x32xf32>
    %17 = tpu.matmul %15, %11, %cst_12 {dimension_numbers = #tpu.dot_dimension_numbers<[1], [0], [0], [1], [0, 0, 1, 1], [], []>} : vector<2x32xbf16>, vector<32x32xbf16>, vector<2x32xf32> -> vector<2x32xf32>
    %18 = arith.addf %16, %17 : vector<2x32xf32>
    %19 = math.tanh %18 : vector<2x32xf32>
    %20 = vector.extract_strided_slice %7 {offsets = [0, 0], sizes = [2, 32], strides = [1, 1]} : vector<16x32xf32> to vector<2x32xf32>
    %cst_13 = arith.constant dense<0.000000e+00> : vector<2x32xf32>
    %21 = tpu.matmul %15, %12, %cst_13 {dimension_numbers = #tpu.dot_dimension_numbers<[1], [0], [0], [1], [0, 0, 1, 1], [], []>} : vector<2x32xbf16>, vector<32x32xbf16>, vector<2x32xf32> -> vector<2x32xf32>
    %22 = arith.addf %20, %21 : vector<2x32xf32>
    %23 = math.tanh %22 : vector<2x32xf32>
    %24 = vector.extract_strided_slice %10 {offsets = [0, 0], sizes = [2, 32], strides = [1, 1]} : vector<16x32xf32> to vector<2x32xf32>
    %cst_14 = arith.constant dense<0.000000e+00> : vector<2x32xf32>
    %25 = tpu.matmul %15, %13, %cst_14 {dimension_numbers = #tpu.dot_dimension_numbers<[1], [0], [0], [1], [0, 0, 1, 1], [], []>} : vector<2x32xbf16>, vector<32x32xbf16>, vector<2x32xf32> -> vector<2x32xf32>
    %26 = arith.addf %24, %25 : vector<2x32xf32>
    %27 = arith.negf %26 : vector<2x32xf32>
    %28 = math.exp %27 : vector<2x32xf32>
    %cst_15 = arith.constant 1.000000e+00 : f32
    %29 = vector.broadcast %cst_15 : f32 to vector<2x32xf32>
    %30 = arith.addf %29, %28 : vector<2x32xf32>
    %31 = arith.divf %29, %30 : vector<2x32xf32>
    %cst_16 = arith.constant 1.000000e+00 : f32
    %32 = vector.broadcast %cst_16 : f32 to vector<2x32xf32>
    %33 = arith.subf %32, %31 : vector<2x32xf32>
    %34 = arith.mulf %19, %33 : vector<2x32xf32>
    %35 = arith.mulf %31, %23 : vector<2x32xf32>
    %36 = arith.addf %34, %35 : vector<2x32xf32>
    %37 = arith.truncf %36 : vector<2x32xf32> to vector<2x32xbf16>
    %38 = vector.extract_strided_slice %6 {offsets = [2, 0], sizes = [2, 32], strides = [1, 1]} : vector<16x32xf32> to vector<2x32xf32>
    %cst_17 = arith.constant dense<0.000000e+00> : vector<2x32xf32>
    %39 = tpu.matmul %37, %11, %cst_17 {dimension_numbers = #tpu.dot_dimension_numbers<[1], [0], [0], [1], [0, 0, 1, 1], [], []>} : vector<2x32xbf16>, vector<32x32xbf16>, vector<2x32xf32> -> vector<2x32xf32>
    %40 = arith.addf %38, %39 : vector<2x32xf32>
    %41 = math.tanh %40 : vector<2x32xf32>
    %42 = vector.extract_strided_slice %7 {offsets = [2, 0], sizes = [2, 32], strides = [1, 1]} : vector<16x32xf32> to vector<2x32xf32>
    %cst_18 = arith.constant dense<0.000000e+00> : vector<2x32xf32>
    %43 = tpu.matmul %37, %12, %cst_18 {dimension_numbers = #tpu.dot_dimension_numbers<[1], [0], [0], [1], [0, 0, 1, 1], [], []>} : vector<2x32xbf16>, vector<32x32xbf16>, vector<2x32xf32> -> vector<2x32xf32>
    %44 = arith.addf %42, %43 : vector<2x32xf32>
    %45 = math.tanh %44 : vector<2x32xf32>
    %46 = vector.extract_strided_slice %10 {offsets = [2, 0], sizes = [2, 32], strides = [1, 1]} : vector<16x32xf32> to vector<2x32xf32>
    %cst_19 = arith.constant dense<0.000000e+00> : vector<2x32xf32>
    %47 = tpu.matmul %37, %13, %cst_19 {dimension_numbers = #tpu.dot_dimension_numbers<[1], [0], [0], [1], [0, 0, 1, 1], [], []>} : vector<2x32xbf16>, vector<32x32xbf16>, vector<2x32xf32> -> vector<2x32xf32>
    %48 = arith.addf %46, %47 : vector<2x32xf32>
    %49 = arith.negf %48 : vector<2x32xf32>
    %50 = math.exp %49 : vector<2x32xf32>
    %cst_20 = arith.constant 1.000000e+00 : f32
    %51 = vector.broadcast %cst_20 : f32 to vector<2x32xf32>
    %52 = arith.addf %51, %50 : vector<2x32xf32>
    %53 = arith.divf %51, %52 : vector<2x32xf32>
    %cst_21 = arith.constant 1.000000e+00 : f32
    %54 = vector.broadcast %cst_21 : f32 to vector<2x32xf32>
    %55 = arith.subf %54, %53 : vector<2x32xf32>
    %56 = arith.mulf %41, %55 : vector<2x32xf32>
    %57 = arith.mulf %53, %45 : vector<2x32xf32>
    %58 = arith.addf %56, %57 : vector<2x32xf32>
    %59 = arith.truncf %58 : vector<2x32xf32> to vector<2x32xbf16>
    %60 = vector.extract_strided_slice %6 {offsets = [4, 0], sizes = [2, 32], strides = [1, 1]} : vector<16x32xf32> to vector<2x32xf32>
    %cst_22 = arith.constant dense<0.000000e+00> : vector<2x32xf32>
    %61 = tpu.matmul %59, %11, %cst_22 {dimension_numbers = #tpu.dot_dimension_numbers<[1], [0], [0], [1], [0, 0, 1, 1], [], []>} : vector<2x32xbf16>, vector<32x32xbf16>, vector<2x32xf32> -> vector<2x32xf32>
    %62 = arith.addf %60, %61 : vector<2x32xf32>
    %63 = math.tanh %62 : vector<2x32xf32>
    %64 = vector.extract_strided_slice %7 {offsets = [4, 0], sizes = [2, 32], strides = [1, 1]} : vector<16x32xf32> to vector<2x32xf32>
    %cst_23 = arith.constant dense<0.000000e+00> : vector<2x32xf32>
    %65 = tpu.matmul %59, %12, %cst_23 {dimension_numbers = #tpu.dot_dimension_numbers<[1], [0], [0], [1], [0, 0, 1, 1], [], []>} : vector<2x32xbf16>, vector<32x32xbf16>, vector<2x32xf32> -> vector<2x32xf32>
    %66 = arith.addf %64, %65 : vector<2x32xf32>
    %67 = math.tanh %66 : vector<2x32xf32>
    %68 = vector.extract_strided_slice %10 {offsets = [4, 0], sizes = [2, 32], strides = [1, 1]} : vector<16x32xf32> to vector<2x32xf32>
    %cst_24 = arith.constant dense<0.000000e+00> : vector<2x32xf32>
    %69 = tpu.matmul %59, %13, %cst_24 {dimension_numbers = #tpu.dot_dimension_numbers<[1], [0], [0], [1], [0, 0, 1, 1], [], []>} : vector<2x32xbf16>, vector<32x32xbf16>, vector<2x32xf32> -> vector<2x32xf32>
    %70 = arith.addf %68, %69 : vector<2x32xf32>
    %71 = arith.negf %70 : vector<2x32xf32>
    %72 = math.exp %71 : vector<2x32xf32>
    %cst_25 = arith.constant 1.000000e+00 : f32
    %73 = vector.broadcast %cst_25 : f32 to vector<2x32xf32>
    %74 = arith.addf %73, %72 : vector<2x32xf32>
    %75 = arith.divf %73, %74 : vector<2x32xf32>
    %cst_26 = arith.constant 1.000000e+00 : f32
    %76 = vector.broadcast %cst_26 : f32 to vector<2x32xf32>
    %77 = arith.subf %76, %75 : vector<2x32xf32>
    %78 = arith.mulf %63, %77 : vector<2x32xf32>
    %79 = arith.mulf %75, %67 : vector<2x32xf32>
    %80 = arith.addf %78, %79 : vector<2x32xf32>
    %81 = arith.truncf %80 : vector<2x32xf32> to vector<2x32xbf16>
    %82 = vector.extract_strided_slice %6 {offsets = [6, 0], sizes = [2, 32], strides = [1, 1]} : vector<16x32xf32> to vector<2x32xf32>
    %cst_27 = arith.constant dense<0.000000e+00> : vector<2x32xf32>
    %83 = tpu.matmul %81, %11, %cst_27 {dimension_numbers = #tpu.dot_dimension_numbers<[1], [0], [0], [1], [0, 0, 1, 1], [], []>} : vector<2x32xbf16>, vector<32x32xbf16>, vector<2x32xf32> -> vector<2x32xf32>
    %84 = arith.addf %82, %83 : vector<2x32xf32>
    %85 = math.tanh %84 : vector<2x32xf32>
    %86 = vector.extract_strided_slice %7 {offsets = [6, 0], sizes = [2, 32], strides = [1, 1]} : vector<16x32xf32> to vector<2x32xf32>
    %cst_28 = arith.constant dense<0.000000e+00> : vector<2x32xf32>
    %87 = tpu.matmul %81, %12, %cst_28 {dimension_numbers = #tpu.dot_dimension_numbers<[1], [0], [0], [1], [0, 0, 1, 1], [], []>} : vector<2x32xbf16>, vector<32x32xbf16>, vector<2x32xf32> -> vector<2x32xf32>
    %88 = arith.addf %86, %87 : vector<2x32xf32>
    %89 = math.tanh %88 : vector<2x32xf32>
    %90 = vector.extract_strided_slice %10 {offsets = [6, 0], sizes = [2, 32], strides = [1, 1]} : vector<16x32xf32> to vector<2x32xf32>
    %cst_29 = arith.constant dense<0.000000e+00> : vector<2x32xf32>
    %91 = tpu.matmul %81, %13, %cst_29 {dimension_numbers = #tpu.dot_dimension_numbers<[1], [0], [0], [1], [0, 0, 1, 1], [], []>} : vector<2x32xbf16>, vector<32x32xbf16>, vector<2x32xf32> -> vector<2x32xf32>
    %92 = arith.addf %90, %91 : vector<2x32xf32>
    %93 = arith.negf %92 : vector<2x32xf32>
    %94 = math.exp %93 : vector<2x32xf32>
    %cst_30 = arith.constant 1.000000e+00 : f32
    %95 = vector.broadcast %cst_30 : f32 to vector<2x32xf32>
    %96 = arith.addf %95, %94 : vector<2x32xf32>
    %97 = arith.divf %95, %96 : vector<2x32xf32>
    %cst_31 = arith.constant 1.000000e+00 : f32
    %98 = vector.broadcast %cst_31 : f32 to vector<2x32xf32>
    %99 = arith.subf %98, %97 : vector<2x32xf32>
    %100 = arith.mulf %85, %99 : vector<2x32xf32>
    %101 = arith.mulf %97, %89 : vector<2x32xf32>
    %102 = arith.addf %100, %101 : vector<2x32xf32>
    %103 = arith.truncf %102 : vector<2x32xf32> to vector<2x32xbf16>
    %104 = vector.extract_strided_slice %6 {offsets = [8, 0], sizes = [2, 32], strides = [1, 1]} : vector<16x32xf32> to vector<2x32xf32>
    %cst_32 = arith.constant dense<0.000000e+00> : vector<2x32xf32>
    %105 = tpu.matmul %103, %11, %cst_32 {dimension_numbers = #tpu.dot_dimension_numbers<[1], [0], [0], [1], [0, 0, 1, 1], [], []>} : vector<2x32xbf16>, vector<32x32xbf16>, vector<2x32xf32> -> vector<2x32xf32>
    %106 = arith.addf %104, %105 : vector<2x32xf32>
    %107 = math.tanh %106 : vector<2x32xf32>
    %108 = vector.extract_strided_slice %7 {offsets = [8, 0], sizes = [2, 32], strides = [1, 1]} : vector<16x32xf32> to vector<2x32xf32>
    %cst_33 = arith.constant dense<0.000000e+00> : vector<2x32xf32>
    %109 = tpu.matmul %103, %12, %cst_33 {dimension_numbers = #tpu.dot_dimension_numbers<[1], [0], [0], [1], [0, 0, 1, 1], [], []>} : vector<2x32xbf16>, vector<32x32xbf16>, vector<2x32xf32> -> vector<2x32xf32>
    %110 = arith.addf %108, %109 : vector<2x32xf32>
    %111 = math.tanh %110 : vector<2x32xf32>
    %112 = vector.extract_strided_slice %10 {offsets = [8, 0], sizes = [2, 32], strides = [1, 1]} : vector<16x32xf32> to vector<2x32xf32>
    %cst_34 = arith.constant dense<0.000000e+00> : vector<2x32xf32>
    %113 = tpu.matmul %103, %13, %cst_34 {dimension_numbers = #tpu.dot_dimension_numbers<[1], [0], [0], [1], [0, 0, 1, 1], [], []>} : vector<2x32xbf16>, vector<32x32xbf16>, vector<2x32xf32> -> vector<2x32xf32>
    %114 = arith.addf %112, %113 : vector<2x32xf32>
    %115 = arith.negf %114 : vector<2x32xf32>
    %116 = math.exp %115 : vector<2x32xf32>
    %cst_35 = arith.constant 1.000000e+00 : f32
    %117 = vector.broadcast %cst_35 : f32 to vector<2x32xf32>
    %118 = arith.addf %117, %116 : vector<2x32xf32>
    %119 = arith.divf %117, %118 : vector<2x32xf32>
    %cst_36 = arith.constant 1.000000e+00 : f32
    %120 = vector.broadcast %cst_36 : f32 to vector<2x32xf32>
    %121 = arith.subf %120, %119 : vector<2x32xf32>
    %122 = arith.mulf %107, %121 : vector<2x32xf32>
    %123 = arith.mulf %119, %111 : vector<2x32xf32>
    %124 = arith.addf %122, %123 : vector<2x32xf32>
    %125 = arith.truncf %124 : vector<2x32xf32> to vector<2x32xbf16>
    %126 = vector.extract_strided_slice %6 {offsets = [10, 0], sizes = [2, 32], strides = [1, 1]} : vector<16x32xf32> to vector<2x32xf32>
    %cst_37 = arith.constant dense<0.000000e+00> : vector<2x32xf32>
    %127 = tpu.matmul %125, %11, %cst_37 {dimension_numbers = #tpu.dot_dimension_numbers<[1], [0], [0], [1], [0, 0, 1, 1], [], []>} : vector<2x32xbf16>, vector<32x32xbf16>, vector<2x32xf32> -> vector<2x32xf32>
    %128 = arith.addf %126, %127 : vector<2x32xf32>
    %129 = math.tanh %128 : vector<2x32xf32>
    %130 = vector.extract_strided_slice %7 {offsets = [10, 0], sizes = [2, 32], strides = [1, 1]} : vector<16x32xf32> to vector<2x32xf32>
    %cst_38 = arith.constant dense<0.000000e+00> : vector<2x32xf32>
    %131 = tpu.matmul %125, %12, %cst_38 {dimension_numbers = #tpu.dot_dimension_numbers<[1], [0], [0], [1], [0, 0, 1, 1], [], []>} : vector<2x32xbf16>, vector<32x32xbf16>, vector<2x32xf32> -> vector<2x32xf32>
    %132 = arith.addf %130, %131 : vector<2x32xf32>
    %133 = math.tanh %132 : vector<2x32xf32>
    %134 = vector.extract_strided_slice %10 {offsets = [10, 0], sizes = [2, 32], strides = [1, 1]} : vector<16x32xf32> to vector<2x32xf32>
    %cst_39 = arith.constant dense<0.000000e+00> : vector<2x32xf32>
    %135 = tpu.matmul %125, %13, %cst_39 {dimension_numbers = #tpu.dot_dimension_numbers<[1], [0], [0], [1], [0, 0, 1, 1], [], []>} : vector<2x32xbf16>, vector<32x32xbf16>, vector<2x32xf32> -> vector<2x32xf32>
    %136 = arith.addf %134, %135 : vector<2x32xf32>
    %137 = arith.negf %136 : vector<2x32xf32>
    %138 = math.exp %137 : vector<2x32xf32>
    %cst_40 = arith.constant 1.000000e+00 : f32
    %139 = vector.broadcast %cst_40 : f32 to vector<2x32xf32>
    %140 = arith.addf %139, %138 : vector<2x32xf32>
    %141 = arith.divf %139, %140 : vector<2x32xf32>
    %cst_41 = arith.constant 1.000000e+00 : f32
    %142 = vector.broadcast %cst_41 : f32 to vector<2x32xf32>
    %143 = arith.subf %142, %141 : vector<2x32xf32>
    %144 = arith.mulf %129, %143 : vector<2x32xf32>
    %145 = arith.mulf %141, %133 : vector<2x32xf32>
    %146 = arith.addf %144, %145 : vector<2x32xf32>
    %147 = arith.truncf %146 : vector<2x32xf32> to vector<2x32xbf16>
    %148 = vector.extract_strided_slice %6 {offsets = [12, 0], sizes = [2, 32], strides = [1, 1]} : vector<16x32xf32> to vector<2x32xf32>
    %cst_42 = arith.constant dense<0.000000e+00> : vector<2x32xf32>
    %149 = tpu.matmul %147, %11, %cst_42 {dimension_numbers = #tpu.dot_dimension_numbers<[1], [0], [0], [1], [0, 0, 1, 1], [], []>} : vector<2x32xbf16>, vector<32x32xbf16>, vector<2x32xf32> -> vector<2x32xf32>
    %150 = arith.addf %148, %149 : vector<2x32xf32>
    %151 = math.tanh %150 : vector<2x32xf32>
    %152 = vector.extract_strided_slice %7 {offsets = [12, 0], sizes = [2, 32], strides = [1, 1]} : vector<16x32xf32> to vector<2x32xf32>
    %cst_43 = arith.constant dense<0.000000e+00> : vector<2x32xf32>
    %153 = tpu.matmul %147, %12, %cst_43 {dimension_numbers = #tpu.dot_dimension_numbers<[1], [0], [0], [1], [0, 0, 1, 1], [], []>} : vector<2x32xbf16>, vector<32x32xbf16>, vector<2x32xf32> -> vector<2x32xf32>
    %154 = arith.addf %152, %153 : vector<2x32xf32>
    %155 = math.tanh %154 : vector<2x32xf32>
    %156 = vector.extract_strided_slice %10 {offsets = [12, 0], sizes = [2, 32], strides = [1, 1]} : vector<16x32xf32> to vector<2x32xf32>
    %cst_44 = arith.constant dense<0.000000e+00> : vector<2x32xf32>
    %157 = tpu.matmul %147, %13, %cst_44 {dimension_numbers = #tpu.dot_dimension_numbers<[1], [0], [0], [1], [0, 0, 1, 1], [], []>} : vector<2x32xbf16>, vector<32x32xbf16>, vector<2x32xf32> -> vector<2x32xf32>
    %158 = arith.addf %156, %157 : vector<2x32xf32>
    %159 = arith.negf %158 : vector<2x32xf32>
    %160 = math.exp %159 : vector<2x32xf32>
    %cst_45 = arith.constant 1.000000e+00 : f32
    %161 = vector.broadcast %cst_45 : f32 to vector<2x32xf32>
    %162 = arith.addf %161, %160 : vector<2x32xf32>
    %163 = arith.divf %161, %162 : vector<2x32xf32>
    %cst_46 = arith.constant 1.000000e+00 : f32
    %164 = vector.broadcast %cst_46 : f32 to vector<2x32xf32>
    %165 = arith.subf %164, %163 : vector<2x32xf32>
    %166 = arith.mulf %151, %165 : vector<2x32xf32>
    %167 = arith.mulf %163, %155 : vector<2x32xf32>
    %168 = arith.addf %166, %167 : vector<2x32xf32>
    %169 = arith.truncf %168 : vector<2x32xf32> to vector<2x32xbf16>
    %170 = vector.extract_strided_slice %6 {offsets = [14, 0], sizes = [2, 32], strides = [1, 1]} : vector<16x32xf32> to vector<2x32xf32>
    %cst_47 = arith.constant dense<0.000000e+00> : vector<2x32xf32>
    %171 = tpu.matmul %169, %11, %cst_47 {dimension_numbers = #tpu.dot_dimension_numbers<[1], [0], [0], [1], [0, 0, 1, 1], [], []>} : vector<2x32xbf16>, vector<32x32xbf16>, vector<2x32xf32> -> vector<2x32xf32>
    %172 = arith.addf %170, %171 : vector<2x32xf32>
    %173 = math.tanh %172 : vector<2x32xf32>
    %174 = vector.extract_strided_slice %7 {offsets = [14, 0], sizes = [2, 32], strides = [1, 1]} : vector<16x32xf32> to vector<2x32xf32>
    %cst_48 = arith.constant dense<0.000000e+00> : vector<2x32xf32>
    %175 = tpu.matmul %169, %12, %cst_48 {dimension_numbers = #tpu.dot_dimension_numbers<[1], [0], [0], [1], [0, 0, 1, 1], [], []>} : vector<2x32xbf16>, vector<32x32xbf16>, vector<2x32xf32> -> vector<2x32xf32>
    %176 = arith.addf %174, %175 : vector<2x32xf32>
    %177 = math.tanh %176 : vector<2x32xf32>
    %178 = vector.extract_strided_slice %10 {offsets = [14, 0], sizes = [2, 32], strides = [1, 1]} : vector<16x32xf32> to vector<2x32xf32>
    %cst_49 = arith.constant dense<0.000000e+00> : vector<2x32xf32>
    %179 = tpu.matmul %169, %13, %cst_49 {dimension_numbers = #tpu.dot_dimension_numbers<[1], [0], [0], [1], [0, 0, 1, 1], [], []>} : vector<2x32xbf16>, vector<32x32xbf16>, vector<2x32xf32> -> vector<2x32xf32>
    %180 = arith.addf %178, %179 : vector<2x32xf32>
    %181 = arith.negf %180 : vector<2x32xf32>
    %182 = math.exp %181 : vector<2x32xf32>
    %cst_50 = arith.constant 1.000000e+00 : f32
    %183 = vector.broadcast %cst_50 : f32 to vector<2x32xf32>
    %184 = arith.addf %183, %182 : vector<2x32xf32>
    %185 = arith.divf %183, %184 : vector<2x32xf32>
    %cst_51 = arith.constant 1.000000e+00 : f32
    %186 = vector.broadcast %cst_51 : f32 to vector<2x32xf32>
    %187 = arith.subf %186, %185 : vector<2x32xf32>
    %188 = arith.mulf %173, %187 : vector<2x32xf32>
    %189 = arith.mulf %185, %177 : vector<2x32xf32>
    %190 = arith.addf %188, %189 : vector<2x32xf32>
    %c0_52 = arith.constant 0 : index
    %c0_53 = arith.constant 0 : index
    %191 = vector.load %arg6[%c0_52, %c0_53] : memref<2x32xf32, #tpu.memory_space<vmem>>, vector<2x32xf32>
    tpu.vector_store %arg6[%c0_52, %c0_53], %190 {strides = array<i32>} : memref<2x32xf32, #tpu.memory_space<vmem>>, vector<2x32xf32>,
    return
  }
}

</mosaic_0001>

<llo_original>
// kernel: _lambda_.5
$region0: #{_lambda_.5}
  #allocation0 [shape = 'u32[]', space=smem, size = 0x4, offset = 0x4, fixed_abs, tag = 'smem constant byte address 0x4 - core index']
  #allocation1 [shape = 'u32[72,128]{1,0:T(1,128)}', space=vmem, size = 0x9000, scoped, tag = 'internal scratch']
  %s0 = inlined_call_operand.vmem [shape: bf16[1536,9], index: 0, kind: input, shape index: {}]
  %s1 = inlined_call_operand.vmem [shape: bf16[9,16], index: 1, kind: input, shape index: {}]
  %s2 = inlined_call_operand.vmem [shape: f32[1,16], index: 2, kind: input, shape index: {}]
  %s3 = inlined_call_operand.vmem [shape: f32[1,16], index: 3, kind: input, shape index: {}]
  %s4 = inlined_call_operand.vmem [shape: bf16[1536,16], index: 4, kind: output, shape index: {}]
  %s5 = sld [smem:[#allocation0]]
  $region49: #{_lambda_.5} parent=0
    _
  %s7 = ssub.s32 1, %s5
  %s8 = scalar_select 0, %s7, %s5
  loop: start=0, step=1, limit=5
  $region2: #{_lambda_.5} parent=0 // loop_pre_header
    _
  $region3: #{_lambda_.5} parent=0 // loop_header
    %s10 = sphi 0, %s14
    %p11 = scmp.ge.s32.totalorder %s10, 5
    %s17 = sphi 0, %s29
    %s18 = sphi 0, %s25
    %s19 = sphi 0, %s17
    %s20 = sphi 0, %s18
    %s21 = sphi 0, %s19
    %s22 = sphi 0, %s20
    %s32 = sphi 0, %s34
    %s35 = sphi 0, %s32
    %s36 = sphi 0, %s35
    %s52 = sphi 0, %s36
    %s58 = sphi 0, %s60
    %s61 = sphi 0, %s58
    %s62 = sphi 0, %s61
    %s78 = sphi 0, %s62
    %s84 = sphi 0, %s86
    %s87 = sphi 0, %s84
    %s88 = sphi 0, %s87
    %s104 = sphi 0, %s88
    %s110 = sphi 0, %s112
    %s113 = sphi 0, %s110
    %s114 = sphi 0, %s113
    %s130 = sphi 0, %s114
    %s138 = sphi 0, %s140
    %s141 = sphi 0, %s138
    %s142 = sphi 0, %s141
    %s158 = sphi 0, %s142
  $region4: #{_lambda_.5} parent=0 // loop_header_branch
    %13 = sbr.rel (%p11) target = $region8
  $region5: #{_lambda_.5} parent=0 // loop_body
    %s15 = ssub.s32 %s10, 1
    %s16 = ssub.s32 %s10, 2
    %s23 = sadd.s32 1, %s18
    %p24 = scmp.ge.s32.totalorder %s23, 1
    %s25 = scalar_select %p24, 0, %s23
    %s26 = sadd.s32 1, %s17
    %s27 = scalar_select %p24, %s26, %s17
    %p28 = scmp.ge.s32.totalorder %s27, 3
    %s29 = scalar_select %p28, 0, %s27
    %s30 = ssub.s32 %s17, %s29
    %p31 = scmp.eq.s32.totalorder %s30, 0
    %s33 = sadd.s32 %s32, 1
    %s34 = scalar_select %p31, %s32, %s33
    %p37 = pneg %p31
    %p38 = scmp.eq.s32.totalorder %s10, 2
    %p39 = por %p37, %p38
    %p40 = scmp.ne.s32.totalorder %s32, %s35
    %p41 = scmp.eq.s32.totalorder %s10, 0
    %p42 = por %p40, %p41
    %p43 = scmp.ne.s32.totalorder %s32, %s35
    %p44 = scmp.eq.s32.totalorder %s15, 2
    %p45 = por %p43, %p44
    %p46 = scmp.ne.s32.totalorder %s35, %s36
    %p47 = scmp.eq.s32.totalorder %s15, 0
    %p48 = por %p46, %p47
    %p49 = scmp.ne.s32.totalorder %s35, %s36
    %p50 = scmp.eq.s32.totalorder %s16, 2
    %p51 = por %p49, %p50
    %p53 = scmp.ne.s32.totalorder %s36, %s52
    %p54 = scmp.eq.s32.totalorder %s16, 0
    %p55 = por %p53, %p54
    %s56 = ssub.s32 %s18, %s25
    %p57 = scmp.eq.s32.totalorder %s56, 0
    %s59 = sadd.s32 %s58, 1
    %s60 = scalar_select %p57, %s58, %s59
    %p63 = pneg %p57
    %p64 = scmp.eq.s32.totalorder %s10, 2
    %p65 = por %p63, %p64
    %p66 = scmp.ne.s32.totalorder %s58, %s61
    %p67 = scmp.eq.s32.totalorder %s10, 0
    %p68 = por %p66, %p67
    %p69 = scmp.ne.s32.totalorder %s58, %s61
    %p70 = scmp.eq.s32.totalorder %s15, 2
    %p71 = por %p69, %p70
    %p72 = scmp.ne.s32.totalorder %s61, %s62
    %p73 = scmp.eq.s32.totalorder %s15, 0
    %p74 = por %p72, %p73
    %p75 = scmp.ne.s32.totalorder %s61, %s62
    %p76 = scmp.eq.s32.totalorder %s16, 2
    %p77 = por %p75, %p76
    %p79 = scmp.ne.s32.totalorder %s62, %s78
    %p80 = scmp.eq.s32.totalorder %s16, 0
    %p81 = por %p79, %p80
    %s82 = ssub.s32 %s18, %s25
    %p83 = scmp.eq.s32.totalorder %s82, 0
    %s85 = sadd.s32 %s84, 1
    %s86 = scalar_select %p83, %s84, %s85
    %p89 = pneg %p83
    %p90 = scmp.eq.s32.totalorder %s10, 2
    %p91 = por %p89, %p90
    %p92 = scmp.ne.s32.totalorder %s84, %s87
    %p93 = scmp.eq.s32.totalorder %s10, 0
    %p94 = por %p92, %p93
    %p95 = scmp.ne.s32.totalorder %s84, %s87
    %p96 = scmp.eq.s32.totalorder %s15, 2
    %p97 = por %p95, %p96
    %p98 = scmp.ne.s32.totalorder %s87, %s88
    %p99 = scmp.eq.s32.totalorder %s15, 0
    %p100 = por %p98, %p99
    %p101 = scmp.ne.s32.totalorder %s87, %s88
    %p102 = scmp.eq.s32.totalorder %s16, 2
    %p103 = por %p101, %p102
    %p105 = scmp.ne.s32.totalorder %s88, %s104
    %p106 = scmp.eq.s32.totalorder %s16, 0
    %p107 = por %p105, %p106
    %s108 = ssub.s32 %s18, %s25
    %p109 = scmp.eq.s32.totalorder %s108, 0
    %s111 = sadd.s32 %s110, 1
    %s112 = scalar_select %p109, %s110, %s111
    %p115 = pneg %p109
    %p116 = scmp.eq.s32.totalorder %s10, 2
    %p117 = por %p115, %p116
    %p118 = scmp.ne.s32.totalorder %s110, %s113
    %p119 = scmp.eq.s32.totalorder %s10, 0
    %p120 = por %p118, %p119
    %p121 = scmp.ne.s32.totalorder %s110, %s113
    %p122 = scmp.eq.s32.totalorder %s15, 2
    %p123 = por %p121, %p122
    %p124 = scmp.ne.s32.totalorder %s113, %s114
    %p125 = scmp.eq.s32.totalorder %s15, 0
    %p126 = por %p124, %p125
    %p127 = scmp.ne.s32.totalorder %s113, %s114
    %p128 = scmp.eq.s32.totalorder %s16, 2
    %p129 = por %p127, %p128
    %p131 = scmp.ne.s32.totalorder %s114, %s130
    %p132 = scmp.eq.s32.totalorder %s16, 0
    %p133 = por %p131, %p132
    %s134 = ssub.s32 %s17, %s29
    %s135 = ssub.s32 %s18, %s25
    %s136 = sor.u32 %s134, %s135
    %p137 = scmp.eq.s32.totalorder %s136, 0
    %s139 = sadd.s32 %s138, 1
    %s140 = scalar_select %p137, %s138, %s139
    %p143 = pneg %p137
    %p144 = scmp.eq.s32.totalorder %s10, 2
    %p145 = por %p143, %p144
    %p146 = scmp.ne.s32.totalorder %s138, %s141
    %p147 = scmp.eq.s32.totalorder %s10, 0
    %p148 = por %p146, %p147
    %p149 = scmp.ne.s32.totalorder %s138, %s141
    %p150 = scmp.eq.s32.totalorder %s15, 2
    %p151 = por %p149, %p150
    %p152 = scmp.ne.s32.totalorder %s141, %s142
    %p153 = scmp.eq.s32.totalorder %s15, 0
    %p154 = por %p152, %p153
    %p155 = scmp.ne.s32.totalorder %s141, %s142
    %p156 = scmp.eq.s32.totalorder %s16, 2
    %p157 = por %p155, %p156
    %p159 = scmp.ne.s32.totalorder %s142, %s158
    %p160 = scmp.eq.s32.totalorder %s16, 0
    %p161 = por %p159, %p160
    %p162 = scmp.le.s32.totalorder 1, %s10
    %p163 = scmp.lt.s32.totalorder %s10, 4
    %p164 = pnand %p162, %p163
    %p165 = pneg %p164
    // Predicated region
    $region9: #{_lambda_.5} parent=5 // pred_check
      _
    $region10: #{_lambda_.5} parent=5 // pred_check_branch
      %167 = sbr.rel (%p164) target = $region12
    $region11: #{_lambda_.5} parent=5 // pred_region
      %s168 = ssub.s32 %s10, 1
      // Predicated region
      $region13: #{_lambda_.5} parent=11 // pred_check
        %p169 = pneg %p74
      $region14: #{_lambda_.5} parent=11 // pred_check_branch
        %171 = sbr.rel (%p169) target = $region16
      $region15: #{_lambda_.5} parent=11 // pred_region
        %p172 = scmp.lt.s32.totalorder %s20, 0
        %s173 = scalar_select %p172, %s20, 0
        %s174 = smul.addr %s173, 4
        %s175 = scalar_lea.vmem %s1, %s174
      $region16: #{_lambda_.5} parent=11 // pred_fallthru
        _
      // Predicated region
      $region17: #{_lambda_.5} parent=11 // pred_check
        %p176 = pneg %p100
      $region18: #{_lambda_.5} parent=11 // pred_check_branch
        %178 = sbr.rel (%p176) target = $region20
      $region19: #{_lambda_.5} parent=11 // pred_region
        %p179 = scmp.lt.s32.totalorder %s20, 0
        %s180 = scalar_select %p179, %s20, 0
        %s181 = scalar_lea.vmem %s2, %s180
      $region20: #{_lambda_.5} parent=11 // pred_fallthru
        _
      // Predicated region
      $region21: #{_lambda_.5} parent=11 // pred_check
        %p182 = pneg %p126
      $region22: #{_lambda_.5} parent=11 // pred_check_branch
        %184 = sbr.rel (%p182) target = $region24
      $region23: #{_lambda_.5} parent=11 // pred_region
        %p185 = scmp.lt.s32.totalorder %s20, 0
        %s186 = scalar_select %p185, %s20, 0
        %s187 = scalar_lea.vmem %s3, %s186
      $region24: #{_lambda_.5} parent=11 // pred_fallthru
        _
    $region12: #{_lambda_.5} parent=5 // pred_fallthru
      _
    %p188 = scmp.lt.s32.totalorder %s10, 3
    // Predicated region
    $region25: #{_lambda_.5} parent=5 // pred_check
      %p189 = pneg %p188
    $region26: #{_lambda_.5} parent=5 // pred_check_branch
      %191 = sbr.rel (%p189) target = $region28
    $region27: #{_lambda_.5} parent=5 // pred_region
      // Predicated region
      $region29: #{_lambda_.5} parent=27 // pred_check
        %p192 = pneg %p42
      $region30: #{_lambda_.5} parent=27 // pred_check_branch
        %194 = sbr.rel (%p192) target = $region32
      $region31: #{_lambda_.5} parent=27 // pred_region
        %s195 = smul.u32 64, %s17
        %p196 = scmp.lt.s32.totalorder %s195, 191
        %s197 = scalar_select %p196, %s195, 191
        %s198 = smul.addr %s197, 4
        %s199 = scalar_lea.vmem %s0, %s198
        %s200 = smul.u32 64, %s17
      $region32: #{_lambda_.5} parent=27 // pred_fallthru
        _
    $region28: #{_lambda_.5} parent=5 // pred_fallthru
      _
    %p201 = scmp.le.s32.totalorder 1, %s10
    %p202 = scmp.lt.s32.totalorder %s10, 4
    %p203 = pnand %p201, %p202
    %p204 = pneg %p203
    // Predicated region
    $region33: #{_lambda_.5} parent=5 // pred_check
      _
    $region34: #{_lambda_.5} parent=5 // pred_check_branch
      %206 = sbr.rel (%p203) target = $region36
    $region35: #{_lambda_.5} parent=5 // pred_region
      %s207 = ssub.s32 %s10, 1
      %s208 = smul.u32 64, %s19
      %p209 = scmp.lt.s32.totalorder %s208, 191
      %s210 = scalar_select %p209, %s208, 191
      %s211 = smul.addr %s210, 4
      %s212 = scalar_lea.vmem %s0, %s211
      %p213 = pneg %p48
      %p214 = pneg %p45
      %p215 = scmp.lt.s32.totalorder %s20, 0
      %s216 = scalar_select %p215, %s20, 0
      %s217 = smul.addr %s216, 4
      %s218 = scalar_lea.vmem %s1, %s217
      %p219 = pneg %p74
      %p220 = pneg %p71
      %p221 = scmp.lt.s32.totalorder %s20, 0
      %s222 = scalar_select %p221, %s20, 0
      %s223 = scalar_lea.vmem %s2, %s222
      %p224 = pneg %p100
      %p225 = pneg %p97
      %p226 = scmp.lt.s32.totalorder %s20, 0
      %s227 = scalar_select %p226, %s20, 0
      %s228 = scalar_lea.vmem %s3, %s227
      %p229 = pneg %p126
      %p230 = pneg %p123
      %p231 = pneg %p154
      %p232 = pneg %p151
      %s233 = smul.u32 64, %s19
      %p234 = scmp.lt.s32.totalorder %s233, 191
      %s235 = scalar_select %p234, %s233, 191
      %p236 = scmp.lt.s32.totalorder %s20, 0
      %s237 = scalar_select %p236, %s20, 0
      %s238 = sadd.s32 %s237, %s235
      %s239 = smul.addr %s238, 4
      %s240 = scalar_lea.vmem %s4, %s239
      %s241 = smul.u32 64, %s19
      %p242 = scmp.lt.s32.totalorder %s241, 191
      %s243 = scalar_select %p242, %s241, 191
      %s244 = smul.addr %s243, 4
      %s245 = scalar_lea.vmem %s0, %s244
      %s246 = smul.u32 64, %s19
      %p247 = scmp.lt.s32.totalorder %s20, 0
      %s248 = scalar_select %p247, %s20, 0
      %s249 = smul.addr %s248, 4
      %s250 = scalar_lea.vmem %s1, %s249
      %p251 = scmp.lt.s32.totalorder %s20, 0
      %s252 = scalar_select %p251, %s20, 0
      %s253 = scalar_lea.vmem %s2, %s252
      %p254 = scmp.lt.s32.totalorder %s20, 0
      %s255 = scalar_select %p254, %s20, 0
      %s256 = scalar_lea.vmem %s3, %s255
      %s257 = smul.u32 64, %s19
      %p258 = scmp.lt.s32.totalorder %s257, 191
      %s259 = scalar_select %p258, %s257, 191
      %p260 = scmp.lt.s32.totalorder %s20, 0
      %s261 = scalar_select %p260, %s20, 0
      %s262 = sadd.s32 %s261, %s259
      %s263 = smul.addr %s262, 4
      %s264 = scalar_lea.vmem %s4, %s263
      %s265 = smul.u32 64, %s19
      %v267 = vld [vmem:[%s245] sm:$0xf]
      %v268 = vld [vmem:[%s245 + $0x4] sm:$0xf]
      %v269 = vld [vmem:[%s245 + $0x8] sm:$0xf]
      %v270 = vld [vmem:[%s245 + $0xc] sm:$0xf]
      %v271 = vld [vmem:[%s245 + $0x10] sm:$0xf]
      %v272 = vld [vmem:[%s245 + $0x14] sm:$0xf]
      %v273 = vld [vmem:[%s245 + $0x18] sm:$0xf]
      %v274 = vld [vmem:[%s245 + $0x1c] sm:$0xf]
      %v275 = vld [vmem:[%s245 + $0x20] sm:$0xf]
      %v276 = vld [vmem:[%s245 + $0x24] sm:$0xf]
      %v277 = vld [vmem:[%s245 + $0x28] sm:$0xf]
      %v278 = vld [vmem:[%s245 + $0x2c] sm:$0xf]
      %v279 = vld [vmem:[%s245 + $0x30] sm:$0xf]
      %v280 = vld [vmem:[%s245 + $0x34] sm:$0xf]
      %v281 = vld [vmem:[%s245 + $0x38] sm:$0xf]
      %v282 = vld [vmem:[%s245 + $0x3c] sm:$0xf]
      %v283 = vld [vmem:[%s245 + $0x40] sm:$0xf]
      %v284 = vld [vmem:[%s245 + $0x44] sm:$0xf]
      %v285 = vld [vmem:[%s245 + $0x48] sm:$0xf]
      %v286 = vld [vmem:[%s245 + $0x4c] sm:$0xf]
      %v287 = vld [vmem:[%s245 + $0x50] sm:$0xf]
      %v288 = vld [vmem:[%s245 + $0x54] sm:$0xf]
      %v289 = vld [vmem:[%s245 + $0x58] sm:$0xf]
      %v290 = vld [vmem:[%s245 + $0x5c] sm:$0xf]
      %v291 = vld [vmem:[%s245 + $0x60] sm:$0xf]
      %v292 = vld [vmem:[%s245 + $0x64] sm:$0xf]
      %v293 = vld [vmem:[%s245 + $0x68] sm:$0xf]
      %v294 = vld [vmem:[%s245 + $0x6c] sm:$0xf]
      %v295 = vld [vmem:[%s245 + $0x70] sm:$0xf]
      %v296 = vld [vmem:[%s245 + $0x74] sm:$0xf]
      %v297 = vld [vmem:[%s245 + $0x78] sm:$0xf]
      %v298 = vld [vmem:[%s245 + $0x7c] sm:$0xf]
      %v299 = vld [vmem:[%s245 + $0x80] sm:$0xf]
      %v300 = vld [vmem:[%s245 + $0x84] sm:$0xf]
      %v301 = vld [vmem:[%s245 + $0x88] sm:$0xf]
      %v302 = vld [vmem:[%s245 + $0x8c] sm:$0xf]
      %v303 = vld [vmem:[%s245 + $0x90] sm:$0xf]
      %v304 = vld [vmem:[%s245 + $0x94] sm:$0xf]
      %v305 = vld [vmem:[%s245 + $0x98] sm:$0xf]
      %v306 = vld [vmem:[%s245 + $0x9c] sm:$0xf]
      %v307 = vld [vmem:[%s245 + $0xa0] sm:$0xf]
      %v308 = vld [vmem:[%s245 + $0xa4] sm:$0xf]
      %v309 = vld [vmem:[%s245 + $0xa8] sm:$0xf]
      %v310 = vld [vmem:[%s245 + $0xac] sm:$0xf]
      %v311 = vld [vmem:[%s245 + $0xb0] sm:$0xf]
      %v312 = vld [vmem:[%s245 + $0xb4] sm:$0xf]
      %v313 = vld [vmem:[%s245 + $0xb8] sm:$0xf]
      %v314 = vld [vmem:[%s245 + $0xbc] sm:$0xf]
      %v315 = vld [vmem:[%s245 + $0xc0] sm:$0xf]
      %v316 = vld [vmem:[%s245 + $0xc4] sm:$0xf]
      %v317 = vld [vmem:[%s245 + $0xc8] sm:$0xf]
      %v318 = vld [vmem:[%s245 + $0xcc] sm:$0xf]
      %v319 = vld [vmem:[%s245 + $0xd0] sm:$0xf]
      %v320 = vld [vmem:[%s245 + $0xd4] sm:$0xf]
      %v321 = vld [vmem:[%s245 + $0xd8] sm:$0xf]
      %v322 = vld [vmem:[%s245 + $0xdc] sm:$0xf]
      %v323 = vld [vmem:[%s245 + $0xe0] sm:$0xf]
      %v324 = vld [vmem:[%s245 + $0xe4] sm:$0xf]
      %v325 = vld [vmem:[%s245 + $0xe8] sm:$0xf]
      %v326 = vld [vmem:[%s245 + $0xec] sm:$0xf]
      %v327 = vld [vmem:[%s245 + $0xf0] sm:$0xf]
      %v328 = vld [vmem:[%s245 + $0xf4] sm:$0xf]
      %v329 = vld [vmem:[%s245 + $0xf8] sm:$0xf]
      %v330 = vld [vmem:[%s245 + $0xfc] sm:$0xf]
      %v331 = vld [vmem:[%s250] sm:$0xf]
      %v332 = vld [vmem:[%s250 + $0x4] sm:$0x1]
      %v397 = vunpack.c.l.b16 %v267
      %v398 = vunpack.c.l.b16 %v268
      %v399 = vunpack.c.l.b16 %v269
      %v400 = vunpack.c.l.b16 %v270
      %v401 = vunpack.c.l.b16 %v271
      %v402 = vunpack.c.l.b16 %v272
      %v403 = vunpack.c.l.b16 %v273
      %v404 = vunpack.c.l.b16 %v274
      %v405 = vunpack.c.l.b16 %v275
      %v406 = vunpack.c.l.b16 %v276
      %v407 = vunpack.c.l.b16 %v277
      %v408 = vunpack.c.l.b16 %v278
      %v409 = vunpack.c.l.b16 %v279
      %v410 = vunpack.c.l.b16 %v280
      %v411 = vunpack.c.l.b16 %v281
      %v412 = vunpack.c.l.b16 %v282
      %v413 = vunpack.c.l.b16 %v283
      %v414 = vunpack.c.l.b16 %v284
      %v415 = vunpack.c.l.b16 %v285
      %v416 = vunpack.c.l.b16 %v286
      %v417 = vunpack.c.l.b16 %v287
      %v418 = vunpack.c.l.b16 %v288
      %v419 = vunpack.c.l.b16 %v289
      %v420 = vunpack.c.l.b16 %v290
      %v421 = vunpack.c.l.b16 %v291
      %v422 = vunpack.c.l.b16 %v292
      %v423 = vunpack.c.l.b16 %v293
      %v424 = vunpack.c.l.b16 %v294
      %v425 = vunpack.c.l.b16 %v295
      %v426 = vunpack.c.l.b16 %v296
      %v427 = vunpack.c.l.b16 %v297
      %v428 = vunpack.c.l.b16 %v298
      %v429 = vunpack.c.l.b16 %v299
      %v430 = vunpack.c.l.b16 %v300
      %v431 = vunpack.c.l.b16 %v301
      %v432 = vunpack.c.l.b16 %v302
      %v433 = vunpack.c.l.b16 %v303
      %v434 = vunpack.c.l.b16 %v304
      %v435 = vunpack.c.l.b16 %v305
      %v436 = vunpack.c.l.b16 %v306
      %v437 = vunpack.c.l.b16 %v307
      %v438 = vunpack.c.l.b16 %v308
      %v439 = vunpack.c.l.b16 %v309
      %v440 = vunpack.c.l.b16 %v310
      %v441 = vunpack.c.l.b16 %v311
      %v442 = vunpack.c.l.b16 %v312
      %v443 = vunpack.c.l.b16 %v313
      %v444 = vunpack.c.l.b16 %v314
      %v445 = vunpack.c.l.b16 %v315
      %v446 = vunpack.c.l.b16 %v316
      %v447 = vunpack.c.l.b16 %v317
      %v448 = vunpack.c.l.b16 %v318
      %v449 = vunpack.c.l.b16 %v319
      %v450 = vunpack.c.l.b16 %v320
      %v451 = vunpack.c.l.b16 %v321
      %v452 = vunpack.c.l.b16 %v322
      %v453 = vunpack.c.l.b16 %v323
      %v454 = vunpack.c.l.b16 %v324
      %v455 = vunpack.c.l.b16 %v325
      %v456 = vunpack.c.l.b16 %v326
      %v457 = vunpack.c.l.b16 %v327
      %v458 = vunpack.c.l.b16 %v328
      %v459 = vunpack.c.l.b16 %v329
      %v460 = vunpack.c.l.b16 %v330
      %v461 = vpack.c.b16 %v398, %v397
      %v462 = vpack.c.b16 %v400, %v399
      %v463 = vpack.c.b16 %v402, %v401
      %v464 = vpack.c.b16 %v404, %v403
      %v465 = vpack.c.b16 %v406, %v405
      %v466 = vpack.c.b16 %v408, %v407
      %v467 = vpack.c.b16 %v410, %v409
      %v468 = vpack.c.b16 %v412, %v411
      %v469 = vpack.c.b16 %v414, %v413
      %v470 = vpack.c.b16 %v416, %v415
      %v471 = vpack.c.b16 %v418, %v417
      %v472 = vpack.c.b16 %v420, %v419
      %v473 = vpack.c.b16 %v422, %v421
      %v474 = vpack.c.b16 %v424, %v423
      %v475 = vpack.c.b16 %v426, %v425
      %v476 = vpack.c.b16 %v428, %v427
      %v477 = vpack.c.b16 %v430, %v429
      %v478 = vpack.c.b16 %v432, %v431
      %v479 = vpack.c.b16 %v434, %v433
      %v480 = vpack.c.b16 %v436, %v435
      %v481 = vpack.c.b16 %v438, %v437
      %v482 = vpack.c.b16 %v440, %v439
      %v483 = vpack.c.b16 %v442, %v441
      %v484 = vpack.c.b16 %v444, %v443
      %v485 = vpack.c.b16 %v446, %v445
      %v486 = vpack.c.b16 %v448, %v447
      %v487 = vpack.c.b16 %v450, %v449
      %v488 = vpack.c.b16 %v452, %v451
      %v489 = vpack.c.b16 %v454, %v453
      %v490 = vpack.c.b16 %v456, %v455
      %v491 = vpack.c.b16 %v458, %v457
      %v492 = vpack.c.b16 %v460, %v459
      %v495 = vunpack.c.l.b16 %v331
      %v496 = vunpack.c.l.b16 %v332
      %v497 = vpack.c.b16 %v496, %v495
      %vm498 = vcmask 72704
      %v500 = vsel %vm498, %v461, 0
      %v503 = vsel %vm498, %v462, 0
      %v506 = vsel %vm498, %v463, 0
      %v509 = vsel %vm498, %v464, 0
      %v512 = vsel %vm498, %v465, 0
      %v515 = vsel %vm498, %v466, 0
      %v518 = vsel %vm498, %v467, 0
      %v521 = vsel %vm498, %v468, 0
      %v524 = vsel %vm498, %v469, 0
      %v527 = vsel %vm498, %v470, 0
      %v530 = vsel %vm498, %v471, 0
      %v533 = vsel %vm498, %v472, 0
      %v536 = vsel %vm498, %v473, 0
      %v539 = vsel %vm498, %v474, 0
      %v542 = vsel %vm498, %v475, 0
      %v545 = vsel %vm498, %v476, 0
      %v548 = vsel %vm498, %v477, 0
      %v551 = vsel %vm498, %v478, 0
      %v554 = vsel %vm498, %v479, 0
      %v557 = vsel %vm498, %v480, 0
      %v560 = vsel %vm498, %v481, 0
      %v563 = vsel %vm498, %v482, 0
      %v566 = vsel %vm498, %v483, 0
      %v569 = vsel %vm498, %v484, 0
      %v572 = vsel %vm498, %v485, 0
      %v575 = vsel %vm498, %v486, 0
      %v578 = vsel %vm498, %v487, 0
      %v581 = vsel %vm498, %v488, 0
      %v584 = vsel %vm498, %v489, 0
      %v587 = vsel %vm498, %v490, 0
      %v590 = vsel %vm498, %v491, 0
      %v593 = vsel %vm498, %v492, 0
      %vm595 = vcmask 1043456
      %vm596 = vcmask 1044480
      %v597 = vsel %vm595, 4294967295, 65535
      %v598 = vsel %vm596, %v597, 0
      %v600 = vand.u32 %v497, %v598
      %602 = vmatpush.bf16.msra.mxu0 0
      %603 = vmatpush.bf16.msra.mxu0 0
      %604 = vmatpush.bf16.msra.mxu0 0
      %605 = vmatpush.bf16.msra.mxu0 0
      %606 = vmatpush.bf16.msra.mxu0 0
      %607 = vmatpush.bf16.msra.mxu0 0
      %608 = vmatpush.bf16.msra.mxu0 0
      %609 = vmatpush.bf16.msra.mxu0 %v600
      %610 = vmatmul.bf16.gmra.mxu0 %v500
      %v611 = vpop.f32.mrf.mxu0
      %v612 = vadd.f32 0.0, %v611
      %v613 = vpop.f32.mrf.mxu0
      %v614 = vadd.f32 0.0, %v613
      %615 = vmatmul.bf16.gmra.mxu0 %v503
      %v616 = vpop.f32.mrf.mxu0
      %v617 = vadd.f32 0.0, %v616
      %v618 = vpop.f32.mrf.mxu0
      %v619 = vadd.f32 0.0, %v618
      %620 = vmatmul.bf16.gmra.mxu0 %v506
      %v621 = vpop.f32.mrf.mxu0
      %v622 = vadd.f32 0.0, %v621
      %v623 = vpop.f32.mrf.mxu0
      %v624 = vadd.f32 0.0, %v623
      %625 = vmatmul.bf16.gmra.mxu0 %v509
      %v626 = vpop.f32.mrf.mxu0
      %v627 = vadd.f32 0.0, %v626
      %v628 = vpop.f32.mrf.mxu0
      %v629 = vadd.f32 0.0, %v628
      %630 = vmatmul.bf16.gmra.mxu0 %v512
      %v631 = vpop.f32.mrf.mxu0
      %v632 = vadd.f32 0.0, %v631
      %v633 = vpop.f32.mrf.mxu0
      %v634 = vadd.f32 0.0, %v633
      %635 = vmatmul.bf16.gmra.mxu0 %v515
      %v636 = vpop.f32.mrf.mxu0
      %v637 = vadd.f32 0.0, %v636
      %v638 = vpop.f32.mrf.mxu0
      %v639 = vadd.f32 0.0, %v638
      %640 = vmatmul.bf16.gmra.mxu0 %v518
      %v641 = vpop.f32.mrf.mxu0
      %v642 = vadd.f32 0.0, %v641
      %v643 = vpop.f32.mrf.mxu0
      %v644 = vadd.f32 0.0, %v643
      %645 = vmatmul.bf16.gmra.mxu0 %v521
      %v646 = vpop.f32.mrf.mxu0
      %v647 = vadd.f32 0.0, %v646
      %v648 = vpop.f32.mrf.mxu0
      %v649 = vadd.f32 0.0, %v648
      %650 = vmatmul.bf16.gmra.mxu0 %v524
      %v651 = vpop.f32.mrf.mxu0
      %v652 = vadd.f32 0.0, %v651
      %v653 = vpop.f32.mrf.mxu0
      %v654 = vadd.f32 0.0, %v653
      %655 = vmatmul.bf16.gmra.mxu0 %v527
      %v656 = vpop.f32.mrf.mxu0
      %v657 = vadd.f32 0.0, %v656
      %v658 = vpop.f32.mrf.mxu0
      %v659 = vadd.f32 0.0, %v658
      %660 = vmatmul.bf16.gmra.mxu0 %v530
      %v661 = vpop.f32.mrf.mxu0
      %v662 = vadd.f32 0.0, %v661
      %v663 = vpop.f32.mrf.mxu0
      %v664 = vadd.f32 0.0, %v663
      %665 = vmatmul.bf16.gmra.mxu0 %v533
      %v666 = vpop.f32.mrf.mxu0
      %v667 = vadd.f32 0.0, %v666
      %v668 = vpop.f32.mrf.mxu0
      %v669 = vadd.f32 0.0, %v668
      %670 = vmatmul.bf16.gmra.mxu0 %v536
      %v671 = vpop.f32.mrf.mxu0
      %v672 = vadd.f32 0.0, %v671
      %v673 = vpop.f32.mrf.mxu0
      %v674 = vadd.f32 0.0, %v673
      %675 = vmatmul.bf16.gmra.mxu0 %v539
      %v676 = vpop.f32.mrf.mxu0
      %v677 = vadd.f32 0.0, %v676
      %v678 = vpop.f32.mrf.mxu0
      %v679 = vadd.f32 0.0, %v678
      %680 = vmatmul.bf16.gmra.mxu0 %v542
      %v681 = vpop.f32.mrf.mxu0
      %v682 = vadd.f32 0.0, %v681
      %v683 = vpop.f32.mrf.mxu0
      %v684 = vadd.f32 0.0, %v683
      %685 = vmatmul.bf16.gmra.mxu0 %v545
      %v686 = vpop.f32.mrf.mxu0
      %v687 = vadd.f32 0.0, %v686
      %v688 = vpop.f32.mrf.mxu0
      %v689 = vadd.f32 0.0, %v688
      %690 = vmatmul.bf16.gmra.mxu0 %v548
      %v691 = vpop.f32.mrf.mxu0
      %v692 = vadd.f32 0.0, %v691
      %v693 = vpop.f32.mrf.mxu0
      %v694 = vadd.f32 0.0, %v693
      %695 = vmatmul.bf16.gmra.mxu0 %v551
      %v696 = vpop.f32.mrf.mxu0
      %v697 = vadd.f32 0.0, %v696
      %v698 = vpop.f32.mrf.mxu0
      %v699 = vadd.f32 0.0, %v698
      %700 = vmatmul.bf16.gmra.mxu0 %v554
      %v701 = vpop.f32.mrf.mxu0
      %v702 = vadd.f32 0.0, %v701
      %v703 = vpop.f32.mrf.mxu0
      %v704 = vadd.f32 0.0, %v703
      %705 = vmatmul.bf16.gmra.mxu0 %v557
      %v706 = vpop.f32.mrf.mxu0
      %v707 = vadd.f32 0.0, %v706
      %v708 = vpop.f32.mrf.mxu0
      %v709 = vadd.f32 0.0, %v708
      %710 = vmatmul.bf16.gmra.mxu0 %v560
      %v711 = vpop.f32.mrf.mxu0
      %v712 = vadd.f32 0.0, %v711
      %v713 = vpop.f32.mrf.mxu0
      %v714 = vadd.f32 0.0, %v713
      %715 = vmatmul.bf16.gmra.mxu0 %v563
      %v716 = vpop.f32.mrf.mxu0
      %v717 = vadd.f32 0.0, %v716
      %v718 = vpop.f32.mrf.mxu0
      %v719 = vadd.f32 0.0, %v718
      %720 = vmatmul.bf16.gmra.mxu0 %v566
      %v721 = vpop.f32.mrf.mxu0
      %v722 = vadd.f32 0.0, %v721
      %v723 = vpop.f32.mrf.mxu0
      %v724 = vadd.f32 0.0, %v723
      %725 = vmatmul.bf16.gmra.mxu0 %v569
      %v726 = vpop.f32.mrf.mxu0
      %v727 = vadd.f32 0.0, %v726
      %v728 = vpop.f32.mrf.mxu0
      %v729 = vadd.f32 0.0, %v728
      %730 = vmatmul.bf16.gmra.mxu0 %v572
      %v731 = vpop.f32.mrf.mxu0
      %v732 = vadd.f32 0.0, %v731
      %v733 = vpop.f32.mrf.mxu0
      %v734 = vadd.f32 0.0, %v733
      %735 = vmatmul.bf16.gmra.mxu0 %v575
      %v736 = vpop.f32.mrf.mxu0
      %v737 = vadd.f32 0.0, %v736
      %v738 = vpop.f32.mrf.mxu0
      %v739 = vadd.f32 0.0, %v738
      %740 = vmatmul.bf16.gmra.mxu0 %v578
      %v741 = vpop.f32.mrf.mxu0
      %v742 = vadd.f32 0.0, %v741
      %v743 = vpop.f32.mrf.mxu0
      %v744 = vadd.f32 0.0, %v743
      %745 = vmatmul.bf16.gmra.mxu0 %v581
      %v746 = vpop.f32.mrf.mxu0
      %v747 = vadd.f32 0.0, %v746
      %v748 = vpop.f32.mrf.mxu0
      %v749 = vadd.f32 0.0, %v748
      %750 = vmatmul.bf16.gmra.mxu0 %v584
      %v751 = vpop.f32.mrf.mxu0
      %v752 = vadd.f32 0.0, %v751
      %v753 = vpop.f32.mrf.mxu0
      %v754 = vadd.f32 0.0, %v753
      %755 = vmatmul.bf16.gmra.mxu0 %v587
      %v756 = vpop.f32.mrf.mxu0
      %v757 = vadd.f32 0.0, %v756
      %v758 = vpop.f32.mrf.mxu0
      %v759 = vadd.f32 0.0, %v758
      %760 = vmatmul.bf16.gmra.mxu0 %v590
      %v761 = vpop.f32.mrf.mxu0
      %v762 = vadd.f32 0.0, %v761
      %v763 = vpop.f32.mrf.mxu0
      %v764 = vadd.f32 0.0, %v763
      %765 = vmatmul.bf16.gmra.mxu0 %v593
      %v766 = vpop.f32.mrf.mxu0
      %v767 = vadd.f32 0.0, %v766
      %v768 = vpop.f32.mrf.mxu0
      %v769 = vadd.f32 0.0, %v768
      %770 = vdwg.mxu0
      %v771 = vld [vmem:[%s253] sm:$0x1]
      %v773 = vperm.slane %v771, 0
      %v775 = vmul.f32 %v612, %v773
      %v776 = vmul.f32 %v614, %v773
      %v777 = vmul.f32 %v617, %v773
      %v778 = vmul.f32 %v619, %v773
      %v779 = vmul.f32 %v622, %v773
      %v780 = vmul.f32 %v624, %v773
      %v781 = vmul.f32 %v627, %v773
      %v782 = vmul.f32 %v629, %v773
      %v783 = vmul.f32 %v632, %v773
      %v784 = vmul.f32 %v634, %v773
      %v785 = vmul.f32 %v637, %v773
      %v786 = vmul.f32 %v639, %v773
      %v787 = vmul.f32 %v642, %v773
      %v788 = vmul.f32 %v644, %v773
      %v789 = vmul.f32 %v647, %v773
      %v790 = vmul.f32 %v649, %v773
      %v791 = vmul.f32 %v652, %v773
      %v792 = vmul.f32 %v654, %v773
      %v793 = vmul.f32 %v657, %v773
      %v794 = vmul.f32 %v659, %v773
      %v795 = vmul.f32 %v662, %v773
      %v796 = vmul.f32 %v664, %v773
      %v797 = vmul.f32 %v667, %v773
      %v798 = vmul.f32 %v669, %v773
      %v799 = vmul.f32 %v672, %v773
      %v800 = vmul.f32 %v674, %v773
      %v801 = vmul.f32 %v677, %v773
      %v802 = vmul.f32 %v679, %v773
      %v803 = vmul.f32 %v682, %v773
      %v804 = vmul.f32 %v684, %v773
      %v805 = vmul.f32 %v687, %v773
      %v806 = vmul.f32 %v689, %v773
      %v807 = vmul.f32 %v692, %v773
      %v808 = vmul.f32 %v694, %v773
      %v809 = vmul.f32 %v697, %v773
      %v810 = vmul.f32 %v699, %v773
      %v811 = vmul.f32 %v702, %v773
      %v812 = vmul.f32 %v704, %v773
      %v813 = vmul.f32 %v707, %v773
      %v814 = vmul.f32 %v709, %v773
      %v815 = vmul.f32 %v712, %v773
      %v816 = vmul.f32 %v714, %v773
      %v817 = vmul.f32 %v717, %v773
      %v818 = vmul.f32 %v719, %v773
      %v819 = vmul.f32 %v722, %v773
      %v820 = vmul.f32 %v724, %v773
      %v821 = vmul.f32 %v727, %v773
      %v822 = vmul.f32 %v729, %v773
      %v823 = vmul.f32 %v732, %v773
      %v824 = vmul.f32 %v734, %v773
      %v825 = vmul.f32 %v737, %v773
      %v826 = vmul.f32 %v739, %v773
      %v827 = vmul.f32 %v742, %v773
      %v828 = vmul.f32 %v744, %v773
      %v829 = vmul.f32 %v747, %v773
      %v830 = vmul.f32 %v749, %v773
      %v831 = vmul.f32 %v752, %v773
      %v832 = vmul.f32 %v754, %v773
      %v833 = vmul.f32 %v757, %v773
      %v834 = vmul.f32 %v759, %v773
      %v835 = vmul.f32 %v762, %v773
      %v836 = vmul.f32 %v764, %v773
      %v837 = vmul.f32 %v767, %v773
      %v838 = vmul.f32 %v769, %v773
      %v839 = vld [vmem:[%s256] sm:$0x1]
      %v841 = vperm.slane %v839, 0
      %v843 = vadd.f32 %v775, %v841
      %v844 = vadd.f32 %v776, %v841
      %v845 = vadd.f32 %v777, %v841
      %v846 = vadd.f32 %v778, %v841
      %v847 = vadd.f32 %v779, %v841
      %v848 = vadd.f32 %v780, %v841
      %v849 = vadd.f32 %v781, %v841
      %v850 = vadd.f32 %v782, %v841
      %v851 = vadd.f32 %v783, %v841
      %v852 = vadd.f32 %v784, %v841
      %v853 = vadd.f32 %v785, %v841
      %v854 = vadd.f32 %v786, %v841
      %v855 = vadd.f32 %v787, %v841
      %v856 = vadd.f32 %v788, %v841
      %v857 = vadd.f32 %v789, %v841
      %v858 = vadd.f32 %v790, %v841
      %v859 = vadd.f32 %v791, %v841
      %v860 = vadd.f32 %v792, %v841
      %v861 = vadd.f32 %v793, %v841
      %v862 = vadd.f32 %v794, %v841
      %v863 = vadd.f32 %v795, %v841
      %v864 = vadd.f32 %v796, %v841
      %v865 = vadd.f32 %v797, %v841
      %v866 = vadd.f32 %v798, %v841
      %v867 = vadd.f32 %v799, %v841
      %v868 = vadd.f32 %v800, %v841
      %v869 = vadd.f32 %v801, %v841
      %v870 = vadd.f32 %v802, %v841
      %v871 = vadd.f32 %v803, %v841
      %v872 = vadd.f32 %v804, %v841
      %v873 = vadd.f32 %v805, %v841
      %v874 = vadd.f32 %v806, %v841
      %v875 = vadd.f32 %v807, %v841
      %v876 = vadd.f32 %v808, %v841
      %v877 = vadd.f32 %v809, %v841
      %v878 = vadd.f32 %v810, %v841
      %v879 = vadd.f32 %v811, %v841
      %v880 = vadd.f32 %v812, %v841
      %v881 = vadd.f32 %v813, %v841
      %v882 = vadd.f32 %v814, %v841
      %v883 = vadd.f32 %v815, %v841
      %v884 = vadd.f32 %v816, %v841
      %v885 = vadd.f32 %v817, %v841
      %v886 = vadd.f32 %v818, %v841
      %v887 = vadd.f32 %v819, %v841
      %v888 = vadd.f32 %v820, %v841
      %v889 = vadd.f32 %v821, %v841
      %v890 = vadd.f32 %v822, %v841
      %v891 = vadd.f32 %v823, %v841
      %v892 = vadd.f32 %v824, %v841
      %v893 = vadd.f32 %v825, %v841
      %v894 = vadd.f32 %v826, %v841
      %v895 = vadd.f32 %v827, %v841
      %v896 = vadd.f32 %v828, %v841
      %v897 = vadd.f32 %v829, %v841
      %v898 = vadd.f32 %v830, %v841
      %v899 = vadd.f32 %v831, %v841
      %v900 = vadd.f32 %v832, %v841
      %v901 = vadd.f32 %v833, %v841
      %v902 = vadd.f32 %v834, %v841
      %v903 = vadd.f32 %v835, %v841
      %v904 = vadd.f32 %v836, %v841
      %v905 = vadd.f32 %v837, %v841
      %v906 = vadd.f32 %v838, %v841
      %v907 = vmax.f32 %v843, 0.0
      %v908 = vmax.f32 %v844, 0.0
      %v909 = vmax.f32 %v845, 0.0
      %v910 = vmax.f32 %v846, 0.0
      %v911 = vmax.f32 %v847, 0.0
      %v912 = vmax.f32 %v848, 0.0
      %v913 = vmax.f32 %v849, 0.0
      %v914 = vmax.f32 %v850, 0.0
      %v915 = vmax.f32 %v851, 0.0
      %v916 = vmax.f32 %v852, 0.0
      %v917 = vmax.f32 %v853, 0.0
      %v918 = vmax.f32 %v854, 0.0
      %v919 = vmax.f32 %v855, 0.0
      %v920 = vmax.f32 %v856, 0.0
      %v921 = vmax.f32 %v857, 0.0
      %v922 = vmax.f32 %v858, 0.0
      %v923 = vmax.f32 %v859, 0.0
      %v924 = vmax.f32 %v860, 0.0
      %v925 = vmax.f32 %v861, 0.0
      %v926 = vmax.f32 %v862, 0.0
      %v927 = vmax.f32 %v863, 0.0
      %v928 = vmax.f32 %v864, 0.0
      %v929 = vmax.f32 %v865, 0.0
      %v930 = vmax.f32 %v866, 0.0
      %v931 = vmax.f32 %v867, 0.0
      %v932 = vmax.f32 %v868, 0.0
      %v933 = vmax.f32 %v869, 0.0
      %v934 = vmax.f32 %v870, 0.0
      %v935 = vmax.f32 %v871, 0.0
      %v936 = vmax.f32 %v872, 0.0
      %v937 = vmax.f32 %v873, 0.0
      %v938 = vmax.f32 %v874, 0.0
      %v939 = vmax.f32 %v875, 0.0
      %v940 = vmax.f32 %v876, 0.0
      %v941 = vmax.f32 %v877, 0.0
      %v942 = vmax.f32 %v878, 0.0
      %v943 = vmax.f32 %v879, 0.0
      %v944 = vmax.f32 %v880, 0.0
      %v945 = vmax.f32 %v881, 0.0
      %v946 = vmax.f32 %v882, 0.0
      %v947 = vmax.f32 %v883, 0.0
      %v948 = vmax.f32 %v884, 0.0
      %v949 = vmax.f32 %v885, 0.0
      %v950 = vmax.f32 %v886, 0.0
      %v951 = vmax.f32 %v887, 0.0
      %v952 = vmax.f32 %v888, 0.0
      %v953 = vmax.f32 %v889, 0.0
      %v954 = vmax.f32 %v890, 0.0
      %v955 = vmax.f32 %v891, 0.0
      %v956 = vmax.f32 %v892, 0.0
      %v957 = vmax.f32 %v893, 0.0
      %v958 = vmax.f32 %v894, 0.0
      %v959 = vmax.f32 %v895, 0.0
      %v960 = vmax.f32 %v896, 0.0
      %v961 = vmax.f32 %v897, 0.0
      %v962 = vmax.f32 %v898, 0.0
      %v963 = vmax.f32 %v899, 0.0
      %v964 = vmax.f32 %v900, 0.0
      %v965 = vmax.f32 %v901, 0.0
      %v966 = vmax.f32 %v902, 0.0
      %v967 = vmax.f32 %v903, 0.0
      %v968 = vmax.f32 %v904, 0.0
      %v969 = vmax.f32 %v905, 0.0
      %v970 = vmax.f32 %v906, 0.0
      %v971 = vpack.c.bf16 %v907, %v907
      %v972 = vpack.c.bf16 %v908, %v908
      %v973 = vpack.c.bf16 %v909, %v909
      %v974 = vpack.c.bf16 %v910, %v910
      %v975 = vpack.c.bf16 %v911, %v911
      %v976 = vpack.c.bf16 %v912, %v912
      %v977 = vpack.c.bf16 %v913, %v913
      %v978 = vpack.c.bf16 %v914, %v914
      %v979 = vpack.c.bf16 %v915, %v915
      %v980 = vpack.c.bf16 %v916, %v916
      %v981 = vpack.c.bf16 %v917, %v917
      %v982 = vpack.c.bf16 %v918, %v918
      %v983 = vpack.c.bf16 %v919, %v919
      %v984 = vpack.c.bf16 %v920, %v920
      %v985 = vpack.c.bf16 %v921, %v921
      %v986 = vpack.c.bf16 %v922, %v922
      %v987 = vpack.c.bf16 %v923, %v923
      %v988 = vpack.c.bf16 %v924, %v924
      %v989 = vpack.c.bf16 %v925, %v925
      %v990 = vpack.c.bf16 %v926, %v926
      %v991 = vpack.c.bf16 %v927, %v927
      %v992 = vpack.c.bf16 %v928, %v928
      %v993 = vpack.c.bf16 %v929, %v929
      %v994 = vpack.c.bf16 %v930, %v930
      %v995 = vpack.c.bf16 %v931, %v931
      %v996 = vpack.c.bf16 %v932, %v932
      %v997 = vpack.c.bf16 %v933, %v933
      %v998 = vpack.c.bf16 %v934, %v934
      %v999 = vpack.c.bf16 %v935, %v935
      %v1000 = vpack.c.bf16 %v936, %v936
      %v1001 = vpack.c.bf16 %v937, %v937
      %v1002 = vpack.c.bf16 %v938, %v938
      %v1003 = vpack.c.bf16 %v939, %v939
      %v1004 = vpack.c.bf16 %v940, %v940
      %v1005 = vpack.c.bf16 %v941, %v941
      %v1006 = vpack.c.bf16 %v942, %v942
      %v1007 = vpack.c.bf16 %v943, %v943
      %v1008 = vpack.c.bf16 %v944, %v944
      %v1009 = vpack.c.bf16 %v945, %v945
      %v1010 = vpack.c.bf16 %v946, %v946
      %v1011 = vpack.c.bf16 %v947, %v947
      %v1012 = vpack.c.bf16 %v948, %v948
      %v1013 = vpack.c.bf16 %v949, %v949
      %v1014 = vpack.c.bf16 %v950, %v950
      %v1015 = vpack.c.bf16 %v951, %v951
      %v1016 = vpack.c.bf16 %v952, %v952
      %v1017 = vpack.c.bf16 %v953, %v953
      %v1018 = vpack.c.bf16 %v954, %v954
      %v1019 = vpack.c.bf16 %v955, %v955
      %v1020 = vpack.c.bf16 %v956, %v956
      %v1021 = vpack.c.bf16 %v957, %v957
      %v1022 = vpack.c.bf16 %v958, %v958
      %v1023 = vpack.c.bf16 %v959, %v959
      %v1024 = vpack.c.bf16 %v960, %v960
      %v1025 = vpack.c.bf16 %v961, %v961
      %v1026 = vpack.c.bf16 %v962, %v962
      %v1027 = vpack.c.bf16 %v963, %v963
      %v1028 = vpack.c.bf16 %v964, %v964
      %v1029 = vpack.c.bf16 %v965, %v965
      %v1030 = vpack.c.bf16 %v966, %v966
      %v1031 = vpack.c.bf16 %v967, %v967
      %v1032 = vpack.c.bf16 %v968, %v968
      %v1033 = vpack.c.bf16 %v969, %v969
      %v1034 = vpack.c.bf16 %v970, %v970
      %vm1035 = vcmask 125952
      %1036 = vst.msk [vmem:[%s264] sm:$0xf] %vm1035, %v971
      %1037 = vst.msk [vmem:[%s264 + $0x4] sm:$0xf] %vm1035, %v972
      %1038 = vst.msk [vmem:[%s264 + $0x8] sm:$0xf] %vm1035, %v973
      %1039 = vst.msk [vmem:[%s264 + $0xc] sm:$0xf] %vm1035, %v974
      %1040 = vst.msk [vmem:[%s264 + $0x10] sm:$0xf] %vm1035, %v975
      %1041 = vst.msk [vmem:[%s264 + $0x14] sm:$0xf] %vm1035, %v976
      %1042 = vst.msk [vmem:[%s264 + $0x18] sm:$0xf] %vm1035, %v977
      %1043 = vst.msk [vmem:[%s264 + $0x1c] sm:$0xf] %vm1035, %v978
      %1044 = vst.msk [vmem:[%s264 + $0x20] sm:$0xf] %vm1035, %v979
      %1045 = vst.msk [vmem:[%s264 + $0x24] sm:$0xf] %vm1035, %v980
      %1046 = vst.msk [vmem:[%s264 + $0x28] sm:$0xf] %vm1035, %v981
      %1047 = vst.msk [vmem:[%s264 + $0x2c] sm:$0xf] %vm1035, %v982
      %1048 = vst.msk [vmem:[%s264 + $0x30] sm:$0xf] %vm1035, %v983
      %1049 = vst.msk [vmem:[%s264 + $0x34] sm:$0xf] %vm1035, %v984
      %1050 = vst.msk [vmem:[%s264 + $0x38] sm:$0xf] %vm1035, %v985
      %1051 = vst.msk [vmem:[%s264 + $0x3c] sm:$0xf] %vm1035, %v986
      %1052 = vst.msk [vmem:[%s264 + $0x40] sm:$0xf] %vm1035, %v987
      %1053 = vst.msk [vmem:[%s264 + $0x44] sm:$0xf] %vm1035, %v988
      %1054 = vst.msk [vmem:[%s264 + $0x48] sm:$0xf] %vm1035, %v989
      %1055 = vst.msk [vmem:[%s264 + $0x4c] sm:$0xf] %vm1035, %v990
      %1056 = vst.msk [vmem:[%s264 + $0x50] sm:$0xf] %vm1035, %v991
      %1057 = vst.msk [vmem:[%s264 + $0x54] sm:$0xf] %vm1035, %v992
      %1058 = vst.msk [vmem:[%s264 + $0x58] sm:$0xf] %vm1035, %v993
      %1059 = vst.msk [vmem:[%s264 + $0x5c] sm:$0xf] %vm1035, %v994
      %1060 = vst.msk [vmem:[%s264 + $0x60] sm:$0xf] %vm1035, %v995
      %1061 = vst.msk [vmem:[%s264 + $0x64] sm:$0xf] %vm1035, %v996
      %1062 = vst.msk [vmem:[%s264 + $0x68] sm:$0xf] %vm1035, %v997
      %1063 = vst.msk [vmem:[%s264 + $0x6c] sm:$0xf] %vm1035, %v998
      %1064 = vst.msk [vmem:[%s264 + $0x70] sm:$0xf] %vm1035, %v999
      %1065 = vst.msk [vmem:[%s264 + $0x74] sm:$0xf] %vm1035, %v1000
      %1066 = vst.msk [vmem:[%s264 + $0x78] sm:$0xf] %vm1035, %v1001
      %1067 = vst.msk [vmem:[%s264 + $0x7c] sm:$0xf] %vm1035, %v1002
      %1068 = vst.msk [vmem:[%s264 + $0x80] sm:$0xf] %vm1035, %v1003
      %1069 = vst.msk [vmem:[%s264 + $0x84] sm:$0xf] %vm1035, %v1004
      %1070 = vst.msk [vmem:[%s264 + $0x88] sm:$0xf] %vm1035, %v1005
      %1071 = vst.msk [vmem:[%s264 + $0x8c] sm:$0xf] %vm1035, %v1006
      %1072 = vst.msk [vmem:[%s264 + $0x90] sm:$0xf] %vm1035, %v1007
      %1073 = vst.msk [vmem:[%s264 + $0x94] sm:$0xf] %vm1035, %v1008
      %1074 = vst.msk [vmem:[%s264 + $0x98] sm:$0xf] %vm1035, %v1009
      %1075 = vst.msk [vmem:[%s264 + $0x9c] sm:$0xf] %vm1035, %v1010
      %1076 = vst.msk [vmem:[%s264 + $0xa0] sm:$0xf] %vm1035, %v1011
      %1077 = vst.msk [vmem:[%s264 + $0xa4] sm:$0xf] %vm1035, %v1012
      %1078 = vst.msk [vmem:[%s264 + $0xa8] sm:$0xf] %vm1035, %v1013
      %1079 = vst.msk [vmem:[%s264 + $0xac] sm:$0xf] %vm1035, %v1014
      %1080 = vst.msk [vmem:[%s264 + $0xb0] sm:$0xf] %vm1035, %v1015
      %1081 = vst.msk [vmem:[%s264 + $0xb4] sm:$0xf] %vm1035, %v1016
      %1082 = vst.msk [vmem:[%s264 + $0xb8] sm:$0xf] %vm1035, %v1017
      %1083 = vst.msk [vmem:[%s264 + $0xbc] sm:$0xf] %vm1035, %v1018
      %1084 = vst.msk [vmem:[%s264 + $0xc0] sm:$0xf] %vm1035, %v1019
      %1085 = vst.msk [vmem:[%s264 + $0xc4] sm:$0xf] %vm1035, %v1020
      %1086 = vst.msk [vmem:[%s264 + $0xc8] sm:$0xf] %vm1035, %v1021
      %1087 = vst.msk [vmem:[%s264 + $0xcc] sm:$0xf] %vm1035, %v1022
      %1088 = vst.msk [vmem:[%s264 + $0xd0] sm:$0xf] %vm1035, %v1023
      %1089 = vst.msk [vmem:[%s264 + $0xd4] sm:$0xf] %vm1035, %v1024
      %1090 = vst.msk [vmem:[%s264 + $0xd8] sm:$0xf] %vm1035, %v1025
      %1091 = vst.msk [vmem:[%s264 + $0xdc] sm:$0xf] %vm1035, %v1026
      %1092 = vst.msk [vmem:[%s264 + $0xe0] sm:$0xf] %vm1035, %v1027
      %1093 = vst.msk [vmem:[%s264 + $0xe4] sm:$0xf] %vm1035, %v1028
      %1094 = vst.msk [vmem:[%s264 + $0xe8] sm:$0xf] %vm1035, %v1029
      %1095 = vst.msk [vmem:[%s264 + $0xec] sm:$0xf] %vm1035, %v1030
      %1096 = vst.msk [vmem:[%s264 + $0xf0] sm:$0xf] %vm1035, %v1031
      %1097 = vst.msk [vmem:[%s264 + $0xf4] sm:$0xf] %vm1035, %v1032
      %1098 = vst.msk [vmem:[%s264 + $0xf8] sm:$0xf] %vm1035, %v1033
      %1099 = vst.msk [vmem:[%s264 + $0xfc] sm:$0xf] %vm1035, %v1034
      %s1100 = smul.u32 64, %s19
      %p1101 = scmp.lt.s32.totalorder %s1100, 191
      %s1102 = scalar_select %p1101, %s1100, 191
      %p1103 = scmp.lt.s32.totalorder %s20, 0
      %s1104 = scalar_select %p1103, %s20, 0
      %s1105 = sadd.s32 %s1104, %s1102
      %s1106 = smul.addr %s1105, 4
      %s1107 = scalar_lea.vmem %s4, %s1106
      // Predicated region
      $region37: #{_lambda_.5} parent=35 // pred_check
        %p1108 = pneg %p151
      $region38: #{_lambda_.5} parent=35 // pred_check_branch
        %1110 = sbr.rel (%p1108) target = $region40
      $region39: #{_lambda_.5} parent=35 // pred_region
        %s1111 = smul.u32 64, %s19
      $region40: #{_lambda_.5} parent=35 // pred_fallthru
        _
    $region36: #{_lambda_.5} parent=5 // pred_fallthru
      _
    %p1112 = scmp.le.s32.totalorder 2, %s10
    // Predicated region
    $region41: #{_lambda_.5} parent=5 // pred_check
      %p1113 = pneg %p1112
    $region42: #{_lambda_.5} parent=5 // pred_check_branch
      %1115 = sbr.rel (%p1113) target = $region44
    $region43: #{_lambda_.5} parent=5 // pred_region
      %s1116 = ssub.s32 %s10, 2
      // Predicated region
      $region45: #{_lambda_.5} parent=43 // pred_check
        %p1117 = pneg %p157
      $region46: #{_lambda_.5} parent=43 // pred_check_branch
        %1119 = sbr.rel (%p1117) target = $region48
      $region47: #{_lambda_.5} parent=43 // pred_region
        %s1120 = smul.u32 64, %s21
        %p1121 = scmp.lt.s32.totalorder %s1120, 191
        %s1122 = scalar_select %p1121, %s1120, 191
        %p1123 = scmp.lt.s32.totalorder %s22, 0
        %s1124 = scalar_select %p1123, %s22, 0
        %s1125 = sadd.s32 %s1124, %s1122
        %s1126 = smul.addr %s1125, 4
        %s1127 = scalar_lea.vmem %s4, %s1126
      $region48: #{_lambda_.5} parent=43 // pred_fallthru
        _
    $region44: #{_lambda_.5} parent=5 // pred_fallthru
      _
  $region6: #{_lambda_.5} parent=0 // loop_footer
    %s14 = sadd.s32 1, %s10
  $region7: #{_lambda_.5} parent=0 // loop_footer_branch
    %9 = sbr.rel target = $region3
  $region8: #{_lambda_.5} parent=0 // loop_exit
    _

// kernel: _lambda_.6
$region0: #{_lambda_.6}
  #allocation0 [shape = 'u32[]', space=smem, size = 0x4, offset = 0x4, fixed_abs, tag = 'smem constant byte address 0x4 - core index']
  #allocation1 [shape = 'u32[72,128]{1,0:T(1,128)}', space=vmem, size = 0x9000, scoped, tag = 'internal scratch']
  %s0 = inlined_call_operand.vmem [shape: bf16[416,144], index: 0, kind: input, shape index: {}]
  %s1 = inlined_call_operand.vmem [shape: bf16[144,32], index: 1, kind: input, shape index: {}]
  %s2 = inlined_call_operand.vmem [shape: f32[1,32], index: 2, kind: input, shape index: {}]
  %s3 = inlined_call_operand.vmem [shape: f32[1,32], index: 3, kind: input, shape index: {}]
  %s4 = inlined_call_operand.vmem [shape: bf16[416,32], index: 4, kind: output, shape index: {}]
  %s5 = sld [smem:[#allocation0]]
  $region49: #{_lambda_.6} parent=0
    _
  %s7 = ssub.s32 1, %s5
  %s8 = scalar_select 0, %s7, %s5
  loop: start=0, step=1, limit=4
  $region2: #{_lambda_.6} parent=0 // loop_pre_header
    _
  $region3: #{_lambda_.6} parent=0 // loop_header
    %s10 = sphi 0, %s14
    %p11 = scmp.ge.s32.totalorder %s10, 4
    %s17 = sphi 0, %s29
    %s18 = sphi 0, %s25
    %s19 = sphi 0, %s17
    %s20 = sphi 0, %s18
    %s21 = sphi 0, %s19
    %s22 = sphi 0, %s20
    %s32 = sphi 0, %s34
    %s35 = sphi 0, %s32
    %s36 = sphi 0, %s35
    %s52 = sphi 0, %s36
    %s58 = sphi 0, %s60
    %s61 = sphi 0, %s58
    %s62 = sphi 0, %s61
    %s78 = sphi 0, %s62
    %s84 = sphi 0, %s86
    %s87 = sphi 0, %s84
    %s88 = sphi 0, %s87
    %s104 = sphi 0, %s88
    %s110 = sphi 0, %s112
    %s113 = sphi 0, %s110
    %s114 = sphi 0, %s113
    %s130 = sphi 0, %s114
    %s138 = sphi 0, %s140
    %s141 = sphi 0, %s138
    %s142 = sphi 0, %s141
    %s158 = sphi 0, %s142
  $region4: #{_lambda_.6} parent=0 // loop_header_branch
    %13 = sbr.rel (%p11) target = $region8
  $region5: #{_lambda_.6} parent=0 // loop_body
    %s15 = ssub.s32 %s10, 1
    %s16 = ssub.s32 %s10, 2
    %s23 = sadd.s32 1, %s18
    %p24 = scmp.ge.s32.totalorder %s23, 1
    %s25 = scalar_select %p24, 0, %s23
    %s26 = sadd.s32 1, %s17
    %s27 = scalar_select %p24, %s26, %s17
    %p28 = scmp.ge.s32.totalorder %s27, 2
    %s29 = scalar_select %p28, 0, %s27
    %s30 = ssub.s32 %s17, %s29
    %p31 = scmp.eq.s32.totalorder %s30, 0
    %s33 = sadd.s32 %s32, 1
    %s34 = scalar_select %p31, %s32, %s33
    %p37 = pneg %p31
    %p38 = scmp.eq.s32.totalorder %s10, 1
    %p39 = por %p37, %p38
    %p40 = scmp.ne.s32.totalorder %s32, %s35
    %p41 = scmp.eq.s32.totalorder %s10, 0
    %p42 = por %p40, %p41
    %p43 = scmp.ne.s32.totalorder %s32, %s35
    %p44 = scmp.eq.s32.totalorder %s15, 1
    %p45 = por %p43, %p44
    %p46 = scmp.ne.s32.totalorder %s35, %s36
    %p47 = scmp.eq.s32.totalorder %s15, 0
    %p48 = por %p46, %p47
    %p49 = scmp.ne.s32.totalorder %s35, %s36
    %p50 = scmp.eq.s32.totalorder %s16, 1
    %p51 = por %p49, %p50
    %p53 = scmp.ne.s32.totalorder %s36, %s52
    %p54 = scmp.eq.s32.totalorder %s16, 0
    %p55 = por %p53, %p54
    %s56 = ssub.s32 %s18, %s25
    %p57 = scmp.eq.s32.totalorder %s56, 0
    %s59 = sadd.s32 %s58, 1
    %s60 = scalar_select %p57, %s58, %s59
    %p63 = pneg %p57
    %p64 = scmp.eq.s32.totalorder %s10, 1
    %p65 = por %p63, %p64
    %p66 = scmp.ne.s32.totalorder %s58, %s61
    %p67 = scmp.eq.s32.totalorder %s10, 0
    %p68 = por %p66, %p67
    %p69 = scmp.ne.s32.totalorder %s58, %s61
    %p70 = scmp.eq.s32.totalorder %s15, 1
    %p71 = por %p69, %p70
    %p72 = scmp.ne.s32.totalorder %s61, %s62
    %p73 = scmp.eq.s32.totalorder %s15, 0
    %p74 = por %p72, %p73
    %p75 = scmp.ne.s32.totalorder %s61, %s62
    %p76 = scmp.eq.s32.totalorder %s16, 1
    %p77 = por %p75, %p76
    %p79 = scmp.ne.s32.totalorder %s62, %s78
    %p80 = scmp.eq.s32.totalorder %s16, 0
    %p81 = por %p79, %p80
    %s82 = ssub.s32 %s18, %s25
    %p83 = scmp.eq.s32.totalorder %s82, 0
    %s85 = sadd.s32 %s84, 1
    %s86 = scalar_select %p83, %s84, %s85
    %p89 = pneg %p83
    %p90 = scmp.eq.s32.totalorder %s10, 1
    %p91 = por %p89, %p90
    %p92 = scmp.ne.s32.totalorder %s84, %s87
    %p93 = scmp.eq.s32.totalorder %s10, 0
    %p94 = por %p92, %p93
    %p95 = scmp.ne.s32.totalorder %s84, %s87
    %p96 = scmp.eq.s32.totalorder %s15, 1
    %p97 = por %p95, %p96
    %p98 = scmp.ne.s32.totalorder %s87, %s88
    %p99 = scmp.eq.s32.totalorder %s15, 0
    %p100 = por %p98, %p99
    %p101 = scmp.ne.s32.totalorder %s87, %s88
    %p102 = scmp.eq.s32.totalorder %s16, 1
    %p103 = por %p101, %p102
    %p105 = scmp.ne.s32.totalorder %s88, %s104
    %p106 = scmp.eq.s32.totalorder %s16, 0
    %p107 = por %p105, %p106
    %s108 = ssub.s32 %s18, %s25
    %p109 = scmp.eq.s32.totalorder %s108, 0
    %s111 = sadd.s32 %s110, 1
    %s112 = scalar_select %p109, %s110, %s111
    %p115 = pneg %p109
    %p116 = scmp.eq.s32.totalorder %s10, 1
    %p117 = por %p115, %p116
    %p118 = scmp.ne.s32.totalorder %s110, %s113
    %p119 = scmp.eq.s32.totalorder %s10, 0
    %p120 = por %p118, %p119
    %p121 = scmp.ne.s32.totalorder %s110, %s113
    %p122 = scmp.eq.s32.totalorder %s15, 1
    %p123 = por %p121, %p122
    %p124 = scmp.ne.s32.totalorder %s113, %s114
    %p125 = scmp.eq.s32.totalorder %s15, 0
    %p126 = por %p124, %p125
    %p127 = scmp.ne.s32.totalorder %s113, %s114
    %p128 = scmp.eq.s32.totalorder %s16, 1
    %p129 = por %p127, %p128
    %p131 = scmp.ne.s32.totalorder %s114, %s130
    %p132 = scmp.eq.s32.totalorder %s16, 0
    %p133 = por %p131, %p132
    %s134 = ssub.s32 %s17, %s29
    %s135 = ssub.s32 %s18, %s25
    %s136 = sor.u32 %s134, %s135
    %p137 = scmp.eq.s32.totalorder %s136, 0
    %s139 = sadd.s32 %s138, 1
    %s140 = scalar_select %p137, %s138, %s139
    %p143 = pneg %p137
    %p144 = scmp.eq.s32.totalorder %s10, 1
    %p145 = por %p143, %p144
    %p146 = scmp.ne.s32.totalorder %s138, %s141
    %p147 = scmp.eq.s32.totalorder %s10, 0
    %p148 = por %p146, %p147
    %p149 = scmp.ne.s32.totalorder %s138, %s141
    %p150 = scmp.eq.s32.totalorder %s15, 1
    %p151 = por %p149, %p150
    %p152 = scmp.ne.s32.totalorder %s141, %s142
    %p153 = scmp.eq.s32.totalorder %s15, 0
    %p154 = por %p152, %p153
    %p155 = scmp.ne.s32.totalorder %s141, %s142
    %p156 = scmp.eq.s32.totalorder %s16, 1
    %p157 = por %p155, %p156
    %p159 = scmp.ne.s32.totalorder %s142, %s158
    %p160 = scmp.eq.s32.totalorder %s16, 0
    %p161 = por %p159, %p160
    %p162 = scmp.le.s32.totalorder 1, %s10
    %p163 = scmp.lt.s32.totalorder %s10, 3
    %p164 = pnand %p162, %p163
    %p165 = pneg %p164
    // Predicated region
    $region9: #{_lambda_.6} parent=5 // pred_check
      _
    $region10: #{_lambda_.6} parent=5 // pred_check_branch
      %167 = sbr.rel (%p164) target = $region12
    $region11: #{_lambda_.6} parent=5 // pred_region
      %s168 = ssub.s32 %s10, 1
      // Predicated region
      $region13: #{_lambda_.6} parent=11 // pred_check
        %p169 = pneg %p74
      $region14: #{_lambda_.6} parent=11 // pred_check_branch
        %171 = sbr.rel (%p169) target = $region16
      $region15: #{_lambda_.6} parent=11 // pred_region
        %p172 = scmp.lt.s32.totalorder %s20, 0
        %s173 = scalar_select %p172, %s20, 0
        %s174 = smul.addr %s173, 4
        %s175 = scalar_lea.vmem %s1, %s174
      $region16: #{_lambda_.6} parent=11 // pred_fallthru
        _
      // Predicated region
      $region17: #{_lambda_.6} parent=11 // pred_check
        %p176 = pneg %p100
      $region18: #{_lambda_.6} parent=11 // pred_check_branch
        %178 = sbr.rel (%p176) target = $region20
      $region19: #{_lambda_.6} parent=11 // pred_region
        %p179 = scmp.lt.s32.totalorder %s20, 0
        %s180 = scalar_select %p179, %s20, 0
        %s181 = scalar_lea.vmem %s2, %s180
      $region20: #{_lambda_.6} parent=11 // pred_fallthru
        _
      // Predicated region
      $region21: #{_lambda_.6} parent=11 // pred_check
        %p182 = pneg %p126
      $region22: #{_lambda_.6} parent=11 // pred_check_branch
        %184 = sbr.rel (%p182) target = $region24
      $region23: #{_lambda_.6} parent=11 // pred_region
        %p185 = scmp.lt.s32.totalorder %s20, 0
        %s186 = scalar_select %p185, %s20, 0
        %s187 = scalar_lea.vmem %s3, %s186
      $region24: #{_lambda_.6} parent=11 // pred_fallthru
        _
    $region12: #{_lambda_.6} parent=5 // pred_fallthru
      _
    %p188 = scmp.lt.s32.totalorder %s10, 2
    // Predicated region
    $region25: #{_lambda_.6} parent=5 // pred_check
      %p189 = pneg %p188
    $region26: #{_lambda_.6} parent=5 // pred_check_branch
      %191 = sbr.rel (%p189) target = $region28
    $region27: #{_lambda_.6} parent=5 // pred_region
      // Predicated region
      $region29: #{_lambda_.6} parent=27 // pred_check
        %p192 = pneg %p42
      $region30: #{_lambda_.6} parent=27 // pred_check_branch
        %194 = sbr.rel (%p192) target = $region32
      $region31: #{_lambda_.6} parent=27 // pred_region
        %s195 = smul.u32 26, %s17
        %p196 = scmp.lt.s32.totalorder %s195, 51
        %s197 = scalar_select %p196, %s195, 51
        %s198 = smul.addr %s197, 2
        %s199 = smul.addr %s198, 4
        %s200 = scalar_lea.vmem %s0, %s199
        %s201 = smul.u32 26, %s17
      $region32: #{_lambda_.6} parent=27 // pred_fallthru
        _
    $region28: #{_lambda_.6} parent=5 // pred_fallthru
      _
    %p202 = scmp.le.s32.totalorder 1, %s10
    %p203 = scmp.lt.s32.totalorder %s10, 3
    %p204 = pnand %p202, %p203
    %p205 = pneg %p204
    // Predicated region
    $region33: #{_lambda_.6} parent=5 // pred_check
      _
    $region34: #{_lambda_.6} parent=5 // pred_check_branch
      %207 = sbr.rel (%p204) target = $region36
    $region35: #{_lambda_.6} parent=5 // pred_region
      %s208 = ssub.s32 %s10, 1
      %s209 = smul.u32 26, %s19
      %p210 = scmp.lt.s32.totalorder %s209, 51
      %s211 = scalar_select %p210, %s209, 51
      %s212 = smul.addr %s211, 2
      %s213 = smul.addr %s212, 4
      %s214 = scalar_lea.vmem %s0, %s213
      %p215 = pneg %p48
      %p216 = pneg %p45
      %p217 = scmp.lt.s32.totalorder %s20, 0
      %s218 = scalar_select %p217, %s20, 0
      %s219 = smul.addr %s218, 4
      %s220 = scalar_lea.vmem %s1, %s219
      %p221 = pneg %p74
      %p222 = pneg %p71
      %p223 = scmp.lt.s32.totalorder %s20, 0
      %s224 = scalar_select %p223, %s20, 0
      %s225 = scalar_lea.vmem %s2, %s224
      %p226 = pneg %p100
      %p227 = pneg %p97
      %p228 = scmp.lt.s32.totalorder %s20, 0
      %s229 = scalar_select %p228, %s20, 0
      %s230 = scalar_lea.vmem %s3, %s229
      %p231 = pneg %p126
      %p232 = pneg %p123
      %p233 = pneg %p154
      %p234 = pneg %p151
      %s235 = smul.u32 26, %s19
      %p236 = scmp.lt.s32.totalorder %s235, 51
      %s237 = scalar_select %p236, %s235, 51
      %p238 = scmp.lt.s32.totalorder %s20, 0
      %s239 = scalar_select %p238, %s20, 0
      %s240 = sadd.s32 %s239, %s237
      %s241 = smul.addr %s240, 4
      %s242 = scalar_lea.vmem %s4, %s241
      %s243 = smul.u32 26, %s19
      %p244 = scmp.lt.s32.totalorder %s243, 51
      %s245 = scalar_select %p244, %s243, 51
      %s246 = smul.addr %s245, 2
      %s247 = smul.addr %s246, 4
      %s248 = scalar_lea.vmem %s0, %s247
      %s249 = smul.u32 26, %s19
      %p250 = scmp.lt.s32.totalorder %s20, 0
      %s251 = scalar_select %p250, %s20, 0
      %s252 = smul.addr %s251, 4
      %s253 = scalar_lea.vmem %s1, %s252
      %p254 = scmp.lt.s32.totalorder %s20, 0
      %s255 = scalar_select %p254, %s20, 0
      %s256 = scalar_lea.vmem %s2, %s255
      %p257 = scmp.lt.s32.totalorder %s20, 0
      %s258 = scalar_select %p257, %s20, 0
      %s259 = scalar_lea.vmem %s3, %s258
      %s260 = smul.u32 26, %s19
      %p261 = scmp.lt.s32.totalorder %s260, 51
      %s262 = scalar_select %p261, %s260, 51
      %p263 = scmp.lt.s32.totalorder %s20, 0
      %s264 = scalar_select %p263, %s20, 0
      %s265 = sadd.s32 %s264, %s262
      %s266 = smul.addr %s265, 4
      %s267 = scalar_lea.vmem %s4, %s266
      %s268 = smul.u32 26, %s19
      %v270 = vld [vmem:[%s248] sm:$0xff]
      %v271 = vld [vmem:[%s248 + $0x8] sm:$0xff]
      %v272 = vld [vmem:[%s248 + $0x10] sm:$0xff]
      %v273 = vld [vmem:[%s248 + $0x18] sm:$0xff]
      %v274 = vld [vmem:[%s248 + $0x20] sm:$0xff]
      %v275 = vld [vmem:[%s248 + $0x28] sm:$0xff]
      %v276 = vld [vmem:[%s248 + $0x30] sm:$0xff]
      %v277 = vld [vmem:[%s248 + $0x38] sm:$0xff]
      %v278 = vld [vmem:[%s248 + $0x40] sm:$0xff]
      %v279 = vld [vmem:[%s248 + $0x48] sm:$0xff]
      %v280 = vld [vmem:[%s248 + $0x50] sm:$0xff]
      %v281 = vld [vmem:[%s248 + $0x58] sm:$0xff]
      %v282 = vld [vmem:[%s248 + $0x60] sm:$0xff]
      %v283 = vld [vmem:[%s248 + $0x68] sm:$0xff]
      %v284 = vld [vmem:[%s248 + $0x70] sm:$0xff]
      %v285 = vld [vmem:[%s248 + $0x78] sm:$0xff]
      %v286 = vld [vmem:[%s248 + $0x80] sm:$0xff]
      %v287 = vld [vmem:[%s248 + $0x88] sm:$0xff]
      %v288 = vld [vmem:[%s248 + $0x90] sm:$0xff]
      %v289 = vld [vmem:[%s248 + $0x98] sm:$0xff]
      %v290 = vld [vmem:[%s248 + $0xa0] sm:$0xff]
      %v291 = vld [vmem:[%s248 + $0xa8] sm:$0xff]
      %v292 = vld [vmem:[%s248 + $0xb0] sm:$0xff]
      %v293 = vld [vmem:[%s248 + $0xb8] sm:$0xff]
      %v294 = vld [vmem:[%s248 + $0xc0] sm:$0xff]
      %v295 = vld [vmem:[%s248 + $0xc8] sm:$0xff]
      %v296 = vld [vmem:[%s253] sm:$0xf]
      %v297 = vld [vmem:[%s253 + $0x4] sm:$0xf]
      %v298 = vld [vmem:[%s253 + $0x8] sm:$0xf]
      %v299 = vld [vmem:[%s253 + $0xc] sm:$0xf]
      %v300 = vld [vmem:[%s253 + $0x10] sm:$0xf]
      %v301 = vld [vmem:[%s253 + $0x14] sm:$0xf]
      %v302 = vld [vmem:[%s253 + $0x18] sm:$0xf]
      %v303 = vld [vmem:[%s253 + $0x1c] sm:$0xf]
      %v304 = vld [vmem:[%s253 + $0x20] sm:$0xf]
      %v305 = vld [vmem:[%s253 + $0x24] sm:$0xf]
      %v306 = vld [vmem:[%s253 + $0x28] sm:$0xf]
      %v307 = vld [vmem:[%s253 + $0x2c] sm:$0xf]
      %v308 = vld [vmem:[%s253 + $0x30] sm:$0xf]
      %v309 = vld [vmem:[%s253 + $0x34] sm:$0xf]
      %v310 = vld [vmem:[%s253 + $0x38] sm:$0xf]
      %v311 = vld [vmem:[%s253 + $0x3c] sm:$0xf]
      %v312 = vld [vmem:[%s253 + $0x40] sm:$0xf]
      %v313 = vld [vmem:[%s253 + $0x44] sm:$0xf]
      %v340 = vunpack.c.l.b16 %v270
      %v341 = vunpack.c.h.b16 %v270
      %v342 = vunpack.c.l.b16 %v271
      %v343 = vunpack.c.h.b16 %v271
      %v344 = vunpack.c.l.b16 %v272
      %v345 = vunpack.c.h.b16 %v272
      %v346 = vunpack.c.l.b16 %v273
      %v347 = vunpack.c.h.b16 %v273
      %v348 = vunpack.c.l.b16 %v274
      %v349 = vunpack.c.h.b16 %v274
      %v350 = vunpack.c.l.b16 %v275
      %v351 = vunpack.c.h.b16 %v275
      %v352 = vunpack.c.l.b16 %v276
      %v353 = vunpack.c.h.b16 %v276
      %v354 = vunpack.c.l.b16 %v277
      %v355 = vunpack.c.h.b16 %v277
      %v356 = vunpack.c.l.b16 %v278
      %v357 = vunpack.c.h.b16 %v278
      %v358 = vunpack.c.l.b16 %v279
      %v359 = vunpack.c.h.b16 %v279
      %v360 = vunpack.c.l.b16 %v280
      %v361 = vunpack.c.h.b16 %v280
      %v362 = vunpack.c.l.b16 %v281
      %v363 = vunpack.c.h.b16 %v281
      %v364 = vunpack.c.l.b16 %v282
      %v365 = vunpack.c.h.b16 %v282
      %v366 = vunpack.c.l.b16 %v283
      %v367 = vunpack.c.h.b16 %v283
      %v368 = vunpack.c.l.b16 %v284
      %v369 = vunpack.c.h.b16 %v284
      %v370 = vunpack.c.l.b16 %v285
      %v371 = vunpack.c.h.b16 %v285
      %v372 = vunpack.c.l.b16 %v286
      %v373 = vunpack.c.h.b16 %v286
      %v374 = vunpack.c.l.b16 %v287
      %v375 = vunpack.c.h.b16 %v287
      %v376 = vunpack.c.l.b16 %v288
      %v377 = vunpack.c.h.b16 %v288
      %v378 = vunpack.c.l.b16 %v289
      %v379 = vunpack.c.h.b16 %v289
      %v380 = vunpack.c.l.b16 %v290
      %v381 = vunpack.c.h.b16 %v290
      %v382 = vunpack.c.l.b16 %v291
      %v383 = vunpack.c.h.b16 %v291
      %v384 = vunpack.c.l.b16 %v292
      %v385 = vunpack.c.h.b16 %v292
      %v386 = vunpack.c.l.b16 %v293
      %v387 = vunpack.c.h.b16 %v293
      %v388 = vunpack.c.l.b16 %v294
      %v389 = vunpack.c.h.b16 %v294
      %v390 = vunpack.c.l.b16 %v295
      %v391 = vunpack.c.h.b16 %v295
      %v392 = vpack.c.b16 %v342, %v340
      %v393 = vpack.c.b16 %v343, %v341
      %v394 = vpack.c.b16 %v346, %v344
      %v395 = vpack.c.b16 %v347, %v345
      %v396 = vpack.c.b16 %v350, %v348
      %v397 = vpack.c.b16 %v351, %v349
      %v398 = vpack.c.b16 %v354, %v352
      %v399 = vpack.c.b16 %v355, %v353
      %v400 = vpack.c.b16 %v358, %v356
      %v401 = vpack.c.b16 %v359, %v357
      %v402 = vpack.c.b16 %v362, %v360
      %v403 = vpack.c.b16 %v363, %v361
      %v404 = vpack.c.b16 %v366, %v364
      %v405 = vpack.c.b16 %v367, %v365
      %v406 = vpack.c.b16 %v370, %v368
      %v407 = vpack.c.b16 %v371, %v369
      %v408 = vpack.c.b16 %v374, %v372
      %v409 = vpack.c.b16 %v375, %v373
      %v410 = vpack.c.b16 %v378, %v376
      %v411 = vpack.c.b16 %v379, %v377
      %v412 = vpack.c.b16 %v382, %v380
      %v413 = vpack.c.b16 %v383, %v381
      %v414 = vpack.c.b16 %v386, %v384
      %v415 = vpack.c.b16 %v387, %v385
      %v416 = vpack.c.b16 %v390, %v388
      %v417 = vpack.c.b16 %v391, %v389
      %v449 = vunpack.c.l.b16 %v296
      %v450 = vunpack.c.l.b16 %v297
      %v451 = vunpack.c.l.b16 %v298
      %v452 = vunpack.c.l.b16 %v299
      %v453 = vunpack.c.l.b16 %v300
      %v454 = vunpack.c.l.b16 %v301
      %v455 = vunpack.c.l.b16 %v302
      %v456 = vunpack.c.l.b16 %v303
      %v457 = vunpack.c.l.b16 %v304
      %v458 = vunpack.c.l.b16 %v305
      %v459 = vunpack.c.l.b16 %v306
      %v460 = vunpack.c.l.b16 %v307
      %v461 = vunpack.c.l.b16 %v308
      %v462 = vunpack.c.l.b16 %v309
      %v463 = vunpack.c.l.b16 %v310
      %v464 = vunpack.c.l.b16 %v311
      %v465 = vunpack.c.l.b16 %v312
      %v466 = vunpack.c.l.b16 %v313
      %v467 = vpack.c.b16 %v450, %v449
      %v468 = vpack.c.b16 %v452, %v451
      %v469 = vpack.c.b16 %v454, %v453
      %v470 = vpack.c.b16 %v456, %v455
      %v471 = vpack.c.b16 %v458, %v457
      %v472 = vpack.c.b16 %v460, %v459
      %v473 = vpack.c.b16 %v462, %v461
      %v474 = vpack.c.b16 %v464, %v463
      %v475 = vpack.c.b16 %v466, %v465
      %vm485 = vcmask 130048
      %v487 = vsel %vm485, %v393, 0
      %v490 = vsel %vm485, %v395, 0
      %v493 = vsel %vm485, %v397, 0
      %v496 = vsel %vm485, %v399, 0
      %v499 = vsel %vm485, %v401, 0
      %v502 = vsel %vm485, %v403, 0
      %v505 = vsel %vm485, %v405, 0
      %v508 = vsel %vm485, %v407, 0
      %v511 = vsel %vm485, %v409, 0
      %v514 = vsel %vm485, %v411, 0
      %v517 = vsel %vm485, %v413, 0
      %v520 = vsel %vm485, %v415, 0
      %v523 = vsel %vm485, %v417, 0
      %525 = vmatpush.bf16.msra.mxu0 %v474
      %526 = vmatpush.bf16.msra.mxu0 %v473
      %527 = vmatpush.bf16.msra.mxu0 %v472
      %528 = vmatpush.bf16.msra.mxu0 %v471
      %529 = vmatpush.bf16.msra.mxu0 %v470
      %530 = vmatpush.bf16.msra.mxu0 %v469
      %531 = vmatpush.bf16.msra.mxu0 %v468
      %532 = vmatpush.bf16.msra.mxu0 %v467
      %533 = vmatmul.bf16.gmra.mxu0 %v392
      %v534 = vpop.f32.mrf.mxu0
      %v535 = vadd.f32 0.0, %v534
      %v536 = vpop.f32.mrf.mxu0
      %v537 = vadd.f32 0.0, %v536
      %538 = vmatmul.bf16.gmra.mxu0 %v394
      %v539 = vpop.f32.mrf.mxu0
      %v540 = vadd.f32 0.0, %v539
      %v541 = vpop.f32.mrf.mxu0
      %v542 = vadd.f32 0.0, %v541
      %543 = vmatmul.bf16.gmra.mxu0 %v396
      %v544 = vpop.f32.mrf.mxu0
      %v545 = vadd.f32 0.0, %v544
      %v546 = vpop.f32.mrf.mxu0
      %v547 = vadd.f32 0.0, %v546
      %548 = vmatmul.bf16.gmra.mxu0 %v398
      %v549 = vpop.f32.mrf.mxu0
      %v550 = vadd.f32 0.0, %v549
      %v551 = vpop.f32.mrf.mxu0
      %v552 = vadd.f32 0.0, %v551
      %553 = vmatmul.bf16.gmra.mxu0 %v400
      %v554 = vpop.f32.mrf.mxu0
      %v555 = vadd.f32 0.0, %v554
      %v556 = vpop.f32.mrf.mxu0
      %v557 = vadd.f32 0.0, %v556
      %558 = vmatmul.bf16.gmra.mxu0 %v402
      %v559 = vpop.f32.mrf.mxu0
      %v560 = vadd.f32 0.0, %v559
      %v561 = vpop.f32.mrf.mxu0
      %v562 = vadd.f32 0.0, %v561
      %563 = vmatmul.bf16.gmra.mxu0 %v404
      %v564 = vpop.f32.mrf.mxu0
      %v565 = vadd.f32 0.0, %v564
      %v566 = vpop.f32.mrf.mxu0
      %v567 = vadd.f32 0.0, %v566
      %568 = vmatmul.bf16.gmra.mxu0 %v406
      %v569 = vpop.f32.mrf.mxu0
      %v570 = vadd.f32 0.0, %v569
      %v571 = vpop.f32.mrf.mxu0
      %v572 = vadd.f32 0.0, %v571
      %573 = vmatmul.bf16.gmra.mxu0 %v408
      %v574 = vpop.f32.mrf.mxu0
      %v575 = vadd.f32 0.0, %v574
      %v576 = vpop.f32.mrf.mxu0
      %v577 = vadd.f32 0.0, %v576
      %578 = vmatmul.bf16.gmra.mxu0 %v410
      %v579 = vpop.f32.mrf.mxu0
      %v580 = vadd.f32 0.0, %v579
      %v581 = vpop.f32.mrf.mxu0
      %v582 = vadd.f32 0.0, %v581
      %583 = vmatmul.bf16.gmra.mxu0 %v412
      %v584 = vpop.f32.mrf.mxu0
      %v585 = vadd.f32 0.0, %v584
      %v586 = vpop.f32.mrf.mxu0
      %v587 = vadd.f32 0.0, %v586
      %588 = vmatmul.bf16.gmra.mxu0 %v414
      %v589 = vpop.f32.mrf.mxu0
      %v590 = vadd.f32 0.0, %v589
      %v591 = vpop.f32.mrf.mxu0
      %v592 = vadd.f32 0.0, %v591
      %593 = vmatmul.bf16.gmra.mxu0 %v416
      %v594 = vpop.f32.mrf.mxu0
      %v595 = vadd.f32 0.0, %v594
      %v596 = vpop.f32.mrf.mxu0
      %v597 = vadd.f32 0.0, %v596
      %598 = vdwg.mxu0
      %599 = vmatpush.bf16.msra.mxu0 0
      %600 = vmatpush.bf16.msra.mxu0 0
      %601 = vmatpush.bf16.msra.mxu0 0
      %602 = vmatpush.bf16.msra.mxu0 0
      %603 = vmatpush.bf16.msra.mxu0 0
      %604 = vmatpush.bf16.msra.mxu0 0
      %605 = vmatpush.bf16.msra.mxu0 0
      %606 = vmatpush.bf16.msra.mxu0 %v475
      %607 = vmatmul.bf16.gmra.mxu0 %v487
      %v608 = vpop.f32.mrf.mxu0
      %v609 = vadd.f32 %v535, %v608
      %v610 = vpop.f32.mrf.mxu0
      %v611 = vadd.f32 %v537, %v610
      %612 = vmatmul.bf16.gmra.mxu0 %v490
      %v613 = vpop.f32.mrf.mxu0
      %v614 = vadd.f32 %v540, %v613
      %v615 = vpop.f32.mrf.mxu0
      %v616 = vadd.f32 %v542, %v615
      %617 = vmatmul.bf16.gmra.mxu0 %v493
      %v618 = vpop.f32.mrf.mxu0
      %v619 = vadd.f32 %v545, %v618
      %v620 = vpop.f32.mrf.mxu0
      %v621 = vadd.f32 %v547, %v620
      %622 = vmatmul.bf16.gmra.mxu0 %v496
      %v623 = vpop.f32.mrf.mxu0
      %v624 = vadd.f32 %v550, %v623
      %v625 = vpop.f32.mrf.mxu0
      %v626 = vadd.f32 %v552, %v625
      %627 = vmatmul.bf16.gmra.mxu0 %v499
      %v628 = vpop.f32.mrf.mxu0
      %v629 = vadd.f32 %v555, %v628
      %v630 = vpop.f32.mrf.mxu0
      %v631 = vadd.f32 %v557, %v630
      %632 = vmatmul.bf16.gmra.mxu0 %v502
      %v633 = vpop.f32.mrf.mxu0
      %v634 = vadd.f32 %v560, %v633
      %v635 = vpop.f32.mrf.mxu0
      %v636 = vadd.f32 %v562, %v635
      %637 = vmatmul.bf16.gmra.mxu0 %v505
      %v638 = vpop.f32.mrf.mxu0
      %v639 = vadd.f32 %v565, %v638
      %v640 = vpop.f32.mrf.mxu0
      %v641 = vadd.f32 %v567, %v640
      %642 = vmatmul.bf16.gmra.mxu0 %v508
      %v643 = vpop.f32.mrf.mxu0
      %v644 = vadd.f32 %v570, %v643
      %v645 = vpop.f32.mrf.mxu0
      %v646 = vadd.f32 %v572, %v645
      %647 = vmatmul.bf16.gmra.mxu0 %v511
      %v648 = vpop.f32.mrf.mxu0
      %v649 = vadd.f32 %v575, %v648
      %v650 = vpop.f32.mrf.mxu0
      %v651 = vadd.f32 %v577, %v650
      %652 = vmatmul.bf16.gmra.mxu0 %v514
      %v653 = vpop.f32.mrf.mxu0
      %v654 = vadd.f32 %v580, %v653
      %v655 = vpop.f32.mrf.mxu0
      %v656 = vadd.f32 %v582, %v655
      %657 = vmatmul.bf16.gmra.mxu0 %v517
      %v658 = vpop.f32.mrf.mxu0
      %v659 = vadd.f32 %v585, %v658
      %v660 = vpop.f32.mrf.mxu0
      %v661 = vadd.f32 %v587, %v660
      %662 = vmatmul.bf16.gmra.mxu0 %v520
      %v663 = vpop.f32.mrf.mxu0
      %v664 = vadd.f32 %v590, %v663
      %v665 = vpop.f32.mrf.mxu0
      %v666 = vadd.f32 %v592, %v665
      %667 = vmatmul.bf16.gmra.mxu0 %v523
      %v668 = vpop.f32.mrf.mxu0
      %v669 = vadd.f32 %v595, %v668
      %v670 = vpop.f32.mrf.mxu0
      %v671 = vadd.f32 %v597, %v670
      %672 = vdwg.mxu0
      %v673 = vld [vmem:[%s256] sm:$0x1]
      %v675 = vperm.slane %v673, 0
      %v677 = vmul.f32 %v609, %v675
      %v678 = vmul.f32 %v611, %v675
      %v679 = vmul.f32 %v614, %v675
      %v680 = vmul.f32 %v616, %v675
      %v681 = vmul.f32 %v619, %v675
      %v682 = vmul.f32 %v621, %v675
      %v683 = vmul.f32 %v624, %v675
      %v684 = vmul.f32 %v626, %v675
      %v685 = vmul.f32 %v629, %v675
      %v686 = vmul.f32 %v631, %v675
      %v687 = vmul.f32 %v634, %v675
      %v688 = vmul.f32 %v636, %v675
      %v689 = vmul.f32 %v639, %v675
      %v690 = vmul.f32 %v641, %v675
      %v691 = vmul.f32 %v644, %v675
      %v692 = vmul.f32 %v646, %v675
      %v693 = vmul.f32 %v649, %v675
      %v694 = vmul.f32 %v651, %v675
      %v695 = vmul.f32 %v654, %v675
      %v696 = vmul.f32 %v656, %v675
      %v697 = vmul.f32 %v659, %v675
      %v698 = vmul.f32 %v661, %v675
      %v699 = vmul.f32 %v664, %v675
      %v700 = vmul.f32 %v666, %v675
      %v701 = vmul.f32 %v669, %v675
      %v702 = vmul.f32 %v671, %v675
      %v703 = vld [vmem:[%s259] sm:$0x1]
      %v705 = vperm.slane %v703, 0
      %v707 = vadd.f32 %v677, %v705
      %v708 = vadd.f32 %v678, %v705
      %v709 = vadd.f32 %v679, %v705
      %v710 = vadd.f32 %v680, %v705
      %v711 = vadd.f32 %v681, %v705
      %v712 = vadd.f32 %v682, %v705
      %v713 = vadd.f32 %v683, %v705
      %v714 = vadd.f32 %v684, %v705
      %v715 = vadd.f32 %v685, %v705
      %v716 = vadd.f32 %v686, %v705
      %v717 = vadd.f32 %v687, %v705
      %v718 = vadd.f32 %v688, %v705
      %v719 = vadd.f32 %v689, %v705
      %v720 = vadd.f32 %v690, %v705
      %v721 = vadd.f32 %v691, %v705
      %v722 = vadd.f32 %v692, %v705
      %v723 = vadd.f32 %v693, %v705
      %v724 = vadd.f32 %v694, %v705
      %v725 = vadd.f32 %v695, %v705
      %v726 = vadd.f32 %v696, %v705
      %v727 = vadd.f32 %v697, %v705
      %v728 = vadd.f32 %v698, %v705
      %v729 = vadd.f32 %v699, %v705
      %v730 = vadd.f32 %v700, %v705
      %v731 = vadd.f32 %v701, %v705
      %v732 = vadd.f32 %v702, %v705
      %v733 = vmax.f32 %v707, 0.0
      %v734 = vmax.f32 %v708, 0.0
      %v735 = vmax.f32 %v709, 0.0
      %v736 = vmax.f32 %v710, 0.0
      %v737 = vmax.f32 %v711, 0.0
      %v738 = vmax.f32 %v712, 0.0
      %v739 = vmax.f32 %v713, 0.0
      %v740 = vmax.f32 %v714, 0.0
      %v741 = vmax.f32 %v715, 0.0
      %v742 = vmax.f32 %v716, 0.0
      %v743 = vmax.f32 %v717, 0.0
      %v744 = vmax.f32 %v718, 0.0
      %v745 = vmax.f32 %v719, 0.0
      %v746 = vmax.f32 %v720, 0.0
      %v747 = vmax.f32 %v721, 0.0
      %v748 = vmax.f32 %v722, 0.0
      %v749 = vmax.f32 %v723, 0.0
      %v750 = vmax.f32 %v724, 0.0
      %v751 = vmax.f32 %v725, 0.0
      %v752 = vmax.f32 %v726, 0.0
      %v753 = vmax.f32 %v727, 0.0
      %v754 = vmax.f32 %v728, 0.0
      %v755 = vmax.f32 %v729, 0.0
      %v756 = vmax.f32 %v730, 0.0
      %v757 = vmax.f32 %v731, 0.0
      %v758 = vmax.f32 %v732, 0.0
      %v759 = vpack.c.bf16 %v733, %v733
      %v760 = vpack.c.bf16 %v734, %v734
      %v761 = vpack.c.bf16 %v735, %v735
      %v762 = vpack.c.bf16 %v736, %v736
      %v763 = vpack.c.bf16 %v737, %v737
      %v764 = vpack.c.bf16 %v738, %v738
      %v765 = vpack.c.bf16 %v739, %v739
      %v766 = vpack.c.bf16 %v740, %v740
      %v767 = vpack.c.bf16 %v741, %v741
      %v768 = vpack.c.bf16 %v742, %v742
      %v769 = vpack.c.bf16 %v743, %v743
      %v770 = vpack.c.bf16 %v744, %v744
      %v771 = vpack.c.bf16 %v745, %v745
      %v772 = vpack.c.bf16 %v746, %v746
      %v773 = vpack.c.bf16 %v747, %v747
      %v774 = vpack.c.bf16 %v748, %v748
      %v775 = vpack.c.bf16 %v749, %v749
      %v776 = vpack.c.bf16 %v750, %v750
      %v777 = vpack.c.bf16 %v751, %v751
      %v778 = vpack.c.bf16 %v752, %v752
      %v779 = vpack.c.bf16 %v753, %v753
      %v780 = vpack.c.bf16 %v754, %v754
      %v781 = vpack.c.bf16 %v755, %v755
      %v782 = vpack.c.bf16 %v756, %v756
      %v783 = vpack.c.bf16 %v757, %v757
      %v784 = vpack.c.bf16 %v758, %v758
      %vm785 = vcmask 257024
      %786 = vst.msk [vmem:[%s267] sm:$0xf] %vm785, %v759
      %787 = vst.msk [vmem:[%s267 + $0x4] sm:$0xf] %vm785, %v760
      %788 = vst.msk [vmem:[%s267 + $0x8] sm:$0xf] %vm785, %v761
      %789 = vst.msk [vmem:[%s267 + $0xc] sm:$0xf] %vm785, %v762
      %790 = vst.msk [vmem:[%s267 + $0x10] sm:$0xf] %vm785, %v763
      %791 = vst.msk [vmem:[%s267 + $0x14] sm:$0xf] %vm785, %v764
      %792 = vst.msk [vmem:[%s267 + $0x18] sm:$0xf] %vm785, %v765
      %793 = vst.msk [vmem:[%s267 + $0x1c] sm:$0xf] %vm785, %v766
      %794 = vst.msk [vmem:[%s267 + $0x20] sm:$0xf] %vm785, %v767
      %795 = vst.msk [vmem:[%s267 + $0x24] sm:$0xf] %vm785, %v768
      %796 = vst.msk [vmem:[%s267 + $0x28] sm:$0xf] %vm785, %v769
      %797 = vst.msk [vmem:[%s267 + $0x2c] sm:$0xf] %vm785, %v770
      %798 = vst.msk [vmem:[%s267 + $0x30] sm:$0xf] %vm785, %v771
      %799 = vst.msk [vmem:[%s267 + $0x34] sm:$0xf] %vm785, %v772
      %800 = vst.msk [vmem:[%s267 + $0x38] sm:$0xf] %vm785, %v773
      %801 = vst.msk [vmem:[%s267 + $0x3c] sm:$0xf] %vm785, %v774
      %802 = vst.msk [vmem:[%s267 + $0x40] sm:$0xf] %vm785, %v775
      %803 = vst.msk [vmem:[%s267 + $0x44] sm:$0xf] %vm785, %v776
      %804 = vst.msk [vmem:[%s267 + $0x48] sm:$0xf] %vm785, %v777
      %805 = vst.msk [vmem:[%s267 + $0x4c] sm:$0xf] %vm785, %v778
      %806 = vst.msk [vmem:[%s267 + $0x50] sm:$0xf] %vm785, %v779
      %807 = vst.msk [vmem:[%s267 + $0x54] sm:$0xf] %vm785, %v780
      %808 = vst.msk [vmem:[%s267 + $0x58] sm:$0xf] %vm785, %v781
      %809 = vst.msk [vmem:[%s267 + $0x5c] sm:$0xf] %vm785, %v782
      %810 = vst.msk [vmem:[%s267 + $0x60] sm:$0xf] %vm785, %v783
      %811 = vst.msk [vmem:[%s267 + $0x64] sm:$0xf] %vm785, %v784
      %s812 = smul.u32 26, %s19
      %p813 = scmp.lt.s32.totalorder %s812, 51
      %s814 = scalar_select %p813, %s812, 51
      %p815 = scmp.lt.s32.totalorder %s20, 0
      %s816 = scalar_select %p815, %s20, 0
      %s817 = sadd.s32 %s816, %s814
      %s818 = smul.addr %s817, 4
      %s819 = scalar_lea.vmem %s4, %s818
      // Predicated region
      $region37: #{_lambda_.6} parent=35 // pred_check
        %p820 = pneg %p151
      $region38: #{_lambda_.6} parent=35 // pred_check_branch
        %822 = sbr.rel (%p820) target = $region40
      $region39: #{_lambda_.6} parent=35 // pred_region
        %s823 = smul.u32 26, %s19
      $region40: #{_lambda_.6} parent=35 // pred_fallthru
        _
    $region36: #{_lambda_.6} parent=5 // pred_fallthru
      _
    %p824 = scmp.le.s32.totalorder 2, %s10
    // Predicated region
    $region41: #{_lambda_.6} parent=5 // pred_check
      %p825 = pneg %p824
    $region42: #{_lambda_.6} parent=5 // pred_check_branch
      %827 = sbr.rel (%p825) target = $region44
    $region43: #{_lambda_.6} parent=5 // pred_region
      %s828 = ssub.s32 %s10, 2
      // Predicated region
      $region45: #{_lambda_.6} parent=43 // pred_check
        %p829 = pneg %p157
      $region46: #{_lambda_.6} parent=43 // pred_check_branch
        %831 = sbr.rel (%p829) target = $region48
      $region47: #{_lambda_.6} parent=43 // pred_region
        %s832 = smul.u32 26, %s21
        %p833 = scmp.lt.s32.totalorder %s832, 51
        %s834 = scalar_select %p833, %s832, 51
        %p835 = scmp.lt.s32.totalorder %s22, 0
        %s836 = scalar_select %p835, %s22, 0
        %s837 = sadd.s32 %s836, %s834
        %s838 = smul.addr %s837, 4
        %s839 = scalar_lea.vmem %s4, %s838
      $region48: #{_lambda_.6} parent=43 // pred_fallthru
        _
    $region44: #{_lambda_.6} parent=5 // pred_fallthru
      _
  $region6: #{_lambda_.6} parent=0 // loop_footer
    %s14 = sadd.s32 1, %s10
  $region7: #{_lambda_.6} parent=0 // loop_footer_branch
    %9 = sbr.rel target = $region3
  $region8: #{_lambda_.6} parent=0 // loop_exit
    _

// kernel: _lambda_.7
$region0: #{_lambda_.7}
  #allocation0 [shape = 'u32[]', space=smem, size = 0x4, offset = 0x4, fixed_abs, tag = 'smem constant byte address 0x4 - core index']
  #allocation1 [shape = 'u32[72,128]{1,0:T(1,128)}', space=vmem, size = 0x9000, scoped, tag = 'internal scratch']
  %s0 = inlined_call_operand.vmem [shape: bf16[128,800], index: 0, kind: input, shape index: {}]
  %s1 = inlined_call_operand.vmem [shape: bf16[800,64], index: 1, kind: input, shape index: {}]
  %s2 = inlined_call_operand.vmem [shape: f32[1,64], index: 2, kind: input, shape index: {}]
  %s3 = inlined_call_operand.vmem [shape: f32[1,64], index: 3, kind: input, shape index: {}]
  %s4 = inlined_call_operand.vmem [shape: bf16[128,64], index: 4, kind: output, shape index: {}]
  %s5 = sld [smem:[#allocation0]]
  $region49: #{_lambda_.7} parent=0
    _
  %s7 = ssub.s32 1, %s5
  %s8 = scalar_select 0, %s7, %s5
  loop: start=0, step=1, limit=4
  $region2: #{_lambda_.7} parent=0 // loop_pre_header
    _
  $region3: #{_lambda_.7} parent=0 // loop_header
    %s10 = sphi 0, %s14
    %p11 = scmp.ge.s32.totalorder %s10, 4
    %s17 = sphi 0, %s29
    %s18 = sphi 0, %s25
    %s19 = sphi 0, %s17
    %s20 = sphi 0, %s18
    %s21 = sphi 0, %s19
    %s22 = sphi 0, %s20
    %s32 = sphi 0, %s34
    %s35 = sphi 0, %s32
    %s36 = sphi 0, %s35
    %s52 = sphi 0, %s36
    %s58 = sphi 0, %s60
    %s61 = sphi 0, %s58
    %s62 = sphi 0, %s61
    %s78 = sphi 0, %s62
    %s84 = sphi 0, %s86
    %s87 = sphi 0, %s84
    %s88 = sphi 0, %s87
    %s104 = sphi 0, %s88
    %s110 = sphi 0, %s112
    %s113 = sphi 0, %s110
    %s114 = sphi 0, %s113
    %s130 = sphi 0, %s114
    %s138 = sphi 0, %s140
    %s141 = sphi 0, %s138
    %s142 = sphi 0, %s141
    %s158 = sphi 0, %s142
  $region4: #{_lambda_.7} parent=0 // loop_header_branch
    %13 = sbr.rel (%p11) target = $region8
  $region5: #{_lambda_.7} parent=0 // loop_body
    %s15 = ssub.s32 %s10, 1
    %s16 = ssub.s32 %s10, 2
    %s23 = sadd.s32 1, %s18
    %p24 = scmp.ge.s32.totalorder %s23, 1
    %s25 = scalar_select %p24, 0, %s23
    %s26 = sadd.s32 1, %s17
    %s27 = scalar_select %p24, %s26, %s17
    %p28 = scmp.ge.s32.totalorder %s27, 2
    %s29 = scalar_select %p28, 0, %s27
    %s30 = ssub.s32 %s17, %s29
    %p31 = scmp.eq.s32.totalorder %s30, 0
    %s33 = sadd.s32 %s32, 1
    %s34 = scalar_select %p31, %s32, %s33
    %p37 = pneg %p31
    %p38 = scmp.eq.s32.totalorder %s10, 1
    %p39 = por %p37, %p38
    %p40 = scmp.ne.s32.totalorder %s32, %s35
    %p41 = scmp.eq.s32.totalorder %s10, 0
    %p42 = por %p40, %p41
    %p43 = scmp.ne.s32.totalorder %s32, %s35
    %p44 = scmp.eq.s32.totalorder %s15, 1
    %p45 = por %p43, %p44
    %p46 = scmp.ne.s32.totalorder %s35, %s36
    %p47 = scmp.eq.s32.totalorder %s15, 0
    %p48 = por %p46, %p47
    %p49 = scmp.ne.s32.totalorder %s35, %s36
    %p50 = scmp.eq.s32.totalorder %s16, 1
    %p51 = por %p49, %p50
    %p53 = scmp.ne.s32.totalorder %s36, %s52
    %p54 = scmp.eq.s32.totalorder %s16, 0
    %p55 = por %p53, %p54
    %s56 = ssub.s32 %s18, %s25
    %p57 = scmp.eq.s32.totalorder %s56, 0
    %s59 = sadd.s32 %s58, 1
    %s60 = scalar_select %p57, %s58, %s59
    %p63 = pneg %p57
    %p64 = scmp.eq.s32.totalorder %s10, 1
    %p65 = por %p63, %p64
    %p66 = scmp.ne.s32.totalorder %s58, %s61
    %p67 = scmp.eq.s32.totalorder %s10, 0
    %p68 = por %p66, %p67
    %p69 = scmp.ne.s32.totalorder %s58, %s61
    %p70 = scmp.eq.s32.totalorder %s15, 1
    %p71 = por %p69, %p70
    %p72 = scmp.ne.s32.totalorder %s61, %s62
    %p73 = scmp.eq.s32.totalorder %s15, 0
    %p74 = por %p72, %p73
    %p75 = scmp.ne.s32.totalorder %s61, %s62
    %p76 = scmp.eq.s32.totalorder %s16, 1
    %p77 = por %p75, %p76
    %p79 = scmp.ne.s32.totalorder %s62, %s78
    %p80 = scmp.eq.s32.totalorder %s16, 0
    %p81 = por %p79, %p80
    %s82 = ssub.s32 %s18, %s25
    %p83 = scmp.eq.s32.totalorder %s82, 0
    %s85 = sadd.s32 %s84, 1
    %s86 = scalar_select %p83, %s84, %s85
    %p89 = pneg %p83
    %p90 = scmp.eq.s32.totalorder %s10, 1
    %p91 = por %p89, %p90
    %p92 = scmp.ne.s32.totalorder %s84, %s87
    %p93 = scmp.eq.s32.totalorder %s10, 0
    %p94 = por %p92, %p93
    %p95 = scmp.ne.s32.totalorder %s84, %s87
    %p96 = scmp.eq.s32.totalorder %s15, 1
    %p97 = por %p95, %p96
    %p98 = scmp.ne.s32.totalorder %s87, %s88
    %p99 = scmp.eq.s32.totalorder %s15, 0
    %p100 = por %p98, %p99
    %p101 = scmp.ne.s32.totalorder %s87, %s88
    %p102 = scmp.eq.s32.totalorder %s16, 1
    %p103 = por %p101, %p102
    %p105 = scmp.ne.s32.totalorder %s88, %s104
    %p106 = scmp.eq.s32.totalorder %s16, 0
    %p107 = por %p105, %p106
    %s108 = ssub.s32 %s18, %s25
    %p109 = scmp.eq.s32.totalorder %s108, 0
    %s111 = sadd.s32 %s110, 1
    %s112 = scalar_select %p109, %s110, %s111
    %p115 = pneg %p109
    %p116 = scmp.eq.s32.totalorder %s10, 1
    %p117 = por %p115, %p116
    %p118 = scmp.ne.s32.totalorder %s110, %s113
    %p119 = scmp.eq.s32.totalorder %s10, 0
    %p120 = por %p118, %p119
    %p121 = scmp.ne.s32.totalorder %s110, %s113
    %p122 = scmp.eq.s32.totalorder %s15, 1
    %p123 = por %p121, %p122
    %p124 = scmp.ne.s32.totalorder %s113, %s114
    %p125 = scmp.eq.s32.totalorder %s15, 0
    %p126 = por %p124, %p125
    %p127 = scmp.ne.s32.totalorder %s113, %s114
    %p128 = scmp.eq.s32.totalorder %s16, 1
    %p129 = por %p127, %p128
    %p131 = scmp.ne.s32.totalorder %s114, %s130
    %p132 = scmp.eq.s32.totalorder %s16, 0
    %p133 = por %p131, %p132
    %s134 = ssub.s32 %s17, %s29
    %s135 = ssub.s32 %s18, %s25
    %s136 = sor.u32 %s134, %s135
    %p137 = scmp.eq.s32.totalorder %s136, 0
    %s139 = sadd.s32 %s138, 1
    %s140 = scalar_select %p137, %s138, %s139
    %p143 = pneg %p137
    %p144 = scmp.eq.s32.totalorder %s10, 1
    %p145 = por %p143, %p144
    %p146 = scmp.ne.s32.totalorder %s138, %s141
    %p147 = scmp.eq.s32.totalorder %s10, 0
    %p148 = por %p146, %p147
    %p149 = scmp.ne.s32.totalorder %s138, %s141
    %p150 = scmp.eq.s32.totalorder %s15, 1
    %p151 = por %p149, %p150
    %p152 = scmp.ne.s32.totalorder %s141, %s142
    %p153 = scmp.eq.s32.totalorder %s15, 0
    %p154 = por %p152, %p153
    %p155 = scmp.ne.s32.totalorder %s141, %s142
    %p156 = scmp.eq.s32.totalorder %s16, 1
    %p157 = por %p155, %p156
    %p159 = scmp.ne.s32.totalorder %s142, %s158
    %p160 = scmp.eq.s32.totalorder %s16, 0
    %p161 = por %p159, %p160
    %p162 = scmp.le.s32.totalorder 1, %s10
    %p163 = scmp.lt.s32.totalorder %s10, 3
    %p164 = pnand %p162, %p163
    %p165 = pneg %p164
    // Predicated region
    $region9: #{_lambda_.7} parent=5 // pred_check
      _
    $region10: #{_lambda_.7} parent=5 // pred_check_branch
      %167 = sbr.rel (%p164) target = $region12
    $region11: #{_lambda_.7} parent=5 // pred_region
      %s168 = ssub.s32 %s10, 1
      // Predicated region
      $region13: #{_lambda_.7} parent=11 // pred_check
        %p169 = pneg %p74
      $region14: #{_lambda_.7} parent=11 // pred_check_branch
        %171 = sbr.rel (%p169) target = $region16
      $region15: #{_lambda_.7} parent=11 // pred_region
        %p172 = scmp.lt.s32.totalorder %s20, 0
        %s173 = scalar_select %p172, %s20, 0
        %s174 = smul.addr %s173, 4
        %s175 = scalar_lea.vmem %s1, %s174
      $region16: #{_lambda_.7} parent=11 // pred_fallthru
        _
      // Predicated region
      $region17: #{_lambda_.7} parent=11 // pred_check
        %p176 = pneg %p100
      $region18: #{_lambda_.7} parent=11 // pred_check_branch
        %178 = sbr.rel (%p176) target = $region20
      $region19: #{_lambda_.7} parent=11 // pred_region
        %p179 = scmp.lt.s32.totalorder %s20, 0
        %s180 = scalar_select %p179, %s20, 0
        %s181 = scalar_lea.vmem %s2, %s180
      $region20: #{_lambda_.7} parent=11 // pred_fallthru
        _
      // Predicated region
      $region21: #{_lambda_.7} parent=11 // pred_check
        %p182 = pneg %p126
      $region22: #{_lambda_.7} parent=11 // pred_check_branch
        %184 = sbr.rel (%p182) target = $region24
      $region23: #{_lambda_.7} parent=11 // pred_region
        %p185 = scmp.lt.s32.totalorder %s20, 0
        %s186 = scalar_select %p185, %s20, 0
        %s187 = scalar_lea.vmem %s3, %s186
      $region24: #{_lambda_.7} parent=11 // pred_fallthru
        _
    $region12: #{_lambda_.7} parent=5 // pred_fallthru
      _
    %p188 = scmp.lt.s32.totalorder %s10, 2
    // Predicated region
    $region25: #{_lambda_.7} parent=5 // pred_check
      %p189 = pneg %p188
    $region26: #{_lambda_.7} parent=5 // pred_check_branch
      %191 = sbr.rel (%p189) target = $region28
    $region27: #{_lambda_.7} parent=5 // pred_region
      // Predicated region
      $region29: #{_lambda_.7} parent=27 // pred_check
        %p192 = pneg %p42
      $region30: #{_lambda_.7} parent=27 // pred_check_branch
        %194 = sbr.rel (%p192) target = $region32
      $region31: #{_lambda_.7} parent=27 // pred_region
        %s195 = smul.u32 8, %s17
        %p196 = scmp.lt.s32.totalorder %s195, 15
        %s197 = scalar_select %p196, %s195, 15
        %s198 = smul.addr %s197, 7
        %s199 = smul.addr %s198, 4
        %s200 = scalar_lea.vmem %s0, %s199
        %s201 = smul.u32 8, %s17
      $region32: #{_lambda_.7} parent=27 // pred_fallthru
        _
    $region28: #{_lambda_.7} parent=5 // pred_fallthru
      _
    %p202 = scmp.le.s32.totalorder 1, %s10
    %p203 = scmp.lt.s32.totalorder %s10, 3
    %p204 = pnand %p202, %p203
    %p205 = pneg %p204
    // Predicated region
    $region33: #{_lambda_.7} parent=5 // pred_check
      _
    $region34: #{_lambda_.7} parent=5 // pred_check_branch
      %207 = sbr.rel (%p204) target = $region36
    $region35: #{_lambda_.7} parent=5 // pred_region
      %s208 = ssub.s32 %s10, 1
      %s209 = smul.u32 8, %s19
      %p210 = scmp.lt.s32.totalorder %s209, 15
      %s211 = scalar_select %p210, %s209, 15
      %s212 = smul.addr %s211, 7
      %s213 = smul.addr %s212, 4
      %s214 = scalar_lea.vmem %s0, %s213
      %p215 = pneg %p48
      %p216 = pneg %p45
      %p217 = scmp.lt.s32.totalorder %s20, 0
      %s218 = scalar_select %p217, %s20, 0
      %s219 = smul.addr %s218, 4
      %s220 = scalar_lea.vmem %s1, %s219
      %p221 = pneg %p74
      %p222 = pneg %p71
      %p223 = scmp.lt.s32.totalorder %s20, 0
      %s224 = scalar_select %p223, %s20, 0
      %s225 = scalar_lea.vmem %s2, %s224
      %p226 = pneg %p100
      %p227 = pneg %p97
      %p228 = scmp.lt.s32.totalorder %s20, 0
      %s229 = scalar_select %p228, %s20, 0
      %s230 = scalar_lea.vmem %s3, %s229
      %p231 = pneg %p126
      %p232 = pneg %p123
      %p233 = pneg %p154
      %p234 = pneg %p151
      %s235 = smul.u32 8, %s19
      %p236 = scmp.lt.s32.totalorder %s235, 15
      %s237 = scalar_select %p236, %s235, 15
      %p238 = scmp.lt.s32.totalorder %s20, 0
      %s239 = scalar_select %p238, %s20, 0
      %s240 = sadd.s32 %s239, %s237
      %s241 = smul.addr %s240, 4
      %s242 = scalar_lea.vmem %s4, %s241
      %s243 = smul.u32 8, %s19
      %p244 = scmp.lt.s32.totalorder %s243, 15
      %s245 = scalar_select %p244, %s243, 15
      %s246 = smul.addr %s245, 7
      %s247 = smul.addr %s246, 4
      %s248 = scalar_lea.vmem %s0, %s247
      %s249 = smul.u32 8, %s19
      %p250 = scmp.lt.s32.totalorder %s20, 0
      %s251 = scalar_select %p250, %s20, 0
      %s252 = smul.addr %s251, 4
      %s253 = scalar_lea.vmem %s1, %s252
      %p254 = scmp.lt.s32.totalorder %s20, 0
      %s255 = scalar_select %p254, %s20, 0
      %s256 = scalar_lea.vmem %s2, %s255
      %p257 = scmp.lt.s32.totalorder %s20, 0
      %s258 = scalar_select %p257, %s20, 0
      %s259 = scalar_lea.vmem %s3, %s258
      %s260 = smul.u32 8, %s19
      %p261 = scmp.lt.s32.totalorder %s260, 15
      %s262 = scalar_select %p261, %s260, 15
      %p263 = scmp.lt.s32.totalorder %s20, 0
      %s264 = scalar_select %p263, %s20, 0
      %s265 = sadd.s32 %s264, %s262
      %s266 = smul.addr %s265, 4
      %s267 = scalar_lea.vmem %s4, %s266
      %s268 = smul.u32 8, %s19
      %v270 = vld [vmem:[%s248] sm:$0xff]
      %v271 = vld [vmem:[%s248 + $0x8] sm:$0xff]
      %v272 = vld [vmem:[%s248 + $0x10] sm:$0xff]
      %v273 = vld [vmem:[%s248 + $0x18] sm:$0xf]
      %v274 = vld [vmem:[%s248 + $0x1c] sm:$0xff]
      %v275 = vld [vmem:[%s248 + $0x24] sm:$0xff]
      %v276 = vld [vmem:[%s248 + $0x2c] sm:$0xff]
      %v277 = vld [vmem:[%s248 + $0x34] sm:$0xf]
      %v278 = vld [vmem:[%s248 + $0x38] sm:$0xff]
      %v279 = vld [vmem:[%s248 + $0x40] sm:$0xff]
      %v280 = vld [vmem:[%s248 + $0x48] sm:$0xff]
      %v281 = vld [vmem:[%s248 + $0x50] sm:$0xf]
      %v282 = vld [vmem:[%s248 + $0x54] sm:$0xff]
      %v283 = vld [vmem:[%s248 + $0x5c] sm:$0xff]
      %v284 = vld [vmem:[%s248 + $0x64] sm:$0xff]
      %v285 = vld [vmem:[%s248 + $0x6c] sm:$0xf]
      %v286 = vld [vmem:[%s248 + $0x70] sm:$0xff]
      %v287 = vld [vmem:[%s248 + $0x78] sm:$0xff]
      %v288 = vld [vmem:[%s248 + $0x80] sm:$0xff]
      %v289 = vld [vmem:[%s248 + $0x88] sm:$0xf]
      %v290 = vld [vmem:[%s248 + $0x8c] sm:$0xff]
      %v291 = vld [vmem:[%s248 + $0x94] sm:$0xff]
      %v292 = vld [vmem:[%s248 + $0x9c] sm:$0xff]
      %v293 = vld [vmem:[%s248 + $0xa4] sm:$0xf]
      %v294 = vld [vmem:[%s248 + $0xa8] sm:$0xff]
      %v295 = vld [vmem:[%s248 + $0xb0] sm:$0xff]
      %v296 = vld [vmem:[%s248 + $0xb8] sm:$0xff]
      %v297 = vld [vmem:[%s248 + $0xc0] sm:$0xf]
      %v298 = vld [vmem:[%s248 + $0xc4] sm:$0xff]
      %v299 = vld [vmem:[%s248 + $0xcc] sm:$0xff]
      %v300 = vld [vmem:[%s248 + $0xd4] sm:$0xff]
      %v301 = vld [vmem:[%s248 + $0xdc] sm:$0xf]
      %v302 = vld [vmem:[%s253] sm:$0xf]
      %v303 = vld [vmem:[%s253 + $0x4] sm:$0xf]
      %v304 = vld [vmem:[%s253 + $0x8] sm:$0xf]
      %v305 = vld [vmem:[%s253 + $0xc] sm:$0xf]
      %v306 = vld [vmem:[%s253 + $0x10] sm:$0xf]
      %v307 = vld [vmem:[%s253 + $0x14] sm:$0xf]
      %v308 = vld [vmem:[%s253 + $0x18] sm:$0xf]
      %v309 = vld [vmem:[%s253 + $0x1c] sm:$0xf]
      %v310 = vld [vmem:[%s253 + $0x20] sm:$0xf]
      %v311 = vld [vmem:[%s253 + $0x24] sm:$0xf]
      %v312 = vld [vmem:[%s253 + $0x28] sm:$0xf]
      %v313 = vld [vmem:[%s253 + $0x2c] sm:$0xf]
      %v314 = vld [vmem:[%s253 + $0x30] sm:$0xf]
      %v315 = vld [vmem:[%s253 + $0x34] sm:$0xf]
      %v316 = vld [vmem:[%s253 + $0x38] sm:$0xf]
      %v317 = vld [vmem:[%s253 + $0x3c] sm:$0xf]
      %v318 = vld [vmem:[%s253 + $0x40] sm:$0xf]
      %v319 = vld [vmem:[%s253 + $0x44] sm:$0xf]
      %v320 = vld [vmem:[%s253 + $0x48] sm:$0xf]
      %v321 = vld [vmem:[%s253 + $0x4c] sm:$0xf]
      %v322 = vld [vmem:[%s253 + $0x50] sm:$0xf]
      %v323 = vld [vmem:[%s253 + $0x54] sm:$0xf]
      %v324 = vld [vmem:[%s253 + $0x58] sm:$0xf]
      %v325 = vld [vmem:[%s253 + $0x5c] sm:$0xf]
      %v326 = vld [vmem:[%s253 + $0x60] sm:$0xf]
      %v327 = vld [vmem:[%s253 + $0x64] sm:$0xf]
      %v328 = vld [vmem:[%s253 + $0x68] sm:$0xf]
      %v329 = vld [vmem:[%s253 + $0x6c] sm:$0xf]
      %v330 = vld [vmem:[%s253 + $0x70] sm:$0xf]
      %v331 = vld [vmem:[%s253 + $0x74] sm:$0xf]
      %v332 = vld [vmem:[%s253 + $0x78] sm:$0xf]
      %v333 = vld [vmem:[%s253 + $0x7c] sm:$0xf]
      %v334 = vld [vmem:[%s253 + $0x80] sm:$0xf]
      %v335 = vld [vmem:[%s253 + $0x84] sm:$0xf]
      %v336 = vld [vmem:[%s253 + $0x88] sm:$0xf]
      %v337 = vld [vmem:[%s253 + $0x8c] sm:$0xf]
      %v338 = vld [vmem:[%s253 + $0x90] sm:$0xf]
      %v339 = vld [vmem:[%s253 + $0x94] sm:$0xf]
      %v340 = vld [vmem:[%s253 + $0x98] sm:$0xf]
      %v341 = vld [vmem:[%s253 + $0x9c] sm:$0xf]
      %v342 = vld [vmem:[%s253 + $0xa0] sm:$0xf]
      %v343 = vld [vmem:[%s253 + $0xa4] sm:$0xf]
      %v344 = vld [vmem:[%s253 + $0xa8] sm:$0xf]
      %v345 = vld [vmem:[%s253 + $0xac] sm:$0xf]
      %v346 = vld [vmem:[%s253 + $0xb0] sm:$0xf]
      %v347 = vld [vmem:[%s253 + $0xb4] sm:$0xf]
      %v348 = vld [vmem:[%s253 + $0xb8] sm:$0xf]
      %v349 = vld [vmem:[%s253 + $0xbc] sm:$0xf]
      %v350 = vld [vmem:[%s253 + $0xc0] sm:$0xf]
      %v351 = vld [vmem:[%s253 + $0xc4] sm:$0xf]
      %v352 = vld [vmem:[%s253 + $0xc8] sm:$0xf]
      %v353 = vld [vmem:[%s253 + $0xcc] sm:$0xf]
      %v354 = vld [vmem:[%s253 + $0xd0] sm:$0xf]
      %v355 = vld [vmem:[%s253 + $0xd4] sm:$0xf]
      %v356 = vld [vmem:[%s253 + $0xd8] sm:$0xf]
      %v357 = vld [vmem:[%s253 + $0xdc] sm:$0xf]
      %v358 = vld [vmem:[%s253 + $0xe0] sm:$0xf]
      %v359 = vld [vmem:[%s253 + $0xe4] sm:$0xf]
      %v360 = vld [vmem:[%s253 + $0xe8] sm:$0xf]
      %v361 = vld [vmem:[%s253 + $0xec] sm:$0xf]
      %v362 = vld [vmem:[%s253 + $0xf0] sm:$0xf]
      %v363 = vld [vmem:[%s253 + $0xf4] sm:$0xf]
      %v364 = vld [vmem:[%s253 + $0xf8] sm:$0xf]
      %v365 = vld [vmem:[%s253 + $0xfc] sm:$0xf]
      %v366 = vld [vmem:[%s253 + $0x100] sm:$0xf]
      %v367 = vld [vmem:[%s253 + $0x104] sm:$0xf]
      %v368 = vld [vmem:[%s253 + $0x108] sm:$0xf]
      %v369 = vld [vmem:[%s253 + $0x10c] sm:$0xf]
      %v370 = vld [vmem:[%s253 + $0x110] sm:$0xf]
      %v371 = vld [vmem:[%s253 + $0x114] sm:$0xf]
      %v372 = vld [vmem:[%s253 + $0x118] sm:$0xf]
      %v373 = vld [vmem:[%s253 + $0x11c] sm:$0xf]
      %v374 = vld [vmem:[%s253 + $0x120] sm:$0xf]
      %v375 = vld [vmem:[%s253 + $0x124] sm:$0xf]
      %v376 = vld [vmem:[%s253 + $0x128] sm:$0xf]
      %v377 = vld [vmem:[%s253 + $0x12c] sm:$0xf]
      %v378 = vld [vmem:[%s253 + $0x130] sm:$0xf]
      %v379 = vld [vmem:[%s253 + $0x134] sm:$0xf]
      %v380 = vld [vmem:[%s253 + $0x138] sm:$0xf]
      %v381 = vld [vmem:[%s253 + $0x13c] sm:$0xf]
      %v382 = vld [vmem:[%s253 + $0x140] sm:$0xf]
      %v383 = vld [vmem:[%s253 + $0x144] sm:$0xf]
      %v384 = vld [vmem:[%s253 + $0x148] sm:$0xf]
      %v385 = vld [vmem:[%s253 + $0x14c] sm:$0xf]
      %v386 = vld [vmem:[%s253 + $0x150] sm:$0xf]
      %v387 = vld [vmem:[%s253 + $0x154] sm:$0xf]
      %v388 = vld [vmem:[%s253 + $0x158] sm:$0xf]
      %v389 = vld [vmem:[%s253 + $0x15c] sm:$0xf]
      %v390 = vld [vmem:[%s253 + $0x160] sm:$0xf]
      %v391 = vld [vmem:[%s253 + $0x164] sm:$0xf]
      %v392 = vld [vmem:[%s253 + $0x168] sm:$0xf]
      %v393 = vld [vmem:[%s253 + $0x16c] sm:$0xf]
      %v394 = vld [vmem:[%s253 + $0x170] sm:$0xf]
      %v395 = vld [vmem:[%s253 + $0x174] sm:$0xf]
      %v396 = vld [vmem:[%s253 + $0x178] sm:$0xf]
      %v397 = vld [vmem:[%s253 + $0x17c] sm:$0xf]
      %v398 = vld [vmem:[%s253 + $0x180] sm:$0xf]
      %v399 = vld [vmem:[%s253 + $0x184] sm:$0xf]
      %v400 = vld [vmem:[%s253 + $0x188] sm:$0xf]
      %v401 = vld [vmem:[%s253 + $0x18c] sm:$0xf]
      %v434 = vunpack.c.l.b16 %v270
      %v435 = vunpack.c.h.b16 %v270
      %v436 = vunpack.c.l.b16 %v271
      %v437 = vunpack.c.h.b16 %v271
      %v438 = vunpack.c.l.b16 %v272
      %v439 = vunpack.c.h.b16 %v272
      %v440 = vunpack.c.l.b16 %v273
      %v441 = vunpack.c.l.b16 %v274
      %v442 = vunpack.c.h.b16 %v274
      %v443 = vunpack.c.l.b16 %v275
      %v444 = vunpack.c.h.b16 %v275
      %v445 = vunpack.c.l.b16 %v276
      %v446 = vunpack.c.h.b16 %v276
      %v447 = vunpack.c.l.b16 %v277
      %v448 = vunpack.c.l.b16 %v278
      %v449 = vunpack.c.h.b16 %v278
      %v450 = vunpack.c.l.b16 %v279
      %v451 = vunpack.c.h.b16 %v279
      %v452 = vunpack.c.l.b16 %v280
      %v453 = vunpack.c.h.b16 %v280
      %v454 = vunpack.c.l.b16 %v281
      %v455 = vunpack.c.l.b16 %v282
      %v456 = vunpack.c.h.b16 %v282
      %v457 = vunpack.c.l.b16 %v283
      %v458 = vunpack.c.h.b16 %v283
      %v459 = vunpack.c.l.b16 %v284
      %v460 = vunpack.c.h.b16 %v284
      %v461 = vunpack.c.l.b16 %v285
      %v462 = vunpack.c.l.b16 %v286
      %v463 = vunpack.c.h.b16 %v286
      %v464 = vunpack.c.l.b16 %v287
      %v465 = vunpack.c.h.b16 %v287
      %v466 = vunpack.c.l.b16 %v288
      %v467 = vunpack.c.h.b16 %v288
      %v468 = vunpack.c.l.b16 %v289
      %v469 = vunpack.c.l.b16 %v290
      %v470 = vunpack.c.h.b16 %v290
      %v471 = vunpack.c.l.b16 %v291
      %v472 = vunpack.c.h.b16 %v291
      %v473 = vunpack.c.l.b16 %v292
      %v474 = vunpack.c.h.b16 %v292
      %v475 = vunpack.c.l.b16 %v293
      %v476 = vunpack.c.l.b16 %v294
      %v477 = vunpack.c.h.b16 %v294
      %v478 = vunpack.c.l.b16 %v295
      %v479 = vunpack.c.h.b16 %v295
      %v480 = vunpack.c.l.b16 %v296
      %v481 = vunpack.c.h.b16 %v296
      %v482 = vunpack.c.l.b16 %v297
      %v483 = vunpack.c.l.b16 %v298
      %v484 = vunpack.c.h.b16 %v298
      %v485 = vunpack.c.l.b16 %v299
      %v486 = vunpack.c.h.b16 %v299
      %v487 = vunpack.c.l.b16 %v300
      %v488 = vunpack.c.h.b16 %v300
      %v489 = vunpack.c.l.b16 %v301
      %v490 = vpack.c.b16 %v441, %v434
      %v491 = vpack.c.b16 %v442, %v435
      %v492 = vpack.c.b16 %v443, %v436
      %v493 = vpack.c.b16 %v444, %v437
      %v494 = vpack.c.b16 %v445, %v438
      %v495 = vpack.c.b16 %v446, %v439
      %v496 = vpack.c.b16 %v447, %v440
      %v497 = vpack.c.b16 %v455, %v448
      %v498 = vpack.c.b16 %v456, %v449
      %v499 = vpack.c.b16 %v457, %v450
      %v500 = vpack.c.b16 %v458, %v451
      %v501 = vpack.c.b16 %v459, %v452
      %v502 = vpack.c.b16 %v460, %v453
      %v503 = vpack.c.b16 %v461, %v454
      %v504 = vpack.c.b16 %v469, %v462
      %v505 = vpack.c.b16 %v470, %v463
      %v506 = vpack.c.b16 %v471, %v464
      %v507 = vpack.c.b16 %v472, %v465
      %v508 = vpack.c.b16 %v473, %v466
      %v509 = vpack.c.b16 %v474, %v467
      %v510 = vpack.c.b16 %v475, %v468
      %v511 = vpack.c.b16 %v483, %v476
      %v512 = vpack.c.b16 %v484, %v477
      %v513 = vpack.c.b16 %v485, %v478
      %v514 = vpack.c.b16 %v486, %v479
      %v515 = vpack.c.b16 %v487, %v480
      %v516 = vpack.c.b16 %v488, %v481
      %v517 = vpack.c.b16 %v489, %v482
      %v642 = vunpack.c.l.b16 %v302
      %v643 = vunpack.c.l.b16 %v303
      %v644 = vunpack.c.l.b16 %v304
      %v645 = vunpack.c.l.b16 %v305
      %v646 = vunpack.c.l.b16 %v306
      %v647 = vunpack.c.l.b16 %v307
      %v648 = vunpack.c.l.b16 %v308
      %v649 = vunpack.c.l.b16 %v309
      %v650 = vunpack.c.l.b16 %v310
      %v651 = vunpack.c.l.b16 %v311
      %v652 = vunpack.c.l.b16 %v312
      %v653 = vunpack.c.l.b16 %v313
      %v654 = vunpack.c.l.b16 %v314
      %v655 = vunpack.c.l.b16 %v315
      %v656 = vunpack.c.l.b16 %v316
      %v657 = vunpack.c.l.b16 %v317
      %v658 = vunpack.c.l.b16 %v318
      %v659 = vunpack.c.l.b16 %v319
      %v660 = vunpack.c.l.b16 %v320
      %v661 = vunpack.c.l.b16 %v321
      %v662 = vunpack.c.l.b16 %v322
      %v663 = vunpack.c.l.b16 %v323
      %v664 = vunpack.c.l.b16 %v324
      %v665 = vunpack.c.l.b16 %v325
      %v666 = vunpack.c.l.b16 %v326
      %v667 = vunpack.c.l.b16 %v327
      %v668 = vunpack.c.l.b16 %v328
      %v669 = vunpack.c.l.b16 %v329
      %v670 = vunpack.c.l.b16 %v330
      %v671 = vunpack.c.l.b16 %v331
      %v672 = vunpack.c.l.b16 %v332
      %v673 = vunpack.c.l.b16 %v333
      %v674 = vunpack.c.l.b16 %v334
      %v675 = vunpack.c.l.b16 %v335
      %v676 = vunpack.c.l.b16 %v336
      %v677 = vunpack.c.l.b16 %v337
      %v678 = vunpack.c.l.b16 %v338
      %v679 = vunpack.c.l.b16 %v339
      %v680 = vunpack.c.l.b16 %v340
      %v681 = vunpack.c.l.b16 %v341
      %v682 = vunpack.c.l.b16 %v342
      %v683 = vunpack.c.l.b16 %v343
      %v684 = vunpack.c.l.b16 %v344
      %v685 = vunpack.c.l.b16 %v345
      %v686 = vunpack.c.l.b16 %v346
      %v687 = vunpack.c.l.b16 %v347
      %v688 = vunpack.c.l.b16 %v348
      %v689 = vunpack.c.l.b16 %v349
      %v690 = vunpack.c.l.b16 %v350
      %v691 = vunpack.c.l.b16 %v351
      %v692 = vunpack.c.l.b16 %v352
      %v693 = vunpack.c.l.b16 %v353
      %v694 = vunpack.c.l.b16 %v354
      %v695 = vunpack.c.l.b16 %v355
      %v696 = vunpack.c.l.b16 %v356
      %v697 = vunpack.c.l.b16 %v357
      %v698 = vunpack.c.l.b16 %v358
      %v699 = vunpack.c.l.b16 %v359
      %v700 = vunpack.c.l.b16 %v360
      %v701 = vunpack.c.l.b16 %v361
      %v702 = vunpack.c.l.b16 %v362
      %v703 = vunpack.c.l.b16 %v363
      %v704 = vunpack.c.l.b16 %v364
      %v705 = vunpack.c.l.b16 %v365
      %v706 = vunpack.c.l.b16 %v366
      %v707 = vunpack.c.l.b16 %v367
      %v708 = vunpack.c.l.b16 %v368
      %v709 = vunpack.c.l.b16 %v369
      %v710 = vunpack.c.l.b16 %v370
      %v711 = vunpack.c.l.b16 %v371
      %v712 = vunpack.c.l.b16 %v372
      %v713 = vunpack.c.l.b16 %v373
      %v714 = vunpack.c.l.b16 %v374
      %v715 = vunpack.c.l.b16 %v375
      %v716 = vunpack.c.l.b16 %v376
      %v717 = vunpack.c.l.b16 %v377
      %v718 = vunpack.c.l.b16 %v378
      %v719 = vunpack.c.l.b16 %v379
      %v720 = vunpack.c.l.b16 %v380
      %v721 = vunpack.c.l.b16 %v381
      %v722 = vunpack.c.l.b16 %v382
      %v723 = vunpack.c.l.b16 %v383
      %v724 = vunpack.c.l.b16 %v384
      %v725 = vunpack.c.l.b16 %v385
      %v726 = vunpack.c.l.b16 %v386
      %v727 = vunpack.c.l.b16 %v387
      %v728 = vunpack.c.l.b16 %v388
      %v729 = vunpack.c.l.b16 %v389
      %v730 = vunpack.c.l.b16 %v390
      %v731 = vunpack.c.l.b16 %v391
      %v732 = vunpack.c.l.b16 %v392
      %v733 = vunpack.c.l.b16 %v393
      %v734 = vunpack.c.l.b16 %v394
      %v735 = vunpack.c.l.b16 %v395
      %v736 = vunpack.c.l.b16 %v396
      %v737 = vunpack.c.l.b16 %v397
      %v738 = vunpack.c.l.b16 %v398
      %v739 = vunpack.c.l.b16 %v399
      %v740 = vunpack.c.l.b16 %v400
      %v741 = vunpack.c.l.b16 %v401
      %v742 = vpack.c.b16 %v643, %v642
      %v743 = vpack.c.b16 %v645, %v644
      %v744 = vpack.c.b16 %v647, %v646
      %v745 = vpack.c.b16 %v649, %v648
      %v746 = vpack.c.b16 %v651, %v650
      %v747 = vpack.c.b16 %v653, %v652
      %v748 = vpack.c.b16 %v655, %v654
      %v749 = vpack.c.b16 %v657, %v656
      %v750 = vpack.c.b16 %v659, %v658
      %v751 = vpack.c.b16 %v661, %v660
      %v752 = vpack.c.b16 %v663, %v662
      %v753 = vpack.c.b16 %v665, %v664
      %v754 = vpack.c.b16 %v667, %v666
      %v755 = vpack.c.b16 %v669, %v668
      %v756 = vpack.c.b16 %v671, %v670
      %v757 = vpack.c.b16 %v673, %v672
      %v758 = vpack.c.b16 %v675, %v674
      %v759 = vpack.c.b16 %v677, %v676
      %v760 = vpack.c.b16 %v679, %v678
      %v761 = vpack.c.b16 %v681, %v680
      %v762 = vpack.c.b16 %v683, %v682
      %v763 = vpack.c.b16 %v685, %v684
      %v764 = vpack.c.b16 %v687, %v686
      %v765 = vpack.c.b16 %v689, %v688
      %v766 = vpack.c.b16 %v691, %v690
      %v767 = vpack.c.b16 %v693, %v692
      %v768 = vpack.c.b16 %v695, %v694
      %v769 = vpack.c.b16 %v697, %v696
      %v770 = vpack.c.b16 %v699, %v698
      %v771 = vpack.c.b16 %v701, %v700
      %v772 = vpack.c.b16 %v703, %v702
      %v773 = vpack.c.b16 %v705, %v704
      %v774 = vpack.c.b16 %v707, %v706
      %v775 = vpack.c.b16 %v709, %v708
      %v776 = vpack.c.b16 %v711, %v710
      %v777 = vpack.c.b16 %v713, %v712
      %v778 = vpack.c.b16 %v715, %v714
      %v779 = vpack.c.b16 %v717, %v716
      %v780 = vpack.c.b16 %v719, %v718
      %v781 = vpack.c.b16 %v721, %v720
      %v782 = vpack.c.b16 %v723, %v722
      %v783 = vpack.c.b16 %v725, %v724
      %v784 = vpack.c.b16 %v727, %v726
      %v785 = vpack.c.b16 %v729, %v728
      %v786 = vpack.c.b16 %v731, %v730
      %v787 = vpack.c.b16 %v733, %v732
      %v788 = vpack.c.b16 %v735, %v734
      %v789 = vpack.c.b16 %v737, %v736
      %v790 = vpack.c.b16 %v739, %v738
      %v791 = vpack.c.b16 %v741, %v740
      %vm842 = vcmask 261120
      %v844 = vsel %vm842, %v496, 0
      %v847 = vsel %vm842, %v503, 0
      %v850 = vsel %vm842, %v510, 0
      %v853 = vsel %vm842, %v517, 0
      %855 = vmatpush.bf16.msra.mxu0 %v749
      %856 = vmatpush.bf16.msra.mxu0 %v748
      %857 = vmatpush.bf16.msra.mxu0 %v747
      %858 = vmatpush.bf16.msra.mxu0 %v746
      %859 = vmatpush.bf16.msra.mxu0 %v745
      %860 = vmatpush.bf16.msra.mxu0 %v744
      %861 = vmatpush.bf16.msra.mxu0 %v743
      %862 = vmatpush.bf16.msra.mxu0 %v742
      %863 = vmatmul.bf16.gmra.mxu0 %v490
      %v864 = vpop.f32.mrf.mxu0
      %v865 = vadd.f32 0.0, %v864
      %v866 = vpop.f32.mrf.mxu0
      %v867 = vadd.f32 0.0, %v866
      %868 = vmatmul.bf16.gmra.mxu0 %v497
      %v869 = vpop.f32.mrf.mxu0
      %v870 = vadd.f32 0.0, %v869
      %v871 = vpop.f32.mrf.mxu0
      %v872 = vadd.f32 0.0, %v871
      %873 = vmatmul.bf16.gmra.mxu0 %v504
      %v874 = vpop.f32.mrf.mxu0
      %v875 = vadd.f32 0.0, %v874
      %v876 = vpop.f32.mrf.mxu0
      %v877 = vadd.f32 0.0, %v876
      %878 = vmatmul.bf16.gmra.mxu0 %v511
      %v879 = vpop.f32.mrf.mxu0
      %v880 = vadd.f32 0.0, %v879
      %v881 = vpop.f32.mrf.mxu0
      %v882 = vadd.f32 0.0, %v881
      %883 = vdwg.mxu0
      %884 = vmatpush.bf16.msra.mxu0 %v757
      %885 = vmatpush.bf16.msra.mxu0 %v756
      %886 = vmatpush.bf16.msra.mxu0 %v755
      %887 = vmatpush.bf16.msra.mxu0 %v754
      %888 = vmatpush.bf16.msra.mxu0 %v753
      %889 = vmatpush.bf16.msra.mxu0 %v752
      %890 = vmatpush.bf16.msra.mxu0 %v751
      %891 = vmatpush.bf16.msra.mxu0 %v750
      %892 = vmatmul.bf16.gmra.mxu0 %v491
      %v893 = vpop.f32.mrf.mxu0
      %v894 = vadd.f32 %v865, %v893
      %v895 = vpop.f32.mrf.mxu0
      %v896 = vadd.f32 %v867, %v895
      %897 = vmatmul.bf16.gmra.mxu0 %v498
      %v898 = vpop.f32.mrf.mxu0
      %v899 = vadd.f32 %v870, %v898
      %v900 = vpop.f32.mrf.mxu0
      %v901 = vadd.f32 %v872, %v900
      %902 = vmatmul.bf16.gmra.mxu0 %v505
      %v903 = vpop.f32.mrf.mxu0
      %v904 = vadd.f32 %v875, %v903
      %v905 = vpop.f32.mrf.mxu0
      %v906 = vadd.f32 %v877, %v905
      %907 = vmatmul.bf16.gmra.mxu0 %v512
      %v908 = vpop.f32.mrf.mxu0
      %v909 = vadd.f32 %v880, %v908
      %v910 = vpop.f32.mrf.mxu0
      %v911 = vadd.f32 %v882, %v910
      %912 = vdwg.mxu0
      %913 = vmatpush.bf16.msra.mxu0 %v765
      %914 = vmatpush.bf16.msra.mxu0 %v764
      %915 = vmatpush.bf16.msra.mxu0 %v763
      %916 = vmatpush.bf16.msra.mxu0 %v762
      %917 = vmatpush.bf16.msra.mxu0 %v761
      %918 = vmatpush.bf16.msra.mxu0 %v760
      %919 = vmatpush.bf16.msra.mxu0 %v759
      %920 = vmatpush.bf16.msra.mxu0 %v758
      %921 = vmatmul.bf16.gmra.mxu0 %v492
      %v922 = vpop.f32.mrf.mxu0
      %v923 = vadd.f32 %v894, %v922
      %v924 = vpop.f32.mrf.mxu0
      %v925 = vadd.f32 %v896, %v924
      %926 = vmatmul.bf16.gmra.mxu0 %v499
      %v927 = vpop.f32.mrf.mxu0
      %v928 = vadd.f32 %v899, %v927
      %v929 = vpop.f32.mrf.mxu0
      %v930 = vadd.f32 %v901, %v929
      %931 = vmatmul.bf16.gmra.mxu0 %v506
      %v932 = vpop.f32.mrf.mxu0
      %v933 = vadd.f32 %v904, %v932
      %v934 = vpop.f32.mrf.mxu0
      %v935 = vadd.f32 %v906, %v934
      %936 = vmatmul.bf16.gmra.mxu0 %v513
      %v937 = vpop.f32.mrf.mxu0
      %v938 = vadd.f32 %v909, %v937
      %v939 = vpop.f32.mrf.mxu0
      %v940 = vadd.f32 %v911, %v939
      %941 = vdwg.mxu0
      %942 = vmatpush.bf16.msra.mxu0 %v773
      %943 = vmatpush.bf16.msra.mxu0 %v772
      %944 = vmatpush.bf16.msra.mxu0 %v771
      %945 = vmatpush.bf16.msra.mxu0 %v770
      %946 = vmatpush.bf16.msra.mxu0 %v769
      %947 = vmatpush.bf16.msra.mxu0 %v768
      %948 = vmatpush.bf16.msra.mxu0 %v767
      %949 = vmatpush.bf16.msra.mxu0 %v766
      %950 = vmatmul.bf16.gmra.mxu0 %v493
      %v951 = vpop.f32.mrf.mxu0
      %v952 = vadd.f32 %v923, %v951
      %v953 = vpop.f32.mrf.mxu0
      %v954 = vadd.f32 %v925, %v953
      %955 = vmatmul.bf16.gmra.mxu0 %v500
      %v956 = vpop.f32.mrf.mxu0
      %v957 = vadd.f32 %v928, %v956
      %v958 = vpop.f32.mrf.mxu0
      %v959 = vadd.f32 %v930, %v958
      %960 = vmatmul.bf16.gmra.mxu0 %v507
      %v961 = vpop.f32.mrf.mxu0
      %v962 = vadd.f32 %v933, %v961
      %v963 = vpop.f32.mrf.mxu0
      %v964 = vadd.f32 %v935, %v963
      %965 = vmatmul.bf16.gmra.mxu0 %v514
      %v966 = vpop.f32.mrf.mxu0
      %v967 = vadd.f32 %v938, %v966
      %v968 = vpop.f32.mrf.mxu0
      %v969 = vadd.f32 %v940, %v968
      %970 = vdwg.mxu0
      %971 = vmatpush.bf16.msra.mxu0 %v781
      %972 = vmatpush.bf16.msra.mxu0 %v780
      %973 = vmatpush.bf16.msra.mxu0 %v779
      %974 = vmatpush.bf16.msra.mxu0 %v778
      %975 = vmatpush.bf16.msra.mxu0 %v777
      %976 = vmatpush.bf16.msra.mxu0 %v776
      %977 = vmatpush.bf16.msra.mxu0 %v775
      %978 = vmatpush.bf16.msra.mxu0 %v774
      %979 = vmatmul.bf16.gmra.mxu0 %v494
      %v980 = vpop.f32.mrf.mxu0
      %v981 = vadd.f32 %v952, %v980
      %v982 = vpop.f32.mrf.mxu0
      %v983 = vadd.f32 %v954, %v982
      %984 = vmatmul.bf16.gmra.mxu0 %v501
      %v985 = vpop.f32.mrf.mxu0
      %v986 = vadd.f32 %v957, %v985
      %v987 = vpop.f32.mrf.mxu0
      %v988 = vadd.f32 %v959, %v987
      %989 = vmatmul.bf16.gmra.mxu0 %v508
      %v990 = vpop.f32.mrf.mxu0
      %v991 = vadd.f32 %v962, %v990
      %v992 = vpop.f32.mrf.mxu0
      %v993 = vadd.f32 %v964, %v992
      %994 = vmatmul.bf16.gmra.mxu0 %v515
      %v995 = vpop.f32.mrf.mxu0
      %v996 = vadd.f32 %v967, %v995
      %v997 = vpop.f32.mrf.mxu0
      %v998 = vadd.f32 %v969, %v997
      %999 = vdwg.mxu0
      %1000 = vmatpush.bf16.msra.mxu0 %v789
      %1001 = vmatpush.bf16.msra.mxu0 %v788
      %1002 = vmatpush.bf16.msra.mxu0 %v787
      %1003 = vmatpush.bf16.msra.mxu0 %v786
      %1004 = vmatpush.bf16.msra.mxu0 %v785
      %1005 = vmatpush.bf16.msra.mxu0 %v784
      %1006 = vmatpush.bf16.msra.mxu0 %v783
      %1007 = vmatpush.bf16.msra.mxu0 %v782
      %1008 = vmatmul.bf16.gmra.mxu0 %v495
      %v1009 = vpop.f32.mrf.mxu0
      %v1010 = vadd.f32 %v981, %v1009
      %v1011 = vpop.f32.mrf.mxu0
      %v1012 = vadd.f32 %v983, %v1011
      %1013 = vmatmul.bf16.gmra.mxu0 %v502
      %v1014 = vpop.f32.mrf.mxu0
      %v1015 = vadd.f32 %v986, %v1014
      %v1016 = vpop.f32.mrf.mxu0
      %v1017 = vadd.f32 %v988, %v1016
      %1018 = vmatmul.bf16.gmra.mxu0 %v509
      %v1019 = vpop.f32.mrf.mxu0
      %v1020 = vadd.f32 %v991, %v1019
      %v1021 = vpop.f32.mrf.mxu0
      %v1022 = vadd.f32 %v993, %v1021
      %1023 = vmatmul.bf16.gmra.mxu0 %v516
      %v1024 = vpop.f32.mrf.mxu0
      %v1025 = vadd.f32 %v996, %v1024
      %v1026 = vpop.f32.mrf.mxu0
      %v1027 = vadd.f32 %v998, %v1026
      %1028 = vdwg.mxu0
      %1029 = vmatpush.bf16.msra.mxu0 0
      %1030 = vmatpush.bf16.msra.mxu0 0
      %1031 = vmatpush.bf16.msra.mxu0 0
      %1032 = vmatpush.bf16.msra.mxu0 0
      %1033 = vmatpush.bf16.msra.mxu0 0
      %1034 = vmatpush.bf16.msra.mxu0 0
      %1035 = vmatpush.bf16.msra.mxu0 %v791
      %1036 = vmatpush.bf16.msra.mxu0 %v790
      %1037 = vmatmul.bf16.gmra.mxu0 %v844
      %v1038 = vpop.f32.mrf.mxu0
      %v1039 = vadd.f32 %v1010, %v1038
      %v1040 = vpop.f32.mrf.mxu0
      %v1041 = vadd.f32 %v1012, %v1040
      %1042 = vmatmul.bf16.gmra.mxu0 %v847
      %v1043 = vpop.f32.mrf.mxu0
      %v1044 = vadd.f32 %v1015, %v1043
      %v1045 = vpop.f32.mrf.mxu0
      %v1046 = vadd.f32 %v1017, %v1045
      %1047 = vmatmul.bf16.gmra.mxu0 %v850
      %v1048 = vpop.f32.mrf.mxu0
      %v1049 = vadd.f32 %v1020, %v1048
      %v1050 = vpop.f32.mrf.mxu0
      %v1051 = vadd.f32 %v1022, %v1050
      %1052 = vmatmul.bf16.gmra.mxu0 %v853
      %v1053 = vpop.f32.mrf.mxu0
      %v1054 = vadd.f32 %v1025, %v1053
      %v1055 = vpop.f32.mrf.mxu0
      %v1056 = vadd.f32 %v1027, %v1055
      %1057 = vdwg.mxu0
      %v1058 = vld [vmem:[%s256] sm:$0x1]
      %v1060 = vperm.slane %v1058, 0
      %v1062 = vmul.f32 %v1039, %v1060
      %v1063 = vmul.f32 %v1041, %v1060
      %v1064 = vmul.f32 %v1044, %v1060
      %v1065 = vmul.f32 %v1046, %v1060
      %v1066 = vmul.f32 %v1049, %v1060
      %v1067 = vmul.f32 %v1051, %v1060
      %v1068 = vmul.f32 %v1054, %v1060
      %v1069 = vmul.f32 %v1056, %v1060
      %v1070 = vld [vmem:[%s259] sm:$0x1]
      %v1072 = vperm.slane %v1070, 0
      %v1074 = vadd.f32 %v1062, %v1072
      %v1075 = vadd.f32 %v1063, %v1072
      %v1076 = vadd.f32 %v1064, %v1072
      %v1077 = vadd.f32 %v1065, %v1072
      %v1078 = vadd.f32 %v1066, %v1072
      %v1079 = vadd.f32 %v1067, %v1072
      %v1080 = vadd.f32 %v1068, %v1072
      %v1081 = vadd.f32 %v1069, %v1072
      %v1082 = vmax.f32 %v1074, 0.0
      %v1083 = vmax.f32 %v1075, 0.0
      %v1084 = vmax.f32 %v1076, 0.0
      %v1085 = vmax.f32 %v1077, 0.0
      %v1086 = vmax.f32 %v1078, 0.0
      %v1087 = vmax.f32 %v1079, 0.0
      %v1088 = vmax.f32 %v1080, 0.0
      %v1089 = vmax.f32 %v1081, 0.0
      %v1090 = vpack.c.bf16 %v1082, %v1082
      %v1091 = vpack.c.bf16 %v1083, %v1083
      %v1092 = vpack.c.bf16 %v1084, %v1084
      %v1093 = vpack.c.bf16 %v1085, %v1085
      %v1094 = vpack.c.bf16 %v1086, %v1086
      %v1095 = vpack.c.bf16 %v1087, %v1087
      %v1096 = vpack.c.bf16 %v1088, %v1088
      %v1097 = vpack.c.bf16 %v1089, %v1089
      %vm1098 = vcmask 519168
      %1099 = vst.msk [vmem:[%s267] sm:$0xf] %vm1098, %v1090
      %1100 = vst.msk [vmem:[%s267 + $0x4] sm:$0xf] %vm1098, %v1091
      %1101 = vst.msk [vmem:[%s267 + $0x8] sm:$0xf] %vm1098, %v1092
      %1102 = vst.msk [vmem:[%s267 + $0xc] sm:$0xf] %vm1098, %v1093
      %1103 = vst.msk [vmem:[%s267 + $0x10] sm:$0xf] %vm1098, %v1094
      %1104 = vst.msk [vmem:[%s267 + $0x14] sm:$0xf] %vm1098, %v1095
      %1105 = vst.msk [vmem:[%s267 + $0x18] sm:$0xf] %vm1098, %v1096
      %1106 = vst.msk [vmem:[%s267 + $0x1c] sm:$0xf] %vm1098, %v1097
      %s1107 = smul.u32 8, %s19
      %p1108 = scmp.lt.s32.totalorder %s1107, 15
      %s1109 = scalar_select %p1108, %s1107, 15
      %p1110 = scmp.lt.s32.totalorder %s20, 0
      %s1111 = scalar_select %p1110, %s20, 0
      %s1112 = sadd.s32 %s1111, %s1109
      %s1113 = smul.addr %s1112, 4
      %s1114 = scalar_lea.vmem %s4, %s1113
      // Predicated region
      $region37: #{_lambda_.7} parent=35 // pred_check
        %p1115 = pneg %p151
      $region38: #{_lambda_.7} parent=35 // pred_check_branch
        %1117 = sbr.rel (%p1115) target = $region40
      $region39: #{_lambda_.7} parent=35 // pred_region
        %s1118 = smul.u32 8, %s19
      $region40: #{_lambda_.7} parent=35 // pred_fallthru
        _
    $region36: #{_lambda_.7} parent=5 // pred_fallthru
      _
    %p1119 = scmp.le.s32.totalorder 2, %s10
    // Predicated region
    $region41: #{_lambda_.7} parent=5 // pred_check
      %p1120 = pneg %p1119
    $region42: #{_lambda_.7} parent=5 // pred_check_branch
      %1122 = sbr.rel (%p1120) target = $region44
    $region43: #{_lambda_.7} parent=5 // pred_region
      %s1123 = ssub.s32 %s10, 2
      // Predicated region
      $region45: #{_lambda_.7} parent=43 // pred_check
        %p1124 = pneg %p157
      $region46: #{_lambda_.7} parent=43 // pred_check_branch
        %1126 = sbr.rel (%p1124) target = $region48
      $region47: #{_lambda_.7} parent=43 // pred_region
        %s1127 = smul.u32 8, %s21
        %p1128 = scmp.lt.s32.totalorder %s1127, 15
        %s1129 = scalar_select %p1128, %s1127, 15
        %p1130 = scmp.lt.s32.totalorder %s22, 0
        %s1131 = scalar_select %p1130, %s22, 0
        %s1132 = sadd.s32 %s1131, %s1129
        %s1133 = smul.addr %s1132, 4
        %s1134 = scalar_lea.vmem %s4, %s1133
      $region48: #{_lambda_.7} parent=43 // pred_fallthru
        _
    $region44: #{_lambda_.7} parent=5 // pred_fallthru
      _
  $region6: #{_lambda_.7} parent=0 // loop_footer
    %s14 = sadd.s32 1, %s10
  $region7: #{_lambda_.7} parent=0 // loop_footer_branch
    %9 = sbr.rel target = $region3
  $region8: #{_lambda_.7} parent=0 // loop_exit
    _

// kernel: _lambda_.8
$region0: #{_lambda_.8}
  #allocation0 [shape = 'u32[]', space=smem, size = 0x4, offset = 0x4, fixed_abs, tag = 'smem constant byte address 0x4 - core index']
  #allocation1 [shape = 'u32[72,128]{1,0:T(1,128)}', space=vmem, size = 0x9000, scoped, tag = 'internal scratch']
  %s0 = inlined_call_operand.vmem [shape: bf16[32,1600], index: 0, kind: input, shape index: {}]
  %s1 = inlined_call_operand.vmem [shape: bf16[1600,128], index: 1, kind: input, shape index: {}]
  %s2 = inlined_call_operand.vmem [shape: f32[1,128], index: 2, kind: input, shape index: {}]
  %s3 = inlined_call_operand.vmem [shape: f32[1,128], index: 3, kind: input, shape index: {}]
  %s4 = inlined_call_operand.vmem [shape: bf16[32,128], index: 4, kind: output, shape index: {}]
  %s5 = sld [smem:[#allocation0]]
  $region49: #{_lambda_.8} parent=0
    _
  %s7 = ssub.s32 1, %s5
  %s8 = scalar_select 0, %s7, %s5
  loop: start=0, step=1, limit=4
  $region2: #{_lambda_.8} parent=0 // loop_pre_header
    _
  $region3: #{_lambda_.8} parent=0 // loop_header
    %s10 = sphi 0, %s14
    %p11 = scmp.ge.s32.totalorder %s10, 4
    %s17 = sphi 0, %s29
    %s18 = sphi 0, %s25
    %s19 = sphi 0, %s17
    %s20 = sphi 0, %s18
    %s21 = sphi 0, %s19
    %s22 = sphi 0, %s20
    %s32 = sphi 0, %s34
    %s35 = sphi 0, %s32
    %s36 = sphi 0, %s35
    %s52 = sphi 0, %s36
    %s58 = sphi 0, %s60
    %s61 = sphi 0, %s58
    %s62 = sphi 0, %s61
    %s78 = sphi 0, %s62
    %s84 = sphi 0, %s86
    %s87 = sphi 0, %s84
    %s88 = sphi 0, %s87
    %s104 = sphi 0, %s88
    %s110 = sphi 0, %s112
    %s113 = sphi 0, %s110
    %s114 = sphi 0, %s113
    %s130 = sphi 0, %s114
    %s138 = sphi 0, %s140
    %s141 = sphi 0, %s138
    %s142 = sphi 0, %s141
    %s158 = sphi 0, %s142
  $region4: #{_lambda_.8} parent=0 // loop_header_branch
    %13 = sbr.rel (%p11) target = $region8
  $region5: #{_lambda_.8} parent=0 // loop_body
    %s15 = ssub.s32 %s10, 1
    %s16 = ssub.s32 %s10, 2
    %s23 = sadd.s32 1, %s18
    %p24 = scmp.ge.s32.totalorder %s23, 1
    %s25 = scalar_select %p24, 0, %s23
    %s26 = sadd.s32 1, %s17
    %s27 = scalar_select %p24, %s26, %s17
    %p28 = scmp.ge.s32.totalorder %s27, 2
    %s29 = scalar_select %p28, 0, %s27
    %s30 = ssub.s32 %s17, %s29
    %p31 = scmp.eq.s32.totalorder %s30, 0
    %s33 = sadd.s32 %s32, 1
    %s34 = scalar_select %p31, %s32, %s33
    %p37 = pneg %p31
    %p38 = scmp.eq.s32.totalorder %s10, 1
    %p39 = por %p37, %p38
    %p40 = scmp.ne.s32.totalorder %s32, %s35
    %p41 = scmp.eq.s32.totalorder %s10, 0
    %p42 = por %p40, %p41
    %p43 = scmp.ne.s32.totalorder %s32, %s35
    %p44 = scmp.eq.s32.totalorder %s15, 1
    %p45 = por %p43, %p44
    %p46 = scmp.ne.s32.totalorder %s35, %s36
    %p47 = scmp.eq.s32.totalorder %s15, 0
    %p48 = por %p46, %p47
    %p49 = scmp.ne.s32.totalorder %s35, %s36
    %p50 = scmp.eq.s32.totalorder %s16, 1
    %p51 = por %p49, %p50
    %p53 = scmp.ne.s32.totalorder %s36, %s52
    %p54 = scmp.eq.s32.totalorder %s16, 0
    %p55 = por %p53, %p54
    %s56 = ssub.s32 %s18, %s25
    %p57 = scmp.eq.s32.totalorder %s56, 0
    %s59 = sadd.s32 %s58, 1
    %s60 = scalar_select %p57, %s58, %s59
    %p63 = pneg %p57
    %p64 = scmp.eq.s32.totalorder %s10, 1
    %p65 = por %p63, %p64
    %p66 = scmp.ne.s32.totalorder %s58, %s61
    %p67 = scmp.eq.s32.totalorder %s10, 0
    %p68 = por %p66, %p67
    %p69 = scmp.ne.s32.totalorder %s58, %s61
    %p70 = scmp.eq.s32.totalorder %s15, 1
    %p71 = por %p69, %p70
    %p72 = scmp.ne.s32.totalorder %s61, %s62
    %p73 = scmp.eq.s32.totalorder %s15, 0
    %p74 = por %p72, %p73
    %p75 = scmp.ne.s32.totalorder %s61, %s62
    %p76 = scmp.eq.s32.totalorder %s16, 1
    %p77 = por %p75, %p76
    %p79 = scmp.ne.s32.totalorder %s62, %s78
    %p80 = scmp.eq.s32.totalorder %s16, 0
    %p81 = por %p79, %p80
    %s82 = ssub.s32 %s18, %s25
    %p83 = scmp.eq.s32.totalorder %s82, 0
    %s85 = sadd.s32 %s84, 1
    %s86 = scalar_select %p83, %s84, %s85
    %p89 = pneg %p83
    %p90 = scmp.eq.s32.totalorder %s10, 1
    %p91 = por %p89, %p90
    %p92 = scmp.ne.s32.totalorder %s84, %s87
    %p93 = scmp.eq.s32.totalorder %s10, 0
    %p94 = por %p92, %p93
    %p95 = scmp.ne.s32.totalorder %s84, %s87
    %p96 = scmp.eq.s32.totalorder %s15, 1
    %p97 = por %p95, %p96
    %p98 = scmp.ne.s32.totalorder %s87, %s88
    %p99 = scmp.eq.s32.totalorder %s15, 0
    %p100 = por %p98, %p99
    %p101 = scmp.ne.s32.totalorder %s87, %s88
    %p102 = scmp.eq.s32.totalorder %s16, 1
    %p103 = por %p101, %p102
    %p105 = scmp.ne.s32.totalorder %s88, %s104
    %p106 = scmp.eq.s32.totalorder %s16, 0
    %p107 = por %p105, %p106
    %s108 = ssub.s32 %s18, %s25
    %p109 = scmp.eq.s32.totalorder %s108, 0
    %s111 = sadd.s32 %s110, 1
    %s112 = scalar_select %p109, %s110, %s111
    %p115 = pneg %p109
    %p116 = scmp.eq.s32.totalorder %s10, 1
    %p117 = por %p115, %p116
    %p118 = scmp.ne.s32.totalorder %s110, %s113
    %p119 = scmp.eq.s32.totalorder %s10, 0
    %p120 = por %p118, %p119
    %p121 = scmp.ne.s32.totalorder %s110, %s113
    %p122 = scmp.eq.s32.totalorder %s15, 1
    %p123 = por %p121, %p122
    %p124 = scmp.ne.s32.totalorder %s113, %s114
    %p125 = scmp.eq.s32.totalorder %s15, 0
    %p126 = por %p124, %p125
    %p127 = scmp.ne.s32.totalorder %s113, %s114
    %p128 = scmp.eq.s32.totalorder %s16, 1
    %p129 = por %p127, %p128
    %p131 = scmp.ne.s32.totalorder %s114, %s130
    %p132 = scmp.eq.s32.totalorder %s16, 0
    %p133 = por %p131, %p132
    %s134 = ssub.s32 %s17, %s29
    %s135 = ssub.s32 %s18, %s25
    %s136 = sor.u32 %s134, %s135
    %p137 = scmp.eq.s32.totalorder %s136, 0
    %s139 = sadd.s32 %s138, 1
    %s140 = scalar_select %p137, %s138, %s139
    %p143 = pneg %p137
    %p144 = scmp.eq.s32.totalorder %s10, 1
    %p145 = por %p143, %p144
    %p146 = scmp.ne.s32.totalorder %s138, %s141
    %p147 = scmp.eq.s32.totalorder %s10, 0
    %p148 = por %p146, %p147
    %p149 = scmp.ne.s32.totalorder %s138, %s141
    %p150 = scmp.eq.s32.totalorder %s15, 1
    %p151 = por %p149, %p150
    %p152 = scmp.ne.s32.totalorder %s141, %s142
    %p153 = scmp.eq.s32.totalorder %s15, 0
    %p154 = por %p152, %p153
    %p155 = scmp.ne.s32.totalorder %s141, %s142
    %p156 = scmp.eq.s32.totalorder %s16, 1
    %p157 = por %p155, %p156
    %p159 = scmp.ne.s32.totalorder %s142, %s158
    %p160 = scmp.eq.s32.totalorder %s16, 0
    %p161 = por %p159, %p160
    %p162 = scmp.le.s32.totalorder 1, %s10
    %p163 = scmp.lt.s32.totalorder %s10, 3
    %p164 = pnand %p162, %p163
    %p165 = pneg %p164
    // Predicated region
    $region9: #{_lambda_.8} parent=5 // pred_check
      _
    $region10: #{_lambda_.8} parent=5 // pred_check_branch
      %167 = sbr.rel (%p164) target = $region12
    $region11: #{_lambda_.8} parent=5 // pred_region
      %s168 = ssub.s32 %s10, 1
      // Predicated region
      $region13: #{_lambda_.8} parent=11 // pred_check
        %p169 = pneg %p74
      $region14: #{_lambda_.8} parent=11 // pred_check_branch
        %171 = sbr.rel (%p169) target = $region16
      $region15: #{_lambda_.8} parent=11 // pred_region
        %p172 = scmp.lt.s32.totalorder %s20, 0
        %s173 = scalar_select %p172, %s20, 0
        %s174 = smul.addr %s173, 4
        %s175 = scalar_lea.vmem %s1, %s174
      $region16: #{_lambda_.8} parent=11 // pred_fallthru
        _
      // Predicated region
      $region17: #{_lambda_.8} parent=11 // pred_check
        %p176 = pneg %p100
      $region18: #{_lambda_.8} parent=11 // pred_check_branch
        %178 = sbr.rel (%p176) target = $region20
      $region19: #{_lambda_.8} parent=11 // pred_region
        %p179 = scmp.lt.s32.totalorder %s20, 0
        %s180 = scalar_select %p179, %s20, 0
        %s181 = scalar_lea.vmem %s2, %s180
      $region20: #{_lambda_.8} parent=11 // pred_fallthru
        _
      // Predicated region
      $region21: #{_lambda_.8} parent=11 // pred_check
        %p182 = pneg %p126
      $region22: #{_lambda_.8} parent=11 // pred_check_branch
        %184 = sbr.rel (%p182) target = $region24
      $region23: #{_lambda_.8} parent=11 // pred_region
        %p185 = scmp.lt.s32.totalorder %s20, 0
        %s186 = scalar_select %p185, %s20, 0
        %s187 = scalar_lea.vmem %s3, %s186
      $region24: #{_lambda_.8} parent=11 // pred_fallthru
        _
    $region12: #{_lambda_.8} parent=5 // pred_fallthru
      _
    %p188 = scmp.lt.s32.totalorder %s10, 2
    // Predicated region
    $region25: #{_lambda_.8} parent=5 // pred_check
      %p189 = pneg %p188
    $region26: #{_lambda_.8} parent=5 // pred_check_branch
      %191 = sbr.rel (%p189) target = $region28
    $region27: #{_lambda_.8} parent=5 // pred_region
      // Predicated region
      $region29: #{_lambda_.8} parent=27 // pred_check
        %p192 = pneg %p42
      $region30: #{_lambda_.8} parent=27 // pred_check_branch
        %194 = sbr.rel (%p192) target = $region32
      $region31: #{_lambda_.8} parent=27 // pred_region
        %s195 = smul.u32 2, %s17
        %p196 = scmp.lt.s32.totalorder %s195, 3
        %s197 = scalar_select %p196, %s195, 3
        %s198 = smul.addr %s197, 13
        %s199 = smul.addr %s198, 4
        %s200 = scalar_lea.vmem %s0, %s199
        %s201 = smul.u32 2, %s17
      $region32: #{_lambda_.8} parent=27 // pred_fallthru
        _
    $region28: #{_lambda_.8} parent=5 // pred_fallthru
      _
    %p202 = scmp.le.s32.totalorder 1, %s10
    %p203 = scmp.lt.s32.totalorder %s10, 3
    %p204 = pnand %p202, %p203
    %p205 = pneg %p204
    // Predicated region
    $region33: #{_lambda_.8} parent=5 // pred_check
      _
    $region34: #{_lambda_.8} parent=5 // pred_check_branch
      %207 = sbr.rel (%p204) target = $region36
    $region35: #{_lambda_.8} parent=5 // pred_region
      %s208 = ssub.s32 %s10, 1
      %s209 = smul.u32 2, %s19
      %p210 = scmp.lt.s32.totalorder %s209, 3
      %s211 = scalar_select %p210, %s209, 3
      %s212 = smul.addr %s211, 13
      %s213 = smul.addr %s212, 4
      %s214 = scalar_lea.vmem %s0, %s213
      %p215 = pneg %p48
      %p216 = pneg %p45
      %p217 = scmp.lt.s32.totalorder %s20, 0
      %s218 = scalar_select %p217, %s20, 0
      %s219 = smul.addr %s218, 4
      %s220 = scalar_lea.vmem %s1, %s219
      %p221 = pneg %p74
      %p222 = pneg %p71
      %p223 = scmp.lt.s32.totalorder %s20, 0
      %s224 = scalar_select %p223, %s20, 0
      %s225 = scalar_lea.vmem %s2, %s224
      %p226 = pneg %p100
      %p227 = pneg %p97
      %p228 = scmp.lt.s32.totalorder %s20, 0
      %s229 = scalar_select %p228, %s20, 0
      %s230 = scalar_lea.vmem %s3, %s229
      %p231 = pneg %p126
      %p232 = pneg %p123
      %p233 = pneg %p154
      %p234 = pneg %p151
      %s235 = smul.u32 2, %s19
      %p236 = scmp.lt.s32.totalorder %s235, 3
      %s237 = scalar_select %p236, %s235, 3
      %p238 = scmp.lt.s32.totalorder %s20, 0
      %s239 = scalar_select %p238, %s20, 0
      %s240 = sadd.s32 %s239, %s237
      %s241 = smul.addr %s240, 4
      %s242 = scalar_lea.vmem %s4, %s241
      %s243 = smul.u32 2, %s19
      %p244 = scmp.lt.s32.totalorder %s243, 3
      %s245 = scalar_select %p244, %s243, 3
      %s246 = smul.addr %s245, 13
      %s247 = smul.addr %s246, 4
      %s248 = scalar_lea.vmem %s0, %s247
      %s249 = smul.u32 2, %s19
      %p250 = scmp.lt.s32.totalorder %s20, 0
      %s251 = scalar_select %p250, %s20, 0
      %s252 = smul.addr %s251, 4
      %s253 = scalar_lea.vmem %s1, %s252
      %p254 = scmp.lt.s32.totalorder %s20, 0
      %s255 = scalar_select %p254, %s20, 0
      %s256 = scalar_lea.vmem %s2, %s255
      %p257 = scmp.lt.s32.totalorder %s20, 0
      %s258 = scalar_select %p257, %s20, 0
      %s259 = scalar_lea.vmem %s3, %s258
      %s260 = smul.u32 2, %s19
      %p261 = scmp.lt.s32.totalorder %s260, 3
      %s262 = scalar_select %p261, %s260, 3
      %p263 = scmp.lt.s32.totalorder %s20, 0
      %s264 = scalar_select %p263, %s20, 0
      %s265 = sadd.s32 %s264, %s262
      %s266 = smul.addr %s265, 4
      %s267 = scalar_lea.vmem %s4, %s266
      %s268 = smul.u32 2, %s19
      %v270 = vld [vmem:[%s248] sm:$0xff]
      %v271 = vld [vmem:[%s248 + $0x8] sm:$0xff]
      %v272 = vld [vmem:[%s248 + $0x10] sm:$0xff]
      %v273 = vld [vmem:[%s248 + $0x18] sm:$0xff]
      %v274 = vld [vmem:[%s248 + $0x20] sm:$0xff]
      %v275 = vld [vmem:[%s248 + $0x28] sm:$0xff]
      %v276 = vld [vmem:[%s248 + $0x30] sm:$0xf]
      %v277 = vld [vmem:[%s248 + $0x34] sm:$0xff]
      %v278 = vld [vmem:[%s248 + $0x3c] sm:$0xff]
      %v279 = vld [vmem:[%s248 + $0x44] sm:$0xff]
      %v280 = vld [vmem:[%s248 + $0x4c] sm:$0xff]
      %v281 = vld [vmem:[%s248 + $0x54] sm:$0xff]
      %v282 = vld [vmem:[%s248 + $0x5c] sm:$0xff]
      %v283 = vld [vmem:[%s248 + $0x64] sm:$0xf]
      %v284 = vld [vmem:[%s253] sm:$0xf]
      %v285 = vld [vmem:[%s253 + $0x4] sm:$0xf]
      %v286 = vld [vmem:[%s253 + $0x8] sm:$0xf]
      %v287 = vld [vmem:[%s253 + $0xc] sm:$0xf]
      %v288 = vld [vmem:[%s253 + $0x10] sm:$0xf]
      %v289 = vld [vmem:[%s253 + $0x14] sm:$0xf]
      %v290 = vld [vmem:[%s253 + $0x18] sm:$0xf]
      %v291 = vld [vmem:[%s253 + $0x1c] sm:$0xf]
      %v292 = vld [vmem:[%s253 + $0x20] sm:$0xf]
      %v293 = vld [vmem:[%s253 + $0x24] sm:$0xf]
      %v294 = vld [vmem:[%s253 + $0x28] sm:$0xf]
      %v295 = vld [vmem:[%s253 + $0x2c] sm:$0xf]
      %v296 = vld [vmem:[%s253 + $0x30] sm:$0xf]
      %v297 = vld [vmem:[%s253 + $0x34] sm:$0xf]
      %v298 = vld [vmem:[%s253 + $0x38] sm:$0xf]
      %v299 = vld [vmem:[%s253 + $0x3c] sm:$0xf]
      %v300 = vld [vmem:[%s253 + $0x40] sm:$0xf]
      %v301 = vld [vmem:[%s253 + $0x44] sm:$0xf]
      %v302 = vld [vmem:[%s253 + $0x48] sm:$0xf]
      %v303 = vld [vmem:[%s253 + $0x4c] sm:$0xf]
      %v304 = vld [vmem:[%s253 + $0x50] sm:$0xf]
      %v305 = vld [vmem:[%s253 + $0x54] sm:$0xf]
      %v306 = vld [vmem:[%s253 + $0x58] sm:$0xf]
      %v307 = vld [vmem:[%s253 + $0x5c] sm:$0xf]
      %v308 = vld [vmem:[%s253 + $0x60] sm:$0xf]
      %v309 = vld [vmem:[%s253 + $0x64] sm:$0xf]
      %v310 = vld [vmem:[%s253 + $0x68] sm:$0xf]
      %v311 = vld [vmem:[%s253 + $0x6c] sm:$0xf]
      %v312 = vld [vmem:[%s253 + $0x70] sm:$0xf]
      %v313 = vld [vmem:[%s253 + $0x74] sm:$0xf]
      %v314 = vld [vmem:[%s253 + $0x78] sm:$0xf]
      %v315 = vld [vmem:[%s253 + $0x7c] sm:$0xf]
      %v316 = vld [vmem:[%s253 + $0x80] sm:$0xf]
      %v317 = vld [vmem:[%s253 + $0x84] sm:$0xf]
      %v318 = vld [vmem:[%s253 + $0x88] sm:$0xf]
      %v319 = vld [vmem:[%s253 + $0x8c] sm:$0xf]
      %v320 = vld [vmem:[%s253 + $0x90] sm:$0xf]
      %v321 = vld [vmem:[%s253 + $0x94] sm:$0xf]
      %v322 = vld [vmem:[%s253 + $0x98] sm:$0xf]
      %v323 = vld [vmem:[%s253 + $0x9c] sm:$0xf]
      %v324 = vld [vmem:[%s253 + $0xa0] sm:$0xf]
      %v325 = vld [vmem:[%s253 + $0xa4] sm:$0xf]
      %v326 = vld [vmem:[%s253 + $0xa8] sm:$0xf]
      %v327 = vld [vmem:[%s253 + $0xac] sm:$0xf]
      %v328 = vld [vmem:[%s253 + $0xb0] sm:$0xf]
      %v329 = vld [vmem:[%s253 + $0xb4] sm:$0xf]
      %v330 = vld [vmem:[%s253 + $0xb8] sm:$0xf]
      %v331 = vld [vmem:[%s253 + $0xbc] sm:$0xf]
      %v332 = vld [vmem:[%s253 + $0xc0] sm:$0xf]
      %v333 = vld [vmem:[%s253 + $0xc4] sm:$0xf]
      %v334 = vld [vmem:[%s253 + $0xc8] sm:$0xf]
      %v335 = vld [vmem:[%s253 + $0xcc] sm:$0xf]
      %v336 = vld [vmem:[%s253 + $0xd0] sm:$0xf]
      %v337 = vld [vmem:[%s253 + $0xd4] sm:$0xf]
      %v338 = vld [vmem:[%s253 + $0xd8] sm:$0xf]
      %v339 = vld [vmem:[%s253 + $0xdc] sm:$0xf]
      %v340 = vld [vmem:[%s253 + $0xe0] sm:$0xf]
      %v341 = vld [vmem:[%s253 + $0xe4] sm:$0xf]
      %v342 = vld [vmem:[%s253 + $0xe8] sm:$0xf]
      %v343 = vld [vmem:[%s253 + $0xec] sm:$0xf]
      %v344 = vld [vmem:[%s253 + $0xf0] sm:$0xf]
      %v345 = vld [vmem:[%s253 + $0xf4] sm:$0xf]
      %v346 = vld [vmem:[%s253 + $0xf8] sm:$0xf]
      %v347 = vld [vmem:[%s253 + $0xfc] sm:$0xf]
      %v348 = vld [vmem:[%s253 + $0x100] sm:$0xf]
      %v349 = vld [vmem:[%s253 + $0x104] sm:$0xf]
      %v350 = vld [vmem:[%s253 + $0x108] sm:$0xf]
      %v351 = vld [vmem:[%s253 + $0x10c] sm:$0xf]
      %v352 = vld [vmem:[%s253 + $0x110] sm:$0xf]
      %v353 = vld [vmem:[%s253 + $0x114] sm:$0xf]
      %v354 = vld [vmem:[%s253 + $0x118] sm:$0xf]
      %v355 = vld [vmem:[%s253 + $0x11c] sm:$0xf]
      %v356 = vld [vmem:[%s253 + $0x120] sm:$0xf]
      %v357 = vld [vmem:[%s253 + $0x124] sm:$0xf]
      %v358 = vld [vmem:[%s253 + $0x128] sm:$0xf]
      %v359 = vld [vmem:[%s253 + $0x12c] sm:$0xf]
      %v360 = vld [vmem:[%s253 + $0x130] sm:$0xf]
      %v361 = vld [vmem:[%s253 + $0x134] sm:$0xf]
      %v362 = vld [vmem:[%s253 + $0x138] sm:$0xf]
      %v363 = vld [vmem:[%s253 + $0x13c] sm:$0xf]
      %v364 = vld [vmem:[%s253 + $0x140] sm:$0xf]
      %v365 = vld [vmem:[%s253 + $0x144] sm:$0xf]
      %v366 = vld [vmem:[%s253 + $0x148] sm:$0xf]
      %v367 = vld [vmem:[%s253 + $0x14c] sm:$0xf]
      %v368 = vld [vmem:[%s253 + $0x150] sm:$0xf]
      %v369 = vld [vmem:[%s253 + $0x154] sm:$0xf]
      %v370 = vld [vmem:[%s253 + $0x158] sm:$0xf]
      %v371 = vld [vmem:[%s253 + $0x15c] sm:$0xf]
      %v372 = vld [vmem:[%s253 + $0x160] sm:$0xf]
      %v373 = vld [vmem:[%s253 + $0x164] sm:$0xf]
      %v374 = vld [vmem:[%s253 + $0x168] sm:$0xf]
      %v375 = vld [vmem:[%s253 + $0x16c] sm:$0xf]
      %v376 = vld [vmem:[%s253 + $0x170] sm:$0xf]
      %v377 = vld [vmem:[%s253 + $0x174] sm:$0xf]
      %v378 = vld [vmem:[%s253 + $0x178] sm:$0xf]
      %v379 = vld [vmem:[%s253 + $0x17c] sm:$0xf]
      %v380 = vld [vmem:[%s253 + $0x180] sm:$0xf]
      %v381 = vld [vmem:[%s253 + $0x184] sm:$0xf]
      %v382 = vld [vmem:[%s253 + $0x188] sm:$0xf]
      %v383 = vld [vmem:[%s253 + $0x18c] sm:$0xf]
      %v384 = vld [vmem:[%s253 + $0x190] sm:$0xf]
      %v385 = vld [vmem:[%s253 + $0x194] sm:$0xf]
      %v386 = vld [vmem:[%s253 + $0x198] sm:$0xf]
      %v387 = vld [vmem:[%s253 + $0x19c] sm:$0xf]
      %v388 = vld [vmem:[%s253 + $0x1a0] sm:$0xf]
      %v389 = vld [vmem:[%s253 + $0x1a4] sm:$0xf]
      %v390 = vld [vmem:[%s253 + $0x1a8] sm:$0xf]
      %v391 = vld [vmem:[%s253 + $0x1ac] sm:$0xf]
      %v392 = vld [vmem:[%s253 + $0x1b0] sm:$0xf]
      %v393 = vld [vmem:[%s253 + $0x1b4] sm:$0xf]
      %v394 = vld [vmem:[%s253 + $0x1b8] sm:$0xf]
      %v395 = vld [vmem:[%s253 + $0x1bc] sm:$0xf]
      %v396 = vld [vmem:[%s253 + $0x1c0] sm:$0xf]
      %v397 = vld [vmem:[%s253 + $0x1c4] sm:$0xf]
      %v398 = vld [vmem:[%s253 + $0x1c8] sm:$0xf]
      %v399 = vld [vmem:[%s253 + $0x1cc] sm:$0xf]
      %v400 = vld [vmem:[%s253 + $0x1d0] sm:$0xf]
      %v401 = vld [vmem:[%s253 + $0x1d4] sm:$0xf]
      %v402 = vld [vmem:[%s253 + $0x1d8] sm:$0xf]
      %v403 = vld [vmem:[%s253 + $0x1dc] sm:$0xf]
      %v404 = vld [vmem:[%s253 + $0x1e0] sm:$0xf]
      %v405 = vld [vmem:[%s253 + $0x1e4] sm:$0xf]
      %v406 = vld [vmem:[%s253 + $0x1e8] sm:$0xf]
      %v407 = vld [vmem:[%s253 + $0x1ec] sm:$0xf]
      %v408 = vld [vmem:[%s253 + $0x1f0] sm:$0xf]
      %v409 = vld [vmem:[%s253 + $0x1f4] sm:$0xf]
      %v410 = vld [vmem:[%s253 + $0x1f8] sm:$0xf]
      %v411 = vld [vmem:[%s253 + $0x1fc] sm:$0xf]
      %v412 = vld [vmem:[%s253 + $0x200] sm:$0xf]
      %v413 = vld [vmem:[%s253 + $0x204] sm:$0xf]
      %v414 = vld [vmem:[%s253 + $0x208] sm:$0xf]
      %v415 = vld [vmem:[%s253 + $0x20c] sm:$0xf]
      %v416 = vld [vmem:[%s253 + $0x210] sm:$0xf]
      %v417 = vld [vmem:[%s253 + $0x214] sm:$0xf]
      %v418 = vld [vmem:[%s253 + $0x218] sm:$0xf]
      %v419 = vld [vmem:[%s253 + $0x21c] sm:$0xf]
      %v420 = vld [vmem:[%s253 + $0x220] sm:$0xf]
      %v421 = vld [vmem:[%s253 + $0x224] sm:$0xf]
      %v422 = vld [vmem:[%s253 + $0x228] sm:$0xf]
      %v423 = vld [vmem:[%s253 + $0x22c] sm:$0xf]
      %v424 = vld [vmem:[%s253 + $0x230] sm:$0xf]
      %v425 = vld [vmem:[%s253 + $0x234] sm:$0xf]
      %v426 = vld [vmem:[%s253 + $0x238] sm:$0xf]
      %v427 = vld [vmem:[%s253 + $0x23c] sm:$0xf]
      %v428 = vld [vmem:[%s253 + $0x240] sm:$0xf]
      %v429 = vld [vmem:[%s253 + $0x244] sm:$0xf]
      %v430 = vld [vmem:[%s253 + $0x248] sm:$0xf]
      %v431 = vld [vmem:[%s253 + $0x24c] sm:$0xf]
      %v432 = vld [vmem:[%s253 + $0x250] sm:$0xf]
      %v433 = vld [vmem:[%s253 + $0x254] sm:$0xf]
      %v434 = vld [vmem:[%s253 + $0x258] sm:$0xf]
      %v435 = vld [vmem:[%s253 + $0x25c] sm:$0xf]
      %v436 = vld [vmem:[%s253 + $0x260] sm:$0xf]
      %v437 = vld [vmem:[%s253 + $0x264] sm:$0xf]
      %v438 = vld [vmem:[%s253 + $0x268] sm:$0xf]
      %v439 = vld [vmem:[%s253 + $0x26c] sm:$0xf]
      %v440 = vld [vmem:[%s253 + $0x270] sm:$0xf]
      %v441 = vld [vmem:[%s253 + $0x274] sm:$0xf]
      %v442 = vld [vmem:[%s253 + $0x278] sm:$0xf]
      %v443 = vld [vmem:[%s253 + $0x27c] sm:$0xf]
      %v444 = vld [vmem:[%s253 + $0x280] sm:$0xf]
      %v445 = vld [vmem:[%s253 + $0x284] sm:$0xf]
      %v446 = vld [vmem:[%s253 + $0x288] sm:$0xf]
      %v447 = vld [vmem:[%s253 + $0x28c] sm:$0xf]
      %v448 = vld [vmem:[%s253 + $0x290] sm:$0xf]
      %v449 = vld [vmem:[%s253 + $0x294] sm:$0xf]
      %v450 = vld [vmem:[%s253 + $0x298] sm:$0xf]
      %v451 = vld [vmem:[%s253 + $0x29c] sm:$0xf]
      %v452 = vld [vmem:[%s253 + $0x2a0] sm:$0xf]
      %v453 = vld [vmem:[%s253 + $0x2a4] sm:$0xf]
      %v454 = vld [vmem:[%s253 + $0x2a8] sm:$0xf]
      %v455 = vld [vmem:[%s253 + $0x2ac] sm:$0xf]
      %v456 = vld [vmem:[%s253 + $0x2b0] sm:$0xf]
      %v457 = vld [vmem:[%s253 + $0x2b4] sm:$0xf]
      %v458 = vld [vmem:[%s253 + $0x2b8] sm:$0xf]
      %v459 = vld [vmem:[%s253 + $0x2bc] sm:$0xf]
      %v460 = vld [vmem:[%s253 + $0x2c0] sm:$0xf]
      %v461 = vld [vmem:[%s253 + $0x2c4] sm:$0xf]
      %v462 = vld [vmem:[%s253 + $0x2c8] sm:$0xf]
      %v463 = vld [vmem:[%s253 + $0x2cc] sm:$0xf]
      %v464 = vld [vmem:[%s253 + $0x2d0] sm:$0xf]
      %v465 = vld [vmem:[%s253 + $0x2d4] sm:$0xf]
      %v466 = vld [vmem:[%s253 + $0x2d8] sm:$0xf]
      %v467 = vld [vmem:[%s253 + $0x2dc] sm:$0xf]
      %v468 = vld [vmem:[%s253 + $0x2e0] sm:$0xf]
      %v469 = vld [vmem:[%s253 + $0x2e4] sm:$0xf]
      %v470 = vld [vmem:[%s253 + $0x2e8] sm:$0xf]
      %v471 = vld [vmem:[%s253 + $0x2ec] sm:$0xf]
      %v472 = vld [vmem:[%s253 + $0x2f0] sm:$0xf]
      %v473 = vld [vmem:[%s253 + $0x2f4] sm:$0xf]
      %v474 = vld [vmem:[%s253 + $0x2f8] sm:$0xf]
      %v475 = vld [vmem:[%s253 + $0x2fc] sm:$0xf]
      %v476 = vld [vmem:[%s253 + $0x300] sm:$0xf]
      %v477 = vld [vmem:[%s253 + $0x304] sm:$0xf]
      %v478 = vld [vmem:[%s253 + $0x308] sm:$0xf]
      %v479 = vld [vmem:[%s253 + $0x30c] sm:$0xf]
      %v480 = vld [vmem:[%s253 + $0x310] sm:$0xf]
      %v481 = vld [vmem:[%s253 + $0x314] sm:$0xf]
      %v482 = vld [vmem:[%s253 + $0x318] sm:$0xf]
      %v483 = vld [vmem:[%s253 + $0x31c] sm:$0xf]
      %v498 = vunpack.c.l.b16 %v270
      %v499 = vunpack.c.h.b16 %v270
      %v500 = vunpack.c.l.b16 %v271
      %v501 = vunpack.c.h.b16 %v271
      %v502 = vunpack.c.l.b16 %v272
      %v503 = vunpack.c.h.b16 %v272
      %v504 = vunpack.c.l.b16 %v273
      %v505 = vunpack.c.h.b16 %v273
      %v506 = vunpack.c.l.b16 %v274
      %v507 = vunpack.c.h.b16 %v274
      %v508 = vunpack.c.l.b16 %v275
      %v509 = vunpack.c.h.b16 %v275
      %v510 = vunpack.c.l.b16 %v276
      %v511 = vunpack.c.l.b16 %v277
      %v512 = vunpack.c.h.b16 %v277
      %v513 = vunpack.c.l.b16 %v278
      %v514 = vunpack.c.h.b16 %v278
      %v515 = vunpack.c.l.b16 %v279
      %v516 = vunpack.c.h.b16 %v279
      %v517 = vunpack.c.l.b16 %v280
      %v518 = vunpack.c.h.b16 %v280
      %v519 = vunpack.c.l.b16 %v281
      %v520 = vunpack.c.h.b16 %v281
      %v521 = vunpack.c.l.b16 %v282
      %v522 = vunpack.c.h.b16 %v282
      %v523 = vunpack.c.l.b16 %v283
      %v524 = vpack.c.b16 %v511, %v498
      %v525 = vpack.c.b16 %v512, %v499
      %v526 = vpack.c.b16 %v513, %v500
      %v527 = vpack.c.b16 %v514, %v501
      %v528 = vpack.c.b16 %v515, %v502
      %v529 = vpack.c.b16 %v516, %v503
      %v530 = vpack.c.b16 %v517, %v504
      %v531 = vpack.c.b16 %v518, %v505
      %v532 = vpack.c.b16 %v519, %v506
      %v533 = vpack.c.b16 %v520, %v507
      %v534 = vpack.c.b16 %v521, %v508
      %v535 = vpack.c.b16 %v522, %v509
      %v536 = vpack.c.b16 %v523, %v510
      %v749 = vunpack.c.l.b16 %v284
      %v750 = vunpack.c.l.b16 %v285
      %v751 = vunpack.c.l.b16 %v286
      %v752 = vunpack.c.l.b16 %v287
      %v753 = vunpack.c.l.b16 %v288
      %v754 = vunpack.c.l.b16 %v289
      %v755 = vunpack.c.l.b16 %v290
      %v756 = vunpack.c.l.b16 %v291
      %v757 = vunpack.c.l.b16 %v292
      %v758 = vunpack.c.l.b16 %v293
      %v759 = vunpack.c.l.b16 %v294
      %v760 = vunpack.c.l.b16 %v295
      %v761 = vunpack.c.l.b16 %v296
      %v762 = vunpack.c.l.b16 %v297
      %v763 = vunpack.c.l.b16 %v298
      %v764 = vunpack.c.l.b16 %v299
      %v765 = vunpack.c.l.b16 %v300
      %v766 = vunpack.c.l.b16 %v301
      %v767 = vunpack.c.l.b16 %v302
      %v768 = vunpack.c.l.b16 %v303
      %v769 = vunpack.c.l.b16 %v304
      %v770 = vunpack.c.l.b16 %v305
      %v771 = vunpack.c.l.b16 %v306
      %v772 = vunpack.c.l.b16 %v307
      %v773 = vunpack.c.l.b16 %v308
      %v774 = vunpack.c.l.b16 %v309
      %v775 = vunpack.c.l.b16 %v310
      %v776 = vunpack.c.l.b16 %v311
      %v777 = vunpack.c.l.b16 %v312
      %v778 = vunpack.c.l.b16 %v313
      %v779 = vunpack.c.l.b16 %v314
      %v780 = vunpack.c.l.b16 %v315
      %v781 = vunpack.c.l.b16 %v316
      %v782 = vunpack.c.l.b16 %v317
      %v783 = vunpack.c.l.b16 %v318
      %v784 = vunpack.c.l.b16 %v319
      %v785 = vunpack.c.l.b16 %v320
      %v786 = vunpack.c.l.b16 %v321
      %v787 = vunpack.c.l.b16 %v322
      %v788 = vunpack.c.l.b16 %v323
      %v789 = vunpack.c.l.b16 %v324
      %v790 = vunpack.c.l.b16 %v325
      %v791 = vunpack.c.l.b16 %v326
      %v792 = vunpack.c.l.b16 %v327
      %v793 = vunpack.c.l.b16 %v328
      %v794 = vunpack.c.l.b16 %v329
      %v795 = vunpack.c.l.b16 %v330
      %v796 = vunpack.c.l.b16 %v331
      %v797 = vunpack.c.l.b16 %v332
      %v798 = vunpack.c.l.b16 %v333
      %v799 = vunpack.c.l.b16 %v334
      %v800 = vunpack.c.l.b16 %v335
      %v801 = vunpack.c.l.b16 %v336
      %v802 = vunpack.c.l.b16 %v337
      %v803 = vunpack.c.l.b16 %v338
      %v804 = vunpack.c.l.b16 %v339
      %v805 = vunpack.c.l.b16 %v340
      %v806 = vunpack.c.l.b16 %v341
      %v807 = vunpack.c.l.b16 %v342
      %v808 = vunpack.c.l.b16 %v343
      %v809 = vunpack.c.l.b16 %v344
      %v810 = vunpack.c.l.b16 %v345
      %v811 = vunpack.c.l.b16 %v346
      %v812 = vunpack.c.l.b16 %v347
      %v813 = vunpack.c.l.b16 %v348
      %v814 = vunpack.c.l.b16 %v349
      %v815 = vunpack.c.l.b16 %v350
      %v816 = vunpack.c.l.b16 %v351
      %v817 = vunpack.c.l.b16 %v352
      %v818 = vunpack.c.l.b16 %v353
      %v819 = vunpack.c.l.b16 %v354
      %v820 = vunpack.c.l.b16 %v355
      %v821 = vunpack.c.l.b16 %v356
      %v822 = vunpack.c.l.b16 %v357
      %v823 = vunpack.c.l.b16 %v358
      %v824 = vunpack.c.l.b16 %v359
      %v825 = vunpack.c.l.b16 %v360
      %v826 = vunpack.c.l.b16 %v361
      %v827 = vunpack.c.l.b16 %v362
      %v828 = vunpack.c.l.b16 %v363
      %v829 = vunpack.c.l.b16 %v364
      %v830 = vunpack.c.l.b16 %v365
      %v831 = vunpack.c.l.b16 %v366
      %v832 = vunpack.c.l.b16 %v367
      %v833 = vunpack.c.l.b16 %v368
      %v834 = vunpack.c.l.b16 %v369
      %v835 = vunpack.c.l.b16 %v370
      %v836 = vunpack.c.l.b16 %v371
      %v837 = vunpack.c.l.b16 %v372
      %v838 = vunpack.c.l.b16 %v373
      %v839 = vunpack.c.l.b16 %v374
      %v840 = vunpack.c.l.b16 %v375
      %v841 = vunpack.c.l.b16 %v376
      %v842 = vunpack.c.l.b16 %v377
      %v843 = vunpack.c.l.b16 %v378
      %v844 = vunpack.c.l.b16 %v379
      %v845 = vunpack.c.l.b16 %v380
      %v846 = vunpack.c.l.b16 %v381
      %v847 = vunpack.c.l.b16 %v382
      %v848 = vunpack.c.l.b16 %v383
      %v849 = vunpack.c.l.b16 %v384
      %v850 = vunpack.c.l.b16 %v385
      %v851 = vunpack.c.l.b16 %v386
      %v852 = vunpack.c.l.b16 %v387
      %v853 = vunpack.c.l.b16 %v388
      %v854 = vunpack.c.l.b16 %v389
      %v855 = vunpack.c.l.b16 %v390
      %v856 = vunpack.c.l.b16 %v391
      %v857 = vunpack.c.l.b16 %v392
      %v858 = vunpack.c.l.b16 %v393
      %v859 = vunpack.c.l.b16 %v394
      %v860 = vunpack.c.l.b16 %v395
      %v861 = vunpack.c.l.b16 %v396
      %v862 = vunpack.c.l.b16 %v397
      %v863 = vunpack.c.l.b16 %v398
      %v864 = vunpack.c.l.b16 %v399
      %v865 = vunpack.c.l.b16 %v400
      %v866 = vunpack.c.l.b16 %v401
      %v867 = vunpack.c.l.b16 %v402
      %v868 = vunpack.c.l.b16 %v403
      %v869 = vunpack.c.l.b16 %v404
      %v870 = vunpack.c.l.b16 %v405
      %v871 = vunpack.c.l.b16 %v406
      %v872 = vunpack.c.l.b16 %v407
      %v873 = vunpack.c.l.b16 %v408
      %v874 = vunpack.c.l.b16 %v409
      %v875 = vunpack.c.l.b16 %v410
      %v876 = vunpack.c.l.b16 %v411
      %v877 = vunpack.c.l.b16 %v412
      %v878 = vunpack.c.l.b16 %v413
      %v879 = vunpack.c.l.b16 %v414
      %v880 = vunpack.c.l.b16 %v415
      %v881 = vunpack.c.l.b16 %v416
      %v882 = vunpack.c.l.b16 %v417
      %v883 = vunpack.c.l.b16 %v418
      %v884 = vunpack.c.l.b16 %v419
      %v885 = vunpack.c.l.b16 %v420
      %v886 = vunpack.c.l.b16 %v421
      %v887 = vunpack.c.l.b16 %v422
      %v888 = vunpack.c.l.b16 %v423
      %v889 = vunpack.c.l.b16 %v424
      %v890 = vunpack.c.l.b16 %v425
      %v891 = vunpack.c.l.b16 %v426
      %v892 = vunpack.c.l.b16 %v427
      %v893 = vunpack.c.l.b16 %v428
      %v894 = vunpack.c.l.b16 %v429
      %v895 = vunpack.c.l.b16 %v430
      %v896 = vunpack.c.l.b16 %v431
      %v897 = vunpack.c.l.b16 %v432
      %v898 = vunpack.c.l.b16 %v433
      %v899 = vunpack.c.l.b16 %v434
      %v900 = vunpack.c.l.b16 %v435
      %v901 = vunpack.c.l.b16 %v436
      %v902 = vunpack.c.l.b16 %v437
      %v903 = vunpack.c.l.b16 %v438
      %v904 = vunpack.c.l.b16 %v439
      %v905 = vunpack.c.l.b16 %v440
      %v906 = vunpack.c.l.b16 %v441
      %v907 = vunpack.c.l.b16 %v442
      %v908 = vunpack.c.l.b16 %v443
      %v909 = vunpack.c.l.b16 %v444
      %v910 = vunpack.c.l.b16 %v445
      %v911 = vunpack.c.l.b16 %v446
      %v912 = vunpack.c.l.b16 %v447
      %v913 = vunpack.c.l.b16 %v448
      %v914 = vunpack.c.l.b16 %v449
      %v915 = vunpack.c.l.b16 %v450
      %v916 = vunpack.c.l.b16 %v451
      %v917 = vunpack.c.l.b16 %v452
      %v918 = vunpack.c.l.b16 %v453
      %v919 = vunpack.c.l.b16 %v454
      %v920 = vunpack.c.l.b16 %v455
      %v921 = vunpack.c.l.b16 %v456
      %v922 = vunpack.c.l.b16 %v457
      %v923 = vunpack.c.l.b16 %v458
      %v924 = vunpack.c.l.b16 %v459
      %v925 = vunpack.c.l.b16 %v460
      %v926 = vunpack.c.l.b16 %v461
      %v927 = vunpack.c.l.b16 %v462
      %v928 = vunpack.c.l.b16 %v463
      %v929 = vunpack.c.l.b16 %v464
      %v930 = vunpack.c.l.b16 %v465
      %v931 = vunpack.c.l.b16 %v466
      %v932 = vunpack.c.l.b16 %v467
      %v933 = vunpack.c.l.b16 %v468
      %v934 = vunpack.c.l.b16 %v469
      %v935 = vunpack.c.l.b16 %v470
      %v936 = vunpack.c.l.b16 %v471
      %v937 = vunpack.c.l.b16 %v472
      %v938 = vunpack.c.l.b16 %v473
      %v939 = vunpack.c.l.b16 %v474
      %v940 = vunpack.c.l.b16 %v475
      %v941 = vunpack.c.l.b16 %v476
      %v942 = vunpack.c.l.b16 %v477
      %v943 = vunpack.c.l.b16 %v478
      %v944 = vunpack.c.l.b16 %v479
      %v945 = vunpack.c.l.b16 %v480
      %v946 = vunpack.c.l.b16 %v481
      %v947 = vunpack.c.l.b16 %v482
      %v948 = vunpack.c.l.b16 %v483
      %v949 = vpack.c.b16 %v750, %v749
      %v950 = vpack.c.b16 %v752, %v751
      %v951 = vpack.c.b16 %v754, %v753
      %v952 = vpack.c.b16 %v756, %v755
      %v953 = vpack.c.b16 %v758, %v757
      %v954 = vpack.c.b16 %v760, %v759
      %v955 = vpack.c.b16 %v762, %v761
      %v956 = vpack.c.b16 %v764, %v763
      %v957 = vpack.c.b16 %v766, %v765
      %v958 = vpack.c.b16 %v768, %v767
      %v959 = vpack.c.b16 %v770, %v769
      %v960 = vpack.c.b16 %v772, %v771
      %v961 = vpack.c.b16 %v774, %v773
      %v962 = vpack.c.b16 %v776, %v775
      %v963 = vpack.c.b16 %v778, %v777
      %v964 = vpack.c.b16 %v780, %v779
      %v965 = vpack.c.b16 %v782, %v781
      %v966 = vpack.c.b16 %v784, %v783
      %v967 = vpack.c.b16 %v786, %v785
      %v968 = vpack.c.b16 %v788, %v787
      %v969 = vpack.c.b16 %v790, %v789
      %v970 = vpack.c.b16 %v792, %v791
      %v971 = vpack.c.b16 %v794, %v793
      %v972 = vpack.c.b16 %v796, %v795
      %v973 = vpack.c.b16 %v798, %v797
      %v974 = vpack.c.b16 %v800, %v799
      %v975 = vpack.c.b16 %v802, %v801
      %v976 = vpack.c.b16 %v804, %v803
      %v977 = vpack.c.b16 %v806, %v805
      %v978 = vpack.c.b16 %v808, %v807
      %v979 = vpack.c.b16 %v810, %v809
      %v980 = vpack.c.b16 %v812, %v811
      %v981 = vpack.c.b16 %v814, %v813
      %v982 = vpack.c.b16 %v816, %v815
      %v983 = vpack.c.b16 %v818, %v817
      %v984 = vpack.c.b16 %v820, %v819
      %v985 = vpack.c.b16 %v822, %v821
      %v986 = vpack.c.b16 %v824, %v823
      %v987 = vpack.c.b16 %v826, %v825
      %v988 = vpack.c.b16 %v828, %v827
      %v989 = vpack.c.b16 %v830, %v829
      %v990 = vpack.c.b16 %v832, %v831
      %v991 = vpack.c.b16 %v834, %v833
      %v992 = vpack.c.b16 %v836, %v835
      %v993 = vpack.c.b16 %v838, %v837
      %v994 = vpack.c.b16 %v840, %v839
      %v995 = vpack.c.b16 %v842, %v841
      %v996 = vpack.c.b16 %v844, %v843
      %v997 = vpack.c.b16 %v846, %v845
      %v998 = vpack.c.b16 %v848, %v847
      %v999 = vpack.c.b16 %v850, %v849
      %v1000 = vpack.c.b16 %v852, %v851
      %v1001 = vpack.c.b16 %v854, %v853
      %v1002 = vpack.c.b16 %v856, %v855
      %v1003 = vpack.c.b16 %v858, %v857
      %v1004 = vpack.c.b16 %v860, %v859
      %v1005 = vpack.c.b16 %v862, %v861
      %v1006 = vpack.c.b16 %v864, %v863
      %v1007 = vpack.c.b16 %v866, %v865
      %v1008 = vpack.c.b16 %v868, %v867
      %v1009 = vpack.c.b16 %v870, %v869
      %v1010 = vpack.c.b16 %v872, %v871
      %v1011 = vpack.c.b16 %v874, %v873
      %v1012 = vpack.c.b16 %v876, %v875
      %v1013 = vpack.c.b16 %v878, %v877
      %v1014 = vpack.c.b16 %v880, %v879
      %v1015 = vpack.c.b16 %v882, %v881
      %v1016 = vpack.c.b16 %v884, %v883
      %v1017 = vpack.c.b16 %v886, %v885
      %v1018 = vpack.c.b16 %v888, %v887
      %v1019 = vpack.c.b16 %v890, %v889
      %v1020 = vpack.c.b16 %v892, %v891
      %v1021 = vpack.c.b16 %v894, %v893
      %v1022 = vpack.c.b16 %v896, %v895
      %v1023 = vpack.c.b16 %v898, %v897
      %v1024 = vpack.c.b16 %v900, %v899
      %v1025 = vpack.c.b16 %v902, %v901
      %v1026 = vpack.c.b16 %v904, %v903
      %v1027 = vpack.c.b16 %v906, %v905
      %v1028 = vpack.c.b16 %v908, %v907
      %v1029 = vpack.c.b16 %v910, %v909
      %v1030 = vpack.c.b16 %v912, %v911
      %v1031 = vpack.c.b16 %v914, %v913
      %v1032 = vpack.c.b16 %v916, %v915
      %v1033 = vpack.c.b16 %v918, %v917
      %v1034 = vpack.c.b16 %v920, %v919
      %v1035 = vpack.c.b16 %v922, %v921
      %v1036 = vpack.c.b16 %v924, %v923
      %v1037 = vpack.c.b16 %v926, %v925
      %v1038 = vpack.c.b16 %v928, %v927
      %v1039 = vpack.c.b16 %v930, %v929
      %v1040 = vpack.c.b16 %v932, %v931
      %v1041 = vpack.c.b16 %v934, %v933
      %v1042 = vpack.c.b16 %v936, %v935
      %v1043 = vpack.c.b16 %v938, %v937
      %v1044 = vpack.c.b16 %v940, %v939
      %v1045 = vpack.c.b16 %v942, %v941
      %v1046 = vpack.c.b16 %v944, %v943
      %v1047 = vpack.c.b16 %v946, %v945
      %v1048 = vpack.c.b16 %v948, %v947
      %vm1149 = vcmask 523264
      %v1151 = vsel %vm1149, %v536, 0
      %1153 = vmatpush.bf16.msra.mxu0 %v956
      %1154 = vmatpush.bf16.msra.mxu0 %v955
      %1155 = vmatpush.bf16.msra.mxu0 %v954
      %1156 = vmatpush.bf16.msra.mxu0 %v953
      %1157 = vmatpush.bf16.msra.mxu0 %v952
      %1158 = vmatpush.bf16.msra.mxu0 %v951
      %1159 = vmatpush.bf16.msra.mxu0 %v950
      %1160 = vmatpush.bf16.msra.mxu0 %v949
      %1161 = vmatmul.bf16.gmra.mxu0 %v524
      %v1162 = vpop.f32.mrf.mxu0
      %v1163 = vadd.f32 0.0, %v1162
      %v1164 = vpop.f32.mrf.mxu0
      %v1165 = vadd.f32 0.0, %v1164
      %1166 = vdwg.mxu0
      %1167 = vmatpush.bf16.msra.mxu0 %v964
      %1168 = vmatpush.bf16.msra.mxu0 %v963
      %1169 = vmatpush.bf16.msra.mxu0 %v962
      %1170 = vmatpush.bf16.msra.mxu0 %v961
      %1171 = vmatpush.bf16.msra.mxu0 %v960
      %1172 = vmatpush.bf16.msra.mxu0 %v959
      %1173 = vmatpush.bf16.msra.mxu0 %v958
      %1174 = vmatpush.bf16.msra.mxu0 %v957
      %1175 = vmatmul.bf16.gmra.mxu0 %v525
      %v1176 = vpop.f32.mrf.mxu0
      %v1177 = vadd.f32 %v1163, %v1176
      %v1178 = vpop.f32.mrf.mxu0
      %v1179 = vadd.f32 %v1165, %v1178
      %1180 = vdwg.mxu0
      %1181 = vmatpush.bf16.msra.mxu0 %v972
      %1182 = vmatpush.bf16.msra.mxu0 %v971
      %1183 = vmatpush.bf16.msra.mxu0 %v970
      %1184 = vmatpush.bf16.msra.mxu0 %v969
      %1185 = vmatpush.bf16.msra.mxu0 %v968
      %1186 = vmatpush.bf16.msra.mxu0 %v967
      %1187 = vmatpush.bf16.msra.mxu0 %v966
      %1188 = vmatpush.bf16.msra.mxu0 %v965
      %1189 = vmatmul.bf16.gmra.mxu0 %v526
      %v1190 = vpop.f32.mrf.mxu0
      %v1191 = vadd.f32 %v1177, %v1190
      %v1192 = vpop.f32.mrf.mxu0
      %v1193 = vadd.f32 %v1179, %v1192
      %1194 = vdwg.mxu0
      %1195 = vmatpush.bf16.msra.mxu0 %v980
      %1196 = vmatpush.bf16.msra.mxu0 %v979
      %1197 = vmatpush.bf16.msra.mxu0 %v978
      %1198 = vmatpush.bf16.msra.mxu0 %v977
      %1199 = vmatpush.bf16.msra.mxu0 %v976
      %1200 = vmatpush.bf16.msra.mxu0 %v975
      %1201 = vmatpush.bf16.msra.mxu0 %v974
      %1202 = vmatpush.bf16.msra.mxu0 %v973
      %1203 = vmatmul.bf16.gmra.mxu0 %v527
      %v1204 = vpop.f32.mrf.mxu0
      %v1205 = vadd.f32 %v1191, %v1204
      %v1206 = vpop.f32.mrf.mxu0
      %v1207 = vadd.f32 %v1193, %v1206
      %1208 = vdwg.mxu0
      %1209 = vmatpush.bf16.msra.mxu0 %v988
      %1210 = vmatpush.bf16.msra.mxu0 %v987
      %1211 = vmatpush.bf16.msra.mxu0 %v986
      %1212 = vmatpush.bf16.msra.mxu0 %v985
      %1213 = vmatpush.bf16.msra.mxu0 %v984
      %1214 = vmatpush.bf16.msra.mxu0 %v983
      %1215 = vmatpush.bf16.msra.mxu0 %v982
      %1216 = vmatpush.bf16.msra.mxu0 %v981
      %1217 = vmatmul.bf16.gmra.mxu0 %v528
      %v1218 = vpop.f32.mrf.mxu0
      %v1219 = vadd.f32 %v1205, %v1218
      %v1220 = vpop.f32.mrf.mxu0
      %v1221 = vadd.f32 %v1207, %v1220
      %1222 = vdwg.mxu0
      %1223 = vmatpush.bf16.msra.mxu0 %v996
      %1224 = vmatpush.bf16.msra.mxu0 %v995
      %1225 = vmatpush.bf16.msra.mxu0 %v994
      %1226 = vmatpush.bf16.msra.mxu0 %v993
      %1227 = vmatpush.bf16.msra.mxu0 %v992
      %1228 = vmatpush.bf16.msra.mxu0 %v991
      %1229 = vmatpush.bf16.msra.mxu0 %v990
      %1230 = vmatpush.bf16.msra.mxu0 %v989
      %1231 = vmatmul.bf16.gmra.mxu0 %v529
      %v1232 = vpop.f32.mrf.mxu0
      %v1233 = vadd.f32 %v1219, %v1232
      %v1234 = vpop.f32.mrf.mxu0
      %v1235 = vadd.f32 %v1221, %v1234
      %1236 = vdwg.mxu0
      %1237 = vmatpush.bf16.msra.mxu0 %v1004
      %1238 = vmatpush.bf16.msra.mxu0 %v1003
      %1239 = vmatpush.bf16.msra.mxu0 %v1002
      %1240 = vmatpush.bf16.msra.mxu0 %v1001
      %1241 = vmatpush.bf16.msra.mxu0 %v1000
      %1242 = vmatpush.bf16.msra.mxu0 %v999
      %1243 = vmatpush.bf16.msra.mxu0 %v998
      %1244 = vmatpush.bf16.msra.mxu0 %v997
      %1245 = vmatmul.bf16.gmra.mxu0 %v530
      %v1246 = vpop.f32.mrf.mxu0
      %v1247 = vadd.f32 %v1233, %v1246
      %v1248 = vpop.f32.mrf.mxu0
      %v1249 = vadd.f32 %v1235, %v1248
      %1250 = vdwg.mxu0
      %1251 = vmatpush.bf16.msra.mxu0 %v1012
      %1252 = vmatpush.bf16.msra.mxu0 %v1011
      %1253 = vmatpush.bf16.msra.mxu0 %v1010
      %1254 = vmatpush.bf16.msra.mxu0 %v1009
      %1255 = vmatpush.bf16.msra.mxu0 %v1008
      %1256 = vmatpush.bf16.msra.mxu0 %v1007
      %1257 = vmatpush.bf16.msra.mxu0 %v1006
      %1258 = vmatpush.bf16.msra.mxu0 %v1005
      %1259 = vmatmul.bf16.gmra.mxu0 %v531
      %v1260 = vpop.f32.mrf.mxu0
      %v1261 = vadd.f32 %v1247, %v1260
      %v1262 = vpop.f32.mrf.mxu0
      %v1263 = vadd.f32 %v1249, %v1262
      %1264 = vdwg.mxu0
      %1265 = vmatpush.bf16.msra.mxu0 %v1020
      %1266 = vmatpush.bf16.msra.mxu0 %v1019
      %1267 = vmatpush.bf16.msra.mxu0 %v1018
      %1268 = vmatpush.bf16.msra.mxu0 %v1017
      %1269 = vmatpush.bf16.msra.mxu0 %v1016
      %1270 = vmatpush.bf16.msra.mxu0 %v1015
      %1271 = vmatpush.bf16.msra.mxu0 %v1014
      %1272 = vmatpush.bf16.msra.mxu0 %v1013
      %1273 = vmatmul.bf16.gmra.mxu0 %v532
      %v1274 = vpop.f32.mrf.mxu0
      %v1275 = vadd.f32 %v1261, %v1274
      %v1276 = vpop.f32.mrf.mxu0
      %v1277 = vadd.f32 %v1263, %v1276
      %1278 = vdwg.mxu0
      %1279 = vmatpush.bf16.msra.mxu0 %v1028
      %1280 = vmatpush.bf16.msra.mxu0 %v1027
      %1281 = vmatpush.bf16.msra.mxu0 %v1026
      %1282 = vmatpush.bf16.msra.mxu0 %v1025
      %1283 = vmatpush.bf16.msra.mxu0 %v1024
      %1284 = vmatpush.bf16.msra.mxu0 %v1023
      %1285 = vmatpush.bf16.msra.mxu0 %v1022
      %1286 = vmatpush.bf16.msra.mxu0 %v1021
      %1287 = vmatmul.bf16.gmra.mxu0 %v533
      %v1288 = vpop.f32.mrf.mxu0
      %v1289 = vadd.f32 %v1275, %v1288
      %v1290 = vpop.f32.mrf.mxu0
      %v1291 = vadd.f32 %v1277, %v1290
      %1292 = vdwg.mxu0
      %1293 = vmatpush.bf16.msra.mxu0 %v1036
      %1294 = vmatpush.bf16.msra.mxu0 %v1035
      %1295 = vmatpush.bf16.msra.mxu0 %v1034
      %1296 = vmatpush.bf16.msra.mxu0 %v1033
      %1297 = vmatpush.bf16.msra.mxu0 %v1032
      %1298 = vmatpush.bf16.msra.mxu0 %v1031
      %1299 = vmatpush.bf16.msra.mxu0 %v1030
      %1300 = vmatpush.bf16.msra.mxu0 %v1029
      %1301 = vmatmul.bf16.gmra.mxu0 %v534
      %v1302 = vpop.f32.mrf.mxu0
      %v1303 = vadd.f32 %v1289, %v1302
      %v1304 = vpop.f32.mrf.mxu0
      %v1305 = vadd.f32 %v1291, %v1304
      %1306 = vdwg.mxu0
      %1307 = vmatpush.bf16.msra.mxu0 %v1044
      %1308 = vmatpush.bf16.msra.mxu0 %v1043
      %1309 = vmatpush.bf16.msra.mxu0 %v1042
      %1310 = vmatpush.bf16.msra.mxu0 %v1041
      %1311 = vmatpush.bf16.msra.mxu0 %v1040
      %1312 = vmatpush.bf16.msra.mxu0 %v1039
      %1313 = vmatpush.bf16.msra.mxu0 %v1038
      %1314 = vmatpush.bf16.msra.mxu0 %v1037
      %1315 = vmatmul.bf16.gmra.mxu0 %v535
      %v1316 = vpop.f32.mrf.mxu0
      %v1317 = vadd.f32 %v1303, %v1316
      %v1318 = vpop.f32.mrf.mxu0
      %v1319 = vadd.f32 %v1305, %v1318
      %1320 = vdwg.mxu0
      %1321 = vmatpush.bf16.msra.mxu0 0
      %1322 = vmatpush.bf16.msra.mxu0 0
      %1323 = vmatpush.bf16.msra.mxu0 0
      %1324 = vmatpush.bf16.msra.mxu0 0
      %1325 = vmatpush.bf16.msra.mxu0 %v1048
      %1326 = vmatpush.bf16.msra.mxu0 %v1047
      %1327 = vmatpush.bf16.msra.mxu0 %v1046
      %1328 = vmatpush.bf16.msra.mxu0 %v1045
      %1329 = vmatmul.bf16.gmra.mxu0 %v1151
      %v1330 = vpop.f32.mrf.mxu0
      %v1331 = vadd.f32 %v1317, %v1330
      %v1332 = vpop.f32.mrf.mxu0
      %v1333 = vadd.f32 %v1319, %v1332
      %1334 = vdwg.mxu0
      %v1335 = vld [vmem:[%s256] sm:$0x1]
      %v1337 = vperm.slane %v1335, 0
      %v1339 = vmul.f32 %v1331, %v1337
      %v1340 = vmul.f32 %v1333, %v1337
      %v1341 = vld [vmem:[%s259] sm:$0x1]
      %v1343 = vperm.slane %v1341, 0
      %v1345 = vadd.f32 %v1339, %v1343
      %v1346 = vadd.f32 %v1340, %v1343
      %v1347 = vmax.f32 %v1345, 0.0
      %v1348 = vmax.f32 %v1346, 0.0
      %v1349 = vpack.c.bf16 %v1347, %v1347
      %v1350 = vpack.c.bf16 %v1348, %v1348
      %1351 = vst [vmem:[%s267] sm:$0xf] %v1349
      %1352 = vst [vmem:[%s267 + $0x4] sm:$0xf] %v1350
      %s1353 = smul.u32 2, %s19
      %p1354 = scmp.lt.s32.totalorder %s1353, 3
      %s1355 = scalar_select %p1354, %s1353, 3
      %p1356 = scmp.lt.s32.totalorder %s20, 0
      %s1357 = scalar_select %p1356, %s20, 0
      %s1358 = sadd.s32 %s1357, %s1355
      %s1359 = smul.addr %s1358, 4
      %s1360 = scalar_lea.vmem %s4, %s1359
      // Predicated region
      $region37: #{_lambda_.8} parent=35 // pred_check
        %p1361 = pneg %p151
      $region38: #{_lambda_.8} parent=35 // pred_check_branch
        %1363 = sbr.rel (%p1361) target = $region40
      $region39: #{_lambda_.8} parent=35 // pred_region
        %s1364 = smul.u32 2, %s19
      $region40: #{_lambda_.8} parent=35 // pred_fallthru
        _
    $region36: #{_lambda_.8} parent=5 // pred_fallthru
      _
    %p1365 = scmp.le.s32.totalorder 2, %s10
    // Predicated region
    $region41: #{_lambda_.8} parent=5 // pred_check
      %p1366 = pneg %p1365
    $region42: #{_lambda_.8} parent=5 // pred_check_branch
      %1368 = sbr.rel (%p1366) target = $region44
    $region43: #{_lambda_.8} parent=5 // pred_region
      %s1369 = ssub.s32 %s10, 2
      // Predicated region
      $region45: #{_lambda_.8} parent=43 // pred_check
        %p1370 = pneg %p157
      $region46: #{_lambda_.8} parent=43 // pred_check_branch
        %1372 = sbr.rel (%p1370) target = $region48
      $region47: #{_lambda_.8} parent=43 // pred_region
        %s1373 = smul.u32 2, %s21
        %p1374 = scmp.lt.s32.totalorder %s1373, 3
        %s1375 = scalar_select %p1374, %s1373, 3
        %p1376 = scmp.lt.s32.totalorder %s22, 0
        %s1377 = scalar_select %p1376, %s22, 0
        %s1378 = sadd.s32 %s1377, %s1375
        %s1379 = smul.addr %s1378, 4
        %s1380 = scalar_lea.vmem %s4, %s1379
      $region48: #{_lambda_.8} parent=43 // pred_fallthru
        _
    $region44: #{_lambda_.8} parent=5 // pred_fallthru
      _
  $region6: #{_lambda_.8} parent=0 // loop_footer
    %s14 = sadd.s32 1, %s10
  $region7: #{_lambda_.8} parent=0 // loop_footer_branch
    %9 = sbr.rel target = $region3
  $region8: #{_lambda_.8} parent=0 // loop_exit
    _

// kernel: _lambda_.9
$region0: #{_lambda_.9}
  #allocation0 [shape = 'u32[]', space=smem, size = 0x4, offset = 0x4, fixed_abs, tag = 'smem constant byte address 0x4 - core index']
  #allocation1 [shape = 'u32[72,128]{1,0:T(1,128)}', space=vmem, size = 0x9000, scoped, tag = 'internal scratch']
  %s0 = inlined_call_operand.vmem [shape: bf16[16,64], index: 0, kind: input, shape index: {}]
  %s1 = inlined_call_operand.vmem [shape: bf16[64,128], index: 1, kind: input, shape index: {}]
  %s2 = inlined_call_operand.vmem [shape: f32[1,128], index: 2, kind: input, shape index: {}]
  %s3 = inlined_call_operand.vmem [shape: bf16[32,32], index: 3, kind: input, shape index: {}]
  %s4 = inlined_call_operand.vmem [shape: bf16[32,32], index: 4, kind: input, shape index: {}]
  %s5 = inlined_call_operand.vmem [shape: bf16[32,32], index: 5, kind: input, shape index: {}]
  %s6 = inlined_call_operand.vmem [shape: f32[2,32], index: 6, kind: output, shape index: {}]
  %s7 = sld [smem:[#allocation0]]
  $region34: #{_lambda_.9} parent=0
    _
  %s9 = ssub.s32 1, %s7
  %s10 = scalar_select 0, %s9, %s7
  // Predicated region
  $region2: #{_lambda_.9} parent=0 // pred_check
    _
  $region3: #{_lambda_.9} parent=0 // pred_check_branch
    %12 = sbr.rel (0) target = $region5
  $region4: #{_lambda_.9} parent=0 // pred_region
    _
  $region5: #{_lambda_.9} parent=0 // pred_fallthru
    _
  // Predicated region
  $region6: #{_lambda_.9} parent=0 // pred_check
    _
  $region7: #{_lambda_.9} parent=0 // pred_check_branch
    %14 = sbr.rel (0) target = $region9
  $region8: #{_lambda_.9} parent=0 // pred_region
    _
  $region9: #{_lambda_.9} parent=0 // pred_fallthru
    _
  // Predicated region
  $region10: #{_lambda_.9} parent=0 // pred_check
    _
  $region11: #{_lambda_.9} parent=0 // pred_check_branch
    %16 = sbr.rel (0) target = $region13
  $region12: #{_lambda_.9} parent=0 // pred_region
    _
  $region13: #{_lambda_.9} parent=0 // pred_fallthru
    _
  // Predicated region
  $region14: #{_lambda_.9} parent=0 // pred_check
    _
  $region15: #{_lambda_.9} parent=0 // pred_check_branch
    %18 = sbr.rel (0) target = $region17
  $region16: #{_lambda_.9} parent=0 // pred_region
    _
  $region17: #{_lambda_.9} parent=0 // pred_fallthru
    _
  // Predicated region
  $region18: #{_lambda_.9} parent=0 // pred_check
    _
  $region19: #{_lambda_.9} parent=0 // pred_check_branch
    %20 = sbr.rel (0) target = $region21
  $region20: #{_lambda_.9} parent=0 // pred_region
    _
  $region21: #{_lambda_.9} parent=0 // pred_fallthru
    _
  // Predicated region
  $region22: #{_lambda_.9} parent=0 // pred_check
    _
  $region23: #{_lambda_.9} parent=0 // pred_check_branch
    %22 = sbr.rel (0) target = $region25
  $region24: #{_lambda_.9} parent=0 // pred_region
    _
  $region25: #{_lambda_.9} parent=0 // pred_fallthru
    _
  %v24 = vld [vmem:[%s0] sm:$0xf]
  %v25 = vld [vmem:[%s0 + $0x4] sm:$0xf]
  %v26 = vld [vmem:[%s1] sm:$0xf]
  %v27 = vld [vmem:[%s1 + $0x4] sm:$0xf]
  %v28 = vld [vmem:[%s1 + $0x8] sm:$0xf]
  %v29 = vld [vmem:[%s1 + $0xc] sm:$0xf]
  %v30 = vld [vmem:[%s1 + $0x10] sm:$0xf]
  %v31 = vld [vmem:[%s1 + $0x14] sm:$0xf]
  %v32 = vld [vmem:[%s1 + $0x18] sm:$0xf]
  %v33 = vld [vmem:[%s1 + $0x1c] sm:$0xf]
  %v34 = vld [vmem:[%s2] sm:$0x1]
  %v36 = vperm.slane %v34, 0
  %v40 = vunpack.c.l.b16 %v24
  %v41 = vunpack.c.l.b16 %v25
  %v42 = vpack.c.b16 %v41, %v40
  %v51 = vunpack.c.l.b16 %v26
  %v52 = vunpack.c.l.b16 %v27
  %v53 = vunpack.c.l.b16 %v28
  %v54 = vunpack.c.l.b16 %v29
  %v55 = vunpack.c.l.b16 %v30
  %v56 = vunpack.c.l.b16 %v31
  %v57 = vunpack.c.l.b16 %v32
  %v58 = vunpack.c.l.b16 %v33
  %v59 = vpack.c.b16 %v52, %v51
  %v60 = vpack.c.b16 %v54, %v53
  %v61 = vpack.c.b16 %v56, %v55
  %v62 = vpack.c.b16 %v58, %v57
  %vm67 = vcmask 523264
  %v69 = vsel %vm67, %v42, 0
  %71 = vmatpush.bf16.msra.mxu0 0
  %72 = vmatpush.bf16.msra.mxu0 0
  %73 = vmatpush.bf16.msra.mxu0 0
  %74 = vmatpush.bf16.msra.mxu0 0
  %75 = vmatpush.bf16.msra.mxu0 %v62
  %76 = vmatpush.bf16.msra.mxu0 %v61
  %77 = vmatpush.bf16.msra.mxu0 %v60
  %78 = vmatpush.bf16.msra.mxu0 %v59
  %79 = vmatmul.bf16.gmra.mxu0 %v69
  %v80 = vpop.f32.mrf.mxu0
  %v81 = vadd.f32 %v36, %v80
  %v82 = vpop.f32.mrf.mxu0
  %v83 = vadd.f32 %v36, %v82
  %84 = vdwg.mxu0
  %87 = vrot.lane.b32.xlu0 %v81, 96
  %v88 = vpop.permute.xlu0 %87
  %89 = vrot.lane.b32.xlu0 %v83, 96
  %v90 = vpop.permute.xlu0 %89
  %v93 = vadd.f32 %v81, %v88
  %v94 = vadd.f32 %v83, %v90
  %v95 = vld [vmem:[%s3] sm:$0xf]
  %v96 = vld [vmem:[%s3 + $0x4] sm:$0xf]
  %v97 = vld [vmem:[%s3 + $0x8] sm:$0xf]
  %v98 = vld [vmem:[%s3 + $0xc] sm:$0xf]
  %v99 = vld [vmem:[%s4] sm:$0xf]
  %v100 = vld [vmem:[%s4 + $0x4] sm:$0xf]
  %v101 = vld [vmem:[%s4 + $0x8] sm:$0xf]
  %v102 = vld [vmem:[%s4 + $0xc] sm:$0xf]
  %v103 = vld [vmem:[%s5] sm:$0xf]
  %v104 = vld [vmem:[%s5 + $0x4] sm:$0xf]
  %v105 = vld [vmem:[%s5 + $0x8] sm:$0xf]
  %v106 = vld [vmem:[%s5 + $0xc] sm:$0xf]
  %v111 = vunpack.c.l.b16 %v95
  %v112 = vunpack.c.l.b16 %v96
  %v113 = vunpack.c.l.b16 %v97
  %v114 = vunpack.c.l.b16 %v98
  %v115 = vpack.c.b16 %v112, %v111
  %v116 = vpack.c.b16 %v114, %v113
  %vm119 = vcmask 261120
  %v121 = vsel %vm119, 0, 0
  %123 = vmatpush.bf16.msra.mxu0 0
  %124 = vmatpush.bf16.msra.mxu0 0
  %125 = vmatpush.bf16.msra.mxu0 0
  %126 = vmatpush.bf16.msra.mxu0 0
  %127 = vmatpush.bf16.msra.mxu0 0
  %128 = vmatpush.bf16.msra.mxu0 0
  %129 = vmatpush.bf16.msra.mxu0 %v116
  %130 = vmatpush.bf16.msra.mxu0 %v115
  %131 = vmatmul.bf16.gmra.mxu0 %v121
  %v132 = vpop.f32.mrf.mxu0
  %v133 = vadd.f32 0.0, %v132
  %v134 = vpop.f32.mrf.mxu0
  %135 = vdwg.mxu0
  %v136 = vadd.f32 %v81, %v133
  %v137 = vtanh.pop %v136
  %v142 = vunpack.c.l.b16 %v99
  %v143 = vunpack.c.l.b16 %v100
  %v144 = vunpack.c.l.b16 %v101
  %v145 = vunpack.c.l.b16 %v102
  %v146 = vpack.c.b16 %v143, %v142
  %v147 = vpack.c.b16 %v145, %v144
  %150 = vmatpush.bf16.msra.mxu0 0
  %151 = vmatpush.bf16.msra.mxu0 0
  %152 = vmatpush.bf16.msra.mxu0 0
  %153 = vmatpush.bf16.msra.mxu0 0
  %154 = vmatpush.bf16.msra.mxu0 0
  %155 = vmatpush.bf16.msra.mxu0 0
  %156 = vmatpush.bf16.msra.mxu0 %v147
  %157 = vmatpush.bf16.msra.mxu0 %v146
  %158 = vmatmul.bf16.gmra.mxu0 %v121
  %v159 = vpop.f32.mrf.mxu0
  %v160 = vadd.f32 0.0, %v159
  %v161 = vpop.f32.mrf.mxu0
  %162 = vdwg.mxu0
  %164 = vrot.lane.b32.xlu0 %v160, 32
  %v165 = vpop.permute.xlu0 %164
  %v167 = vadd.f32 %v81, %v165
  %v168 = vtanh.pop %v167
  %v173 = vunpack.c.l.b16 %v103
  %v174 = vunpack.c.l.b16 %v104
  %v175 = vunpack.c.l.b16 %v105
  %v176 = vunpack.c.l.b16 %v106
  %v177 = vpack.c.b16 %v174, %v173
  %v178 = vpack.c.b16 %v176, %v175
  %181 = vmatpush.bf16.msra.mxu0 0
  %182 = vmatpush.bf16.msra.mxu0 0
  %183 = vmatpush.bf16.msra.mxu0 0
  %184 = vmatpush.bf16.msra.mxu0 0
  %185 = vmatpush.bf16.msra.mxu0 0
  %186 = vmatpush.bf16.msra.mxu0 0
  %187 = vmatpush.bf16.msra.mxu0 %v178
  %188 = vmatpush.bf16.msra.mxu0 %v177
  %189 = vmatmul.bf16.gmra.mxu0 %v121
  %v190 = vpop.f32.mrf.mxu0
  %v191 = vadd.f32 0.0, %v190
  %v192 = vpop.f32.mrf.mxu0
  %193 = vdwg.mxu0
  %195 = vrot.lane.b32.xlu0 %v191, 64
  %v196 = vpop.permute.xlu0 %195
  %v198 = vadd.f32 %v93, %v196
  %v199 = vxor.u32 %v198, 2147483648
  %v200 = vmul.f32 %v199, 1.442695
  %v201 = vpow.pop %v200
  %v202 = vadd.f32 %v201, 1.0
  %v203 = vrcp.pop %v202
  %v204 = vmul.f32 %v202, %v203
  %v205 = vsub.f32 1.0, %v204
  %v206 = vmul.f32 %v203, %v205
  %v207 = vadd.f32 %v203, %v206
  %vm208 = vweird.f32 %v202
  %vm209 = vweird.f32 %v203
  %vm210 = vmor %vm208, %vm209
  %v211 = vsel %vm210, %v203, %v207
  %v212 = vand.u32 2147483647, %v202
  %vm213 = vcmp.eq.f32.partialorder %v212, 8.507059e+37
  %v214 = vand.u32 %v202, 2147483648
  %v215 = vor.u32 1.1754944e-38, %v214
  %v216 = vsel %vm213, %v215, %v211
  %v217 = vmul.f32 1.0, %v216
  %v218 = vsub.f32 1.0, %v217
  %220 = vrot.lane.b32.xlu0 %v218, 64
  %v221 = vpop.permute.xlu0 %220
  %v223 = vmul.f32 %v137, %v221
  %225 = vrot.lane.b32.xlu0 %v168, 32
  %v226 = vpop.permute.xlu0 %225
  %v228 = vmul.f32 %v217, %v226
  %230 = vrot.lane.b32.xlu0 %v228, 64
  %v231 = vpop.permute.xlu0 %230
  %v233 = vadd.f32 %v223, %v231
  %v234 = vpack.c.bf16 %v233, %v233
  %v236 = vsel %vm119, %v234, 0
  %238 = vmatpush.bf16.msra.mxu0 0
  %239 = vmatpush.bf16.msra.mxu0 0
  %240 = vmatpush.bf16.msra.mxu0 0
  %241 = vmatpush.bf16.msra.mxu0 0
  %242 = vmatpush.bf16.msra.mxu0 0
  %243 = vmatpush.bf16.msra.mxu0 0
  %244 = vmatpush.bf16.msra.mxu0 %v116
  %245 = vmatpush.bf16.msra.mxu0 %v115
  %246 = vmatmul.bf16.gmra.mxu0 %v236
  %v247 = vpop.f32.mrf.mxu0
  %v248 = vadd.f32 0.0, %v247
  %v249 = vpop.f32.mrf.mxu0
  %250 = vdwg.mxu0
  %v252 = vrot.slane %v248, 6
  %v254 = vadd.f32 %v81, %v252
  %v255 = vtanh.pop %v254
  %256 = vmatpush.bf16.msra.mxu0 0
  %257 = vmatpush.bf16.msra.mxu0 0
  %258 = vmatpush.bf16.msra.mxu0 0
  %259 = vmatpush.bf16.msra.mxu0 0
  %260 = vmatpush.bf16.msra.mxu0 0
  %261 = vmatpush.bf16.msra.mxu0 0
  %262 = vmatpush.bf16.msra.mxu0 %v147
  %263 = vmatpush.bf16.msra.mxu0 %v146
  %264 = vmatmul.bf16.gmra.mxu0 %v236
  %v265 = vpop.f32.mrf.mxu0
  %v266 = vadd.f32 0.0, %v265
  %v267 = vpop.f32.mrf.mxu0
  %268 = vdwg.mxu0
  %v270 = vrot.slane %v266, 6
  %271 = vrot.lane.b32.xlu0 %v270, 32
  %v272 = vpop.permute.xlu0 %271
  %v274 = vadd.f32 %v81, %v272
  %v275 = vtanh.pop %v274
  %276 = vmatpush.bf16.msra.mxu0 0
  %277 = vmatpush.bf16.msra.mxu0 0
  %278 = vmatpush.bf16.msra.mxu0 0
  %279 = vmatpush.bf16.msra.mxu0 0
  %280 = vmatpush.bf16.msra.mxu0 0
  %281 = vmatpush.bf16.msra.mxu0 0
  %282 = vmatpush.bf16.msra.mxu0 %v178
  %283 = vmatpush.bf16.msra.mxu0 %v177
  %284 = vmatmul.bf16.gmra.mxu0 %v236
  %v285 = vpop.f32.mrf.mxu0
  %v286 = vadd.f32 0.0, %v285
  %v287 = vpop.f32.mrf.mxu0
  %288 = vdwg.mxu0
  %v290 = vrot.slane %v286, 6
  %291 = vrot.lane.b32.xlu0 %v290, 64
  %v292 = vpop.permute.xlu0 %291
  %v294 = vadd.f32 %v93, %v292
  %v295 = vxor.u32 %v294, 2147483648
  %v296 = vmul.f32 %v295, 1.442695
  %v297 = vpow.pop %v296
  %v298 = vadd.f32 %v297, 1.0
  %v299 = vrcp.pop %v298
  %v300 = vmul.f32 %v298, %v299
  %v301 = vsub.f32 1.0, %v300
  %v302 = vmul.f32 %v299, %v301
  %v303 = vadd.f32 %v299, %v302
  %vm304 = vweird.f32 %v298
  %vm305 = vweird.f32 %v299
  %vm306 = vmor %vm304, %vm305
  %v307 = vsel %vm306, %v299, %v303
  %v308 = vand.u32 2147483647, %v298
  %vm309 = vcmp.eq.f32.partialorder %v308, 8.507059e+37
  %v310 = vand.u32 %v298, 2147483648
  %v311 = vor.u32 1.1754944e-38, %v310
  %v312 = vsel %vm309, %v311, %v307
  %v313 = vmul.f32 1.0, %v312
  %v314 = vsub.f32 1.0, %v313
  %316 = vrot.lane.b32.xlu0 %v314, 64
  %v317 = vpop.permute.xlu0 %316
  %v319 = vmul.f32 %v255, %v317
  %321 = vrot.lane.b32.xlu0 %v275, 32
  %v322 = vpop.permute.xlu0 %321
  %v324 = vmul.f32 %v313, %v322
  %326 = vrot.lane.b32.xlu0 %v324, 64
  %v327 = vpop.permute.xlu0 %326
  %v329 = vadd.f32 %v319, %v327
  %v330 = vpack.c.bf16 %v329, %v329
  %v332 = vrot.slane %v330, 1
  %v334 = vsel %vm119, %v332, 0
  %336 = vmatpush.bf16.msra.mxu0 0
  %337 = vmatpush.bf16.msra.mxu0 0
  %338 = vmatpush.bf16.msra.mxu0 0
  %339 = vmatpush.bf16.msra.mxu0 0
  %340 = vmatpush.bf16.msra.mxu0 0
  %341 = vmatpush.bf16.msra.mxu0 0
  %342 = vmatpush.bf16.msra.mxu0 %v116
  %343 = vmatpush.bf16.msra.mxu0 %v115
  %344 = vmatmul.bf16.gmra.mxu0 %v334
  %v345 = vpop.f32.mrf.mxu0
  %v346 = vadd.f32 0.0, %v345
  %v347 = vpop.f32.mrf.mxu0
  %348 = vdwg.mxu0
  %v350 = vrot.slane %v346, 4
  %v352 = vadd.f32 %v81, %v350
  %v353 = vtanh.pop %v352
  %354 = vmatpush.bf16.msra.mxu0 0
  %355 = vmatpush.bf16.msra.mxu0 0
  %356 = vmatpush.bf16.msra.mxu0 0
  %357 = vmatpush.bf16.msra.mxu0 0
  %358 = vmatpush.bf16.msra.mxu0 0
  %359 = vmatpush.bf16.msra.mxu0 0
  %360 = vmatpush.bf16.msra.mxu0 %v147
  %361 = vmatpush.bf16.msra.mxu0 %v146
  %362 = vmatmul.bf16.gmra.mxu0 %v334
  %v363 = vpop.f32.mrf.mxu0
  %v364 = vadd.f32 0.0, %v363
  %v365 = vpop.f32.mrf.mxu0
  %366 = vdwg.mxu0
  %v368 = vrot.slane %v364, 4
  %369 = vrot.lane.b32.xlu0 %v368, 32
  %v370 = vpop.permute.xlu0 %369
  %v372 = vadd.f32 %v81, %v370
  %v373 = vtanh.pop %v372
  %374 = vmatpush.bf16.msra.mxu0 0
  %375 = vmatpush.bf16.msra.mxu0 0
  %376 = vmatpush.bf16.msra.mxu0 0
  %377 = vmatpush.bf16.msra.mxu0 0
  %378 = vmatpush.bf16.msra.mxu0 0
  %379 = vmatpush.bf16.msra.mxu0 0
  %380 = vmatpush.bf16.msra.mxu0 %v178
  %381 = vmatpush.bf16.msra.mxu0 %v177
  %382 = vmatmul.bf16.gmra.mxu0 %v334
  %v383 = vpop.f32.mrf.mxu0
  %v384 = vadd.f32 0.0, %v383
  %v385 = vpop.f32.mrf.mxu0
  %386 = vdwg.mxu0
  %v388 = vrot.slane %v384, 4
  %389 = vrot.lane.b32.xlu0 %v388, 64
  %v390 = vpop.permute.xlu0 %389
  %v392 = vadd.f32 %v93, %v390
  %v393 = vxor.u32 %v392, 2147483648
  %v394 = vmul.f32 %v393, 1.442695
  %v395 = vpow.pop %v394
  %v396 = vadd.f32 %v395, 1.0
  %v397 = vrcp.pop %v396
  %v398 = vmul.f32 %v396, %v397
  %v399 = vsub.f32 1.0, %v398
  %v400 = vmul.f32 %v397, %v399
  %v401 = vadd.f32 %v397, %v400
  %vm402 = vweird.f32 %v396
  %vm403 = vweird.f32 %v397
  %vm404 = vmor %vm402, %vm403
  %v405 = vsel %vm404, %v397, %v401
  %v406 = vand.u32 2147483647, %v396
  %vm407 = vcmp.eq.f32.partialorder %v406, 8.507059e+37
  %v408 = vand.u32 %v396, 2147483648
  %v409 = vor.u32 1.1754944e-38, %v408
  %v410 = vsel %vm407, %v409, %v405
  %v411 = vmul.f32 1.0, %v410
  %v412 = vsub.f32 1.0, %v411
  %414 = vrot.lane.b32.xlu0 %v412, 64
  %v415 = vpop.permute.xlu0 %414
  %v417 = vmul.f32 %v353, %v415
  %419 = vrot.lane.b32.xlu0 %v373, 32
  %v420 = vpop.permute.xlu0 %419
  %v422 = vmul.f32 %v411, %v420
  %424 = vrot.lane.b32.xlu0 %v422, 64
  %v425 = vpop.permute.xlu0 %424
  %v427 = vadd.f32 %v417, %v425
  %v428 = vpack.c.bf16 %v427, %v427
  %v430 = vrot.slane %v428, 2
  %v432 = vsel %vm119, %v430, 0
  %434 = vmatpush.bf16.msra.mxu0 0
  %435 = vmatpush.bf16.msra.mxu0 0
  %436 = vmatpush.bf16.msra.mxu0 0
  %437 = vmatpush.bf16.msra.mxu0 0
  %438 = vmatpush.bf16.msra.mxu0 0
  %439 = vmatpush.bf16.msra.mxu0 0
  %440 = vmatpush.bf16.msra.mxu0 %v116
  %441 = vmatpush.bf16.msra.mxu0 %v115
  %442 = vmatmul.bf16.gmra.mxu0 %v432
  %v443 = vpop.f32.mrf.mxu0
  %v444 = vadd.f32 0.0, %v443
  %v445 = vpop.f32.mrf.mxu0
  %446 = vdwg.mxu0
  %v448 = vrot.slane %v444, 2
  %v450 = vadd.f32 %v81, %v448
  %v451 = vtanh.pop %v450
  %452 = vmatpush.bf16.msra.mxu0 0
  %453 = vmatpush.bf16.msra.mxu0 0
  %454 = vmatpush.bf16.msra.mxu0 0
  %455 = vmatpush.bf16.msra.mxu0 0
  %456 = vmatpush.bf16.msra.mxu0 0
  %457 = vmatpush.bf16.msra.mxu0 0
  %458 = vmatpush.bf16.msra.mxu0 %v147
  %459 = vmatpush.bf16.msra.mxu0 %v146
  %460 = vmatmul.bf16.gmra.mxu0 %v432
  %v461 = vpop.f32.mrf.mxu0
  %v462 = vadd.f32 0.0, %v461
  %v463 = vpop.f32.mrf.mxu0
  %464 = vdwg.mxu0
  %v466 = vrot.slane %v462, 2
  %467 = vrot.lane.b32.xlu0 %v466, 32
  %v468 = vpop.permute.xlu0 %467
  %v470 = vadd.f32 %v81, %v468
  %v471 = vtanh.pop %v470
  %472 = vmatpush.bf16.msra.mxu0 0
  %473 = vmatpush.bf16.msra.mxu0 0
  %474 = vmatpush.bf16.msra.mxu0 0
  %475 = vmatpush.bf16.msra.mxu0 0
  %476 = vmatpush.bf16.msra.mxu0 0
  %477 = vmatpush.bf16.msra.mxu0 0
  %478 = vmatpush.bf16.msra.mxu0 %v178
  %479 = vmatpush.bf16.msra.mxu0 %v177
  %480 = vmatmul.bf16.gmra.mxu0 %v432
  %v481 = vpop.f32.mrf.mxu0
  %v482 = vadd.f32 0.0, %v481
  %v483 = vpop.f32.mrf.mxu0
  %484 = vdwg.mxu0
  %v486 = vrot.slane %v482, 2
  %487 = vrot.lane.b32.xlu0 %v486, 64
  %v488 = vpop.permute.xlu0 %487
  %v490 = vadd.f32 %v93, %v488
  %v491 = vxor.u32 %v490, 2147483648
  %v492 = vmul.f32 %v491, 1.442695
  %v493 = vpow.pop %v492
  %v494 = vadd.f32 %v493, 1.0
  %v495 = vrcp.pop %v494
  %v496 = vmul.f32 %v494, %v495
  %v497 = vsub.f32 1.0, %v496
  %v498 = vmul.f32 %v495, %v497
  %v499 = vadd.f32 %v495, %v498
  %vm500 = vweird.f32 %v494
  %vm501 = vweird.f32 %v495
  %vm502 = vmor %vm500, %vm501
  %v503 = vsel %vm502, %v495, %v499
  %v504 = vand.u32 2147483647, %v494
  %vm505 = vcmp.eq.f32.partialorder %v504, 8.507059e+37
  %v506 = vand.u32 %v494, 2147483648
  %v507 = vor.u32 1.1754944e-38, %v506
  %v508 = vsel %vm505, %v507, %v503
  %v509 = vmul.f32 1.0, %v508
  %v510 = vsub.f32 1.0, %v509
  %512 = vrot.lane.b32.xlu0 %v510, 64
  %v513 = vpop.permute.xlu0 %512
  %v515 = vmul.f32 %v451, %v513
  %517 = vrot.lane.b32.xlu0 %v471, 32
  %v518 = vpop.permute.xlu0 %517
  %v520 = vmul.f32 %v509, %v518
  %522 = vrot.lane.b32.xlu0 %v520, 64
  %v523 = vpop.permute.xlu0 %522
  %v525 = vadd.f32 %v515, %v523
  %v526 = vpack.c.bf16 %v525, %v525
  %v528 = vrot.slane %v526, 3
  %v530 = vsel %vm119, %v528, 0
  %532 = vmatpush.bf16.msra.mxu0 0
  %533 = vmatpush.bf16.msra.mxu0 0
  %534 = vmatpush.bf16.msra.mxu0 0
  %535 = vmatpush.bf16.msra.mxu0 0
  %536 = vmatpush.bf16.msra.mxu0 0
  %537 = vmatpush.bf16.msra.mxu0 0
  %538 = vmatpush.bf16.msra.mxu0 %v116
  %539 = vmatpush.bf16.msra.mxu0 %v115
  %540 = vmatmul.bf16.gmra.mxu0 %v530
  %v541 = vpop.f32.mrf.mxu0
  %v542 = vadd.f32 0.0, %v541
  %v543 = vpop.f32.mrf.mxu0
  %544 = vdwg.mxu0
  %v545 = vadd.f32 %v83, %v542
  %v546 = vtanh.pop %v545
  %547 = vmatpush.bf16.msra.mxu0 0
  %548 = vmatpush.bf16.msra.mxu0 0
  %549 = vmatpush.bf16.msra.mxu0 0
  %550 = vmatpush.bf16.msra.mxu0 0
  %551 = vmatpush.bf16.msra.mxu0 0
  %552 = vmatpush.bf16.msra.mxu0 0
  %553 = vmatpush.bf16.msra.mxu0 %v147
  %554 = vmatpush.bf16.msra.mxu0 %v146
  %555 = vmatmul.bf16.gmra.mxu0 %v530
  %v556 = vpop.f32.mrf.mxu0
  %v557 = vadd.f32 0.0, %v556
  %v558 = vpop.f32.mrf.mxu0
  %559 = vdwg.mxu0
  %561 = vrot.lane.b32.xlu0 %v557, 32
  %v562 = vpop.permute.xlu0 %561
  %v564 = vadd.f32 %v83, %v562
  %v565 = vtanh.pop %v564
  %566 = vmatpush.bf16.msra.mxu0 0
  %567 = vmatpush.bf16.msra.mxu0 0
  %568 = vmatpush.bf16.msra.mxu0 0
  %569 = vmatpush.bf16.msra.mxu0 0
  %570 = vmatpush.bf16.msra.mxu0 0
  %571 = vmatpush.bf16.msra.mxu0 0
  %572 = vmatpush.bf16.msra.mxu0 %v178
  %573 = vmatpush.bf16.msra.mxu0 %v177
  %574 = vmatmul.bf16.gmra.mxu0 %v530
  %v575 = vpop.f32.mrf.mxu0
  %v576 = vadd.f32 0.0, %v575
  %v577 = vpop.f32.mrf.mxu0
  %578 = vdwg.mxu0
  %580 = vrot.lane.b32.xlu0 %v576, 64
  %v581 = vpop.permute.xlu0 %580
  %v583 = vadd.f32 %v94, %v581
  %v584 = vxor.u32 %v583, 2147483648
  %v585 = vmul.f32 %v584, 1.442695
  %v586 = vpow.pop %v585
  %v587 = vadd.f32 %v586, 1.0
  %v588 = vrcp.pop %v587
  %v589 = vmul.f32 %v587, %v588
  %v590 = vsub.f32 1.0, %v589
  %v591 = vmul.f32 %v588, %v590
  %v592 = vadd.f32 %v588, %v591
  %vm593 = vweird.f32 %v587
  %vm594 = vweird.f32 %v588
  %vm595 = vmor %vm593, %vm594
  %v596 = vsel %vm595, %v588, %v592
  %v597 = vand.u32 2147483647, %v587
  %vm598 = vcmp.eq.f32.partialorder %v597, 8.507059e+37
  %v599 = vand.u32 %v587, 2147483648
  %v600 = vor.u32 1.1754944e-38, %v599
  %v601 = vsel %vm598, %v600, %v596
  %v602 = vmul.f32 1.0, %v601
  %v603 = vsub.f32 1.0, %v602
  %605 = vrot.lane.b32.xlu0 %v603, 64
  %v606 = vpop.permute.xlu0 %605
  %v608 = vmul.f32 %v546, %v606
  %610 = vrot.lane.b32.xlu0 %v565, 32
  %v611 = vpop.permute.xlu0 %610
  %v613 = vmul.f32 %v602, %v611
  %615 = vrot.lane.b32.xlu0 %v613, 64
  %v616 = vpop.permute.xlu0 %615
  %v618 = vadd.f32 %v608, %v616
  %v619 = vpack.c.bf16 %v618, %v618
  %v621 = vsel %vm119, %v619, 0
  %623 = vmatpush.bf16.msra.mxu0 0
  %624 = vmatpush.bf16.msra.mxu0 0
  %625 = vmatpush.bf16.msra.mxu0 0
  %626 = vmatpush.bf16.msra.mxu0 0
  %627 = vmatpush.bf16.msra.mxu0 0
  %628 = vmatpush.bf16.msra.mxu0 0
  %629 = vmatpush.bf16.msra.mxu0 %v116
  %630 = vmatpush.bf16.msra.mxu0 %v115
  %631 = vmatmul.bf16.gmra.mxu0 %v621
  %v632 = vpop.f32.mrf.mxu0
  %v633 = vadd.f32 0.0, %v632
  %v634 = vpop.f32.mrf.mxu0
  %635 = vdwg.mxu0
  %v637 = vrot.slane %v633, 6
  %v639 = vadd.f32 %v83, %v637
  %v640 = vtanh.pop %v639
  %641 = vmatpush.bf16.msra.mxu0 0
  %642 = vmatpush.bf16.msra.mxu0 0
  %643 = vmatpush.bf16.msra.mxu0 0
  %644 = vmatpush.bf16.msra.mxu0 0
  %645 = vmatpush.bf16.msra.mxu0 0
  %646 = vmatpush.bf16.msra.mxu0 0
  %647 = vmatpush.bf16.msra.mxu0 %v147
  %648 = vmatpush.bf16.msra.mxu0 %v146
  %649 = vmatmul.bf16.gmra.mxu0 %v621
  %v650 = vpop.f32.mrf.mxu0
  %v651 = vadd.f32 0.0, %v650
  %v652 = vpop.f32.mrf.mxu0
  %653 = vdwg.mxu0
  %v655 = vrot.slane %v651, 6
  %656 = vrot.lane.b32.xlu0 %v655, 32
  %v657 = vpop.permute.xlu0 %656
  %v659 = vadd.f32 %v83, %v657
  %v660 = vtanh.pop %v659
  %661 = vmatpush.bf16.msra.mxu0 0
  %662 = vmatpush.bf16.msra.mxu0 0
  %663 = vmatpush.bf16.msra.mxu0 0
  %664 = vmatpush.bf16.msra.mxu0 0
  %665 = vmatpush.bf16.msra.mxu0 0
  %666 = vmatpush.bf16.msra.mxu0 0
  %667 = vmatpush.bf16.msra.mxu0 %v178
  %668 = vmatpush.bf16.msra.mxu0 %v177
  %669 = vmatmul.bf16.gmra.mxu0 %v621
  %v670 = vpop.f32.mrf.mxu0
  %v671 = vadd.f32 0.0, %v670
  %v672 = vpop.f32.mrf.mxu0
  %673 = vdwg.mxu0
  %v675 = vrot.slane %v671, 6
  %676 = vrot.lane.b32.xlu0 %v675, 64
  %v677 = vpop.permute.xlu0 %676
  %v679 = vadd.f32 %v94, %v677
  %v680 = vxor.u32 %v679, 2147483648
  %v681 = vmul.f32 %v680, 1.442695
  %v682 = vpow.pop %v681
  %v683 = vadd.f32 %v682, 1.0
  %v684 = vrcp.pop %v683
  %v685 = vmul.f32 %v683, %v684
  %v686 = vsub.f32 1.0, %v685
  %v687 = vmul.f32 %v684, %v686
  %v688 = vadd.f32 %v684, %v687
  %vm689 = vweird.f32 %v683
  %vm690 = vweird.f32 %v684
  %vm691 = vmor %vm689, %vm690
  %v692 = vsel %vm691, %v684, %v688
  %v693 = vand.u32 2147483647, %v683
  %vm694 = vcmp.eq.f32.partialorder %v693, 8.507059e+37
  %v695 = vand.u32 %v683, 2147483648
  %v696 = vor.u32 1.1754944e-38, %v695
  %v697 = vsel %vm694, %v696, %v692
  %v698 = vmul.f32 1.0, %v697
  %v699 = vsub.f32 1.0, %v698
  %701 = vrot.lane.b32.xlu0 %v699, 64
  %v702 = vpop.permute.xlu0 %701
  %v704 = vmul.f32 %v640, %v702
  %706 = vrot.lane.b32.xlu0 %v660, 32
  %v707 = vpop.permute.xlu0 %706
  %v709 = vmul.f32 %v698, %v707
  %711 = vrot.lane.b32.xlu0 %v709, 64
  %v712 = vpop.permute.xlu0 %711
  %v714 = vadd.f32 %v704, %v712
  %v715 = vpack.c.bf16 %v714, %v714
  %v717 = vrot.slane %v715, 1
  %v719 = vsel %vm119, %v717, 0
  %721 = vmatpush.bf16.msra.mxu0 0
  %722 = vmatpush.bf16.msra.mxu0 0
  %723 = vmatpush.bf16.msra.mxu0 0
  %724 = vmatpush.bf16.msra.mxu0 0
  %725 = vmatpush.bf16.msra.mxu0 0
  %726 = vmatpush.bf16.msra.mxu0 0
  %727 = vmatpush.bf16.msra.mxu0 %v116
  %728 = vmatpush.bf16.msra.mxu0 %v115
  %729 = vmatmul.bf16.gmra.mxu0 %v719
  %v730 = vpop.f32.mrf.mxu0
  %v731 = vadd.f32 0.0, %v730
  %v732 = vpop.f32.mrf.mxu0
  %733 = vdwg.mxu0
  %v735 = vrot.slane %v731, 4
  %v737 = vadd.f32 %v83, %v735
  %v738 = vtanh.pop %v737
  %739 = vmatpush.bf16.msra.mxu0 0
  %740 = vmatpush.bf16.msra.mxu0 0
  %741 = vmatpush.bf16.msra.mxu0 0
  %742 = vmatpush.bf16.msra.mxu0 0
  %743 = vmatpush.bf16.msra.mxu0 0
  %744 = vmatpush.bf16.msra.mxu0 0
  %745 = vmatpush.bf16.msra.mxu0 %v147
  %746 = vmatpush.bf16.msra.mxu0 %v146
  %747 = vmatmul.bf16.gmra.mxu0 %v719
  %v748 = vpop.f32.mrf.mxu0
  %v749 = vadd.f32 0.0, %v748
  %v750 = vpop.f32.mrf.mxu0
  %751 = vdwg.mxu0
  %v753 = vrot.slane %v749, 4
  %754 = vrot.lane.b32.xlu0 %v753, 32
  %v755 = vpop.permute.xlu0 %754
  %v757 = vadd.f32 %v83, %v755
  %v758 = vtanh.pop %v757
  %759 = vmatpush.bf16.msra.mxu0 0
  %760 = vmatpush.bf16.msra.mxu0 0
  %761 = vmatpush.bf16.msra.mxu0 0
  %762 = vmatpush.bf16.msra.mxu0 0
  %763 = vmatpush.bf16.msra.mxu0 0
  %764 = vmatpush.bf16.msra.mxu0 0
  %765 = vmatpush.bf16.msra.mxu0 %v178
  %766 = vmatpush.bf16.msra.mxu0 %v177
  %767 = vmatmul.bf16.gmra.mxu0 %v719
  %v768 = vpop.f32.mrf.mxu0
  %v769 = vadd.f32 0.0, %v768
  %v770 = vpop.f32.mrf.mxu0
  %771 = vdwg.mxu0
  %v773 = vrot.slane %v769, 4
  %774 = vrot.lane.b32.xlu0 %v773, 64
  %v775 = vpop.permute.xlu0 %774
  %v777 = vadd.f32 %v94, %v775
  %v778 = vxor.u32 %v777, 2147483648
  %v779 = vmul.f32 %v778, 1.442695
  %v780 = vpow.pop %v779
  %v781 = vadd.f32 %v780, 1.0
  %v782 = vrcp.pop %v781
  %v783 = vmul.f32 %v781, %v782
  %v784 = vsub.f32 1.0, %v783
  %v785 = vmul.f32 %v782, %v784
  %v786 = vadd.f32 %v782, %v785
  %vm787 = vweird.f32 %v781
  %vm788 = vweird.f32 %v782
  %vm789 = vmor %vm787, %vm788
  %v790 = vsel %vm789, %v782, %v786
  %v791 = vand.u32 2147483647, %v781
  %vm792 = vcmp.eq.f32.partialorder %v791, 8.507059e+37
  %v793 = vand.u32 %v781, 2147483648
  %v794 = vor.u32 1.1754944e-38, %v793
  %v795 = vsel %vm792, %v794, %v790
  %v796 = vmul.f32 1.0, %v795
  %v797 = vsub.f32 1.0, %v796
  %799 = vrot.lane.b32.xlu0 %v797, 64
  %v800 = vpop.permute.xlu0 %799
  %v802 = vmul.f32 %v738, %v800
  %804 = vrot.lane.b32.xlu0 %v758, 32
  %v805 = vpop.permute.xlu0 %804
  %v807 = vmul.f32 %v796, %v805
  %809 = vrot.lane.b32.xlu0 %v807, 64
  %v810 = vpop.permute.xlu0 %809
  %v812 = vadd.f32 %v802, %v810
  %v813 = vpack.c.bf16 %v812, %v812
  %v815 = vrot.slane %v813, 2
  %v817 = vsel %vm119, %v815, 0
  %819 = vmatpush.bf16.msra.mxu0 0
  %820 = vmatpush.bf16.msra.mxu0 0
  %821 = vmatpush.bf16.msra.mxu0 0
  %822 = vmatpush.bf16.msra.mxu0 0
  %823 = vmatpush.bf16.msra.mxu0 0
  %824 = vmatpush.bf16.msra.mxu0 0
  %825 = vmatpush.bf16.msra.mxu0 %v116
  %826 = vmatpush.bf16.msra.mxu0 %v115
  %827 = vmatmul.bf16.gmra.mxu0 %v817
  %v828 = vpop.f32.mrf.mxu0
  %v829 = vadd.f32 0.0, %v828
  %v830 = vpop.f32.mrf.mxu0
  %831 = vdwg.mxu0
  %v833 = vrot.slane %v829, 2
  %v835 = vadd.f32 %v83, %v833
  %v836 = vtanh.pop %v835
  %837 = vmatpush.bf16.msra.mxu0 0
  %838 = vmatpush.bf16.msra.mxu0 0
  %839 = vmatpush.bf16.msra.mxu0 0
  %840 = vmatpush.bf16.msra.mxu0 0
  %841 = vmatpush.bf16.msra.mxu0 0
  %842 = vmatpush.bf16.msra.mxu0 0
  %843 = vmatpush.bf16.msra.mxu0 %v147
  %844 = vmatpush.bf16.msra.mxu0 %v146
  %845 = vmatmul.bf16.gmra.mxu0 %v817
  %v846 = vpop.f32.mrf.mxu0
  %v847 = vadd.f32 0.0, %v846
  %v848 = vpop.f32.mrf.mxu0
  %849 = vdwg.mxu0
  %v851 = vrot.slane %v847, 2
  %852 = vrot.lane.b32.xlu0 %v851, 32
  %v853 = vpop.permute.xlu0 %852
  %v855 = vadd.f32 %v83, %v853
  %v856 = vtanh.pop %v855
  %857 = vmatpush.bf16.msra.mxu0 0
  %858 = vmatpush.bf16.msra.mxu0 0
  %859 = vmatpush.bf16.msra.mxu0 0
  %860 = vmatpush.bf16.msra.mxu0 0
  %861 = vmatpush.bf16.msra.mxu0 0
  %862 = vmatpush.bf16.msra.mxu0 0
  %863 = vmatpush.bf16.msra.mxu0 %v178
  %864 = vmatpush.bf16.msra.mxu0 %v177
  %865 = vmatmul.bf16.gmra.mxu0 %v817
  %v866 = vpop.f32.mrf.mxu0
  %v867 = vadd.f32 0.0, %v866
  %v868 = vpop.f32.mrf.mxu0
  %869 = vdwg.mxu0
  %v871 = vrot.slane %v867, 2
  %872 = vrot.lane.b32.xlu0 %v871, 64
  %v873 = vpop.permute.xlu0 %872
  %v875 = vadd.f32 %v94, %v873
  %v876 = vxor.u32 %v875, 2147483648
  %v877 = vmul.f32 %v876, 1.442695
  %v878 = vpow.pop %v877
  %v879 = vadd.f32 %v878, 1.0
  %v880 = vrcp.pop %v879
  %v881 = vmul.f32 %v879, %v880
  %v882 = vsub.f32 1.0, %v881
  %v883 = vmul.f32 %v880, %v882
  %v884 = vadd.f32 %v880, %v883
  %vm885 = vweird.f32 %v879
  %vm886 = vweird.f32 %v880
  %vm887 = vmor %vm885, %vm886
  %v888 = vsel %vm887, %v880, %v884
  %v889 = vand.u32 2147483647, %v879
  %vm890 = vcmp.eq.f32.partialorder %v889, 8.507059e+37
  %v891 = vand.u32 %v879, 2147483648
  %v892 = vor.u32 1.1754944e-38, %v891
  %v893 = vsel %vm890, %v892, %v888
  %v894 = vmul.f32 1.0, %v893
  %v895 = vsub.f32 1.0, %v894
  %897 = vrot.lane.b32.xlu0 %v895, 64
  %v898 = vpop.permute.xlu0 %897
  %v900 = vmul.f32 %v836, %v898
  %902 = vrot.lane.b32.xlu0 %v856, 32
  %v903 = vpop.permute.xlu0 %902
  %v905 = vmul.f32 %v894, %v903
  %907 = vrot.lane.b32.xlu0 %v905, 64
  %v908 = vpop.permute.xlu0 %907
  %v910 = vadd.f32 %v900, %v908
  %vm911 = vcmask 261126
  %912 = vst.msk [vmem:[%s6 - $0x6] sm:$0xc0] %vm911, %v910
  // Predicated region
  $region26: #{_lambda_.9} parent=0 // pred_check
    _
  $region27: #{_lambda_.9} parent=0 // pred_check_branch
    %914 = sbr.rel (0) target = $region29
  $region28: #{_lambda_.9} parent=0 // pred_region
    _
  $region29: #{_lambda_.9} parent=0 // pred_fallthru
    _
  // Predicated region
  $region30: #{_lambda_.9} parent=0 // pred_check
    _
  $region31: #{_lambda_.9} parent=0 // pred_check_branch
    %916 = sbr.rel (0) target = $region33
  $region32: #{_lambda_.9} parent=0 // pred_region
    _
  $region33: #{_lambda_.9} parent=0 // pred_fallthru
    _

</llo_original>
